<compile_context>
chip_gen: v5e
topology: v5e:2x2
jax: 0.10.0
libtpu: 0.0.40
codegen_flags: <defaults>
</compile_context>

<pallas_src>
import functools
import math

import jax
import jax.numpy as jnp
from jax.experimental import pallas as pl
from jax.experimental.pallas import tpu as pltpu  # noqa: F401  (kept for memory-space/params knobs)


# ----------------------- fused whole-stack kernel (single grid step) -----------------------
def _encoder_stack_kernel(x_ref, wqkv_ref, bqkv_ref, wo_ref, bo_ref,
                          ln1w_ref, ln1b_ref, ln2w_ref, ln2b_ref,
                          w1_ref, b1_ref, w2_ref, b2_ref,
                          o_ref, *, num_layers, num_heads, batch, seq, eps):
    D = x_ref.shape[-1]
    H = num_heads
    hd = D // H
    B, S = batch, seq

    x = x_ref[...]                              # (B*S, D) f32, stays in VMEM/vregs across layers

    def layer_norm(v, w, b):                    # PyTorch LayerNorm (biased variance)
        m = jnp.mean(v, axis=-1, keepdims=True)
        c = v - m
        var = jnp.mean(c * c, axis=-1, keepdims=True)
        return c * jax.lax.rsqrt(var + eps) * w + b

    for l in range(num_layers):                 # static, unrolled; no HBM traffic between layers
        # ---- fused QKV projection: one matmul (softmax scale pre-folded into q columns)
        qkv = jnp.dot(x, wqkv_ref[l], preferred_element_type=jnp.float32) + bqkv_ref[l]  # (B*S, 3D)

        # ---- per-(batch, head) attention; B and H are tiny & static => unrolled
        rows = []
        for b in range(B):
            r0 = b * S
            heads = []
            for h in range(H):
                q = qkv[r0:r0 + S, h * hd:(h + 1) * hd]
                k = qkv[r0:r0 + S, D + h * hd:D + (h + 1) * hd]
                v = qkv[r0:r0 + S, 2 * D + h * hd:2 * D + (h + 1) * hd]
                s = jax.lax.dot_general(q, k, (((1,), (1,)), ((), ())),
                                        preferred_element_type=jnp.float32)        # (S, S)
                s = s - jnp.max(s, axis=-1, keepdims=True)
                p = jnp.exp(s)
                p = p * pl.reciprocal(jnp.sum(p, axis=-1, keepdims=True), approx=False)
                heads.append(jnp.dot(p, v, preferred_element_type=jnp.float32))     # (S, hd)
            rows.append(jnp.concatenate(heads, axis=-1))                            # (S, D)
        attn = jnp.concatenate(rows, axis=0)                                        # (B*S, D)

        # ---- single out-projection matmul over all rows / heads
        attn = jnp.dot(attn, wo_ref[l], preferred_element_type=jnp.float32) + bo_ref[l]

        x1 = layer_norm(x + attn, ln1w_ref[l], ln1b_ref[l])          # norm1(x + sa_block(x))

        # ---- feed-forward block
        hid = jnp.dot(x1, w1_ref[l], preferred_element_type=jnp.float32) + b1_ref[l]
        hid = jnp.maximum(hid, 0.0)                                   # relu
        ff = jnp.dot(hid, w2_ref[l], preferred_element_type=jnp.float32) + b2_ref[l]
        x = layer_norm(x1 + ff, ln2w_ref[l], ln2b_ref[l])             # norm2(x + ff_block(x))

    o_ref[...] = x


@functools.partial(jax.jit, static_argnames=("num_heads", "eps"))
def encoder_forward(stacked, x, *, num_heads, eps):
    B, S, D = x.shape
    L = stacked["wqkv"].shape[0]
    kernel = functools.partial(_encoder_stack_kernel, num_layers=L, num_heads=num_heads,
                               batch=B, seq=S, eps=eps)
    # Single grid step, full-array VMEM blocks (default BlockSpecs). Total operand
    # footprint is ~330 KB << VMEM on all generations, so no tiling is used.
    out2d = pl.pallas_call(
        kernel,
        out_shape=jax.ShapeDtypeStruct((B * S, D), jnp.float32),
    )(x.reshape(B * S, D),
      stacked["wqkv"], stacked["bqkv"], stacked["wo"], stacked["bo"],
      stacked["ln1w"], stacked["ln1b"], stacked["ln2w"], stacked["ln2b"],
      stacked["w1"], stacked["b1"], stacked["w2"], stacked["b2"])
    return out2d.reshape(B, S, D)


# -------------------------- parameter init (PyTorch layout) & one-time packing --------------------------
def init_layer_params(key, d_model, dim_forward):
    D, F = d_model, dim_forward
    ks = jax.random.split(key, 6)

    def xavier(k, shape):
        fan_out, fan_in = shape
        limit = math.sqrt(6.0 / (fan_in + fan_out))
        return jax.random.uniform(k, shape, jnp.float32, -limit, limit)

    return {
        "in_proj_w": xavier(ks[0], (3 * D, D)),                 # direct_embedding
        "in_proj_b": jnp.zeros((3 * D,), jnp.float32),          # constant_(0.)
        "out_proj_w": xavier(ks[1], (D, D)),
        "out_proj_b": jnp.zeros((D,), jnp.float32),             # constant_(0.)
        "lin1_w": xavier(ks[2], (F, D)),
        "lin1_b": jax.random.uniform(ks[3], (F,), jnp.float32, -0.05, 0.05),
        "lin2_w": xavier(ks[4], (D, F)),
        "lin2_b": jax.random.uniform(ks[5], (D,), jnp.float32, -0.05, 0.05),
        "ln1_w": jnp.ones((D,), jnp.float32), "ln1_b": jnp.zeros((D,), jnp.float32),
        "ln2_w": jnp.ones((D,), jnp.float32), "ln2_b": jnp.zeros((D,), jnp.float32),
    }


def pack_stack_params(raw_layers, num_heads):
    """One-time host-side packing for the fused stack kernel:
    pre-transpose all weights, fold the 1/sqrt(head_dim) softmax scale into the q
    columns, and stack every parameter along a leading layer axis L."""
    D = raw_layers[0]["ln1_w"].shape[0]
    F = raw_layers[0]["lin1_w"].shape[0]
    hd = D // num_heads
    scale = 1.0 / math.sqrt(hd)

    def pack_one(raw):
        wt = raw["in_proj_w"].T                                           # (D, 3D), cols = [q|k|v]
        wt = jnp.concatenate([wt[:, :D] * scale, wt[:, D:]], axis=1)      # fold softmax scale into q
        bt = jnp.concatenate([raw["in_proj_b"][:D] * scale,
                              raw["in_proj_b"][D:]]).reshape(1, 3 * D)
        return {
            "wqkv": wt, "bqkv": bt,
            "wo": raw["out_proj_w"].T, "bo": raw["out_proj_b"].reshape(1, D),
            "ln1w": raw["ln1_w"].reshape(1, D), "ln1b": raw["ln1_b"].reshape(1, D),
            "ln2w": raw["ln2_w"].reshape(1, D), "ln2b": raw["ln2_b"].reshape(1, D),
            "w1": raw["lin1_w"].T, "b1": raw["lin1_b"].reshape(1, F),
            "w2": raw["lin2_w"].T, "b2": raw["lin2_b"].reshape(1, D),
        }

    packed = [pack_one(r) for r in raw_layers]
    return {k: jnp.stack([p[k] for p in packed], axis=0) for k in packed[0]}


# -------------------------------- pure-JAX reference (PyTorch-layout params) --------------------------------
_HI = jax.lax.Precision.HIGHEST


def _ref_ln(x, w, b, eps):
    m = jnp.mean(x, -1, keepdims=True)
    v = jnp.mean((x - m) ** 2, -1, keepdims=True)
    return (x - m) / jnp.sqrt(v + eps) * w + b


def _ref_mha(x, raw, H):
    B, S, D = x.shape
    hd = D // H
    qkv = jnp.dot(x, raw["in_proj_w"].T, precision=_HI) + raw["in_proj_b"]   # (B,S,3D)
    q, k, v = qkv[..., :D], qkv[..., D:2 * D], qkv[..., 2 * D:]
    split = lambda t: t.reshape(B, S, H, hd).transpose(0, 2, 1, 3)           # (B,H,S,hd)
    q, k, v = split(q), split(k), split(v)
    s = jnp.einsum("bhqd,bhkd->bhqk", q / math.sqrt(hd), k, precision=_HI)
    p = jax.nn.softmax(s, axis=-1)
    o = jnp.einsum("bhqk,bhkd->bhqd", p, v, precision=_HI)
    o = o.transpose(0, 2, 1, 3).reshape(B, S, D)
    return jnp.dot(o, raw["out_proj_w"].T, precision=_HI) + raw["out_proj_b"]


def ref_encoder_layer(x, raw, H, eps):
    x = _ref_ln(x + _ref_mha(x, raw, H), raw["ln1_w"], raw["ln1_b"], eps)
    h = jnp.maximum(jnp.dot(x, raw["lin1_w"].T, precision=_HI) + raw["lin1_b"], 0.0)
    ff = jnp.dot(h, raw["lin2_w"].T, precision=_HI) + raw["lin2_b"]
    return _ref_ln(x + ff, raw["ln2_w"], raw["ln2_b"], eps)


def ref_encoder(x, raw_layers, H, eps):
    for raw in raw_layers:
        x = ref_encoder_layer(x, raw, H, eps)
    return x


# ------------------------------------------------ main ------------------------------------------------
if __name__ == "__main__":
    # transformer_encoder_layer(10, 2, batch_first=True), src = torch.rand(3, 6, 10)
    D_MODEL, N_HEAD, DIM_FORWARD = 10, 2, 2048
    B, S = 3, 6
    NUM_LAYERS = 2
    LAYER_NORM_EPS = 1e-8          # spec module's default layer_norm_eps

    key = jax.random.PRNGKey(0)
    k_param, k_src = jax.random.split(key)
    raw_layer = init_layer_params(k_param, D_MODEL, DIM_FORWARD)
    # transformer_encoder uses _get_clones (deepcopy) => all layers start with identical params
    raw_layers = [raw_layer] * NUM_LAYERS
    stacked_params = pack_stack_params(raw_layers, N_HEAD)

    src = jax.random.uniform(k_src, (B, S, D_MODEL), jnp.float32)   # like torch.rand(3, 6, 10)

    out = encoder_forward(stacked_params, src, num_heads=N_HEAD, eps=LAYER_NORM_EPS)
    out = jax.block_until_ready(out)

    ref = ref_encoder(src, raw_layers, N_HEAD, LAYER_NORM_EPS)
    assert out.shape == (B, S, D_MODEL) and out.dtype == jnp.float32
    max_err = float(jnp.max(jnp.abs(out - ref)))
    assert jnp.allclose(out, ref, atol=2e-4, rtol=2e-4), max_err

    print("KERNEL_OK")
</pallas_src>

<mosaic_0001>
module attributes {stable_mosaic.version = 11 : i64} {
  func.func @_encoder_stack_kernel(%arg0: memref<18x10xf32, #tpu.memory_space<vmem>>, %arg1: memref<2x10x30xf32, #tpu.memory_space<vmem>>, %arg2: memref<2x1x30xf32, #tpu.memory_space<vmem>>, %arg3: memref<2x10x10xf32, #tpu.memory_space<vmem>>, %arg4: memref<2x1x10xf32, #tpu.memory_space<vmem>>, %arg5: memref<2x1x10xf32, #tpu.memory_space<vmem>>, %arg6: memref<2x1x10xf32, #tpu.memory_space<vmem>>, %arg7: memref<2x1x10xf32, #tpu.memory_space<vmem>>, %arg8: memref<2x1x10xf32, #tpu.memory_space<vmem>>, %arg9: memref<2x10x2048xf32, #tpu.memory_space<vmem>>, %arg10: memref<2x1x2048xf32, #tpu.memory_space<vmem>>, %arg11: memref<2x2048x10xf32, #tpu.memory_space<vmem>>, %arg12: memref<2x1x10xf32, #tpu.memory_space<vmem>>, %arg13: memref<18x10xf32, #tpu.memory_space<vmem>>) attributes {dimension_semantics = [], scalar_prefetch = 0 : i64, scratch_operands = 0 : i64, tpu.core_type = #tpu.core_type<tc>} {
    %c0 = arith.constant 0 : index
    %c0_0 = arith.constant 0 : index
    %0 = vector.load %arg0[%c0, %c0_0] : memref<18x10xf32, #tpu.memory_space<vmem>>, vector<18x10xf32>
    %c0_1 = arith.constant 0 : index
    %c0_2 = arith.constant 0 : index
    %c0_3 = arith.constant 0 : index
    %1 = vector.load %arg1[%c0_1, %c0_2, %c0_3] : memref<2x10x30xf32, #tpu.memory_space<vmem>>, vector<1x10x30xf32>
    %2 = vector.shape_cast %1 : vector<1x10x30xf32> to vector<10x30xf32>
    %cst = arith.constant dense<0.000000e+00> : vector<18x30xf32>
    %3 = tpu.matmul %0, %2, %cst {dimension_numbers = #tpu.dot_dimension_numbers<[1], [0], [0], [1], [0, 0, 1, 1], [], []>} : vector<18x10xf32>, vector<10x30xf32>, vector<18x30xf32> -> vector<18x30xf32>
    %c0_4 = arith.constant 0 : index
    %c0_5 = arith.constant 0 : index
    %c0_6 = arith.constant 0 : index
    %4 = vector.load %arg2[%c0_4, %c0_5, %c0_6] : memref<2x1x30xf32, #tpu.memory_space<vmem>>, vector<1x1x30xf32>
    %5 = vector.shape_cast %4 : vector<1x1x30xf32> to vector<1x30xf32>
    %6 = vector.broadcast %5 : vector<1x30xf32> to vector<18x30xf32>
    %7 = arith.addf %3, %6 : vector<18x30xf32>
    %8 = vector.extract_strided_slice %7 {offsets = [0, 0], sizes = [6, 5], strides = [1, 1]} : vector<18x30xf32> to vector<6x5xf32>
    %9 = vector.extract_strided_slice %7 {offsets = [0, 10], sizes = [6, 5], strides = [1, 1]} : vector<18x30xf32> to vector<6x5xf32>
    %10 = vector.extract_strided_slice %7 {offsets = [0, 20], sizes = [6, 5], strides = [1, 1]} : vector<18x30xf32> to vector<6x5xf32>
    %cst_7 = arith.constant dense<0.000000e+00> : vector<6x6xf32>
    %11 = tpu.matmul %8, %9, %cst_7 {dimension_numbers = #tpu.dot_dimension_numbers<[1], [1], [0], [0], [0, 0, 1, 0], [], []>} : vector<6x5xf32>, vector<6x5xf32>, vector<6x6xf32> -> vector<6x6xf32>
    %cst_8 = arith.constant dense<0xFF800000> : vector<6xf32>
    %12 = vector.multi_reduction <maximumf>, %11, %cst_8 [1] : vector<6x6xf32> to vector<6xf32>
    %13 = vector.shape_cast %12 : vector<6xf32> to vector<6x1xf32>
    %14 = vector.broadcast %13 : vector<6x1xf32> to vector<6x6xf32>
    %15 = arith.subf %11, %14 : vector<6x6xf32>
    %16 = math.exp %15 : vector<6x6xf32>
    %cst_9 = arith.constant dense<0.000000e+00> : vector<6xf32>
    %17 = vector.multi_reduction <add>, %16, %cst_9 [1] : vector<6x6xf32> to vector<6xf32>
    %18 = vector.shape_cast %17 : vector<6xf32> to vector<6x1xf32>
    %19 = tpu.reciprocal %18 : vector<6x1xf32> -> vector<6x1xf32>
    %20 = vector.broadcast %19 : vector<6x1xf32> to vector<6x6xf32>
    %21 = arith.mulf %16, %20 : vector<6x6xf32>
    %cst_10 = arith.constant dense<0.000000e+00> : vector<6x5xf32>
    %22 = tpu.matmul %21, %10, %cst_10 {dimension_numbers = #tpu.dot_dimension_numbers<[1], [0], [0], [1], [0, 0, 1, 1], [], []>} : vector<6x6xf32>, vector<6x5xf32>, vector<6x5xf32> -> vector<6x5xf32>
    %23 = vector.extract_strided_slice %7 {offsets = [0, 5], sizes = [6, 5], strides = [1, 1]} : vector<18x30xf32> to vector<6x5xf32>
    %24 = vector.extract_strided_slice %7 {offsets = [0, 15], sizes = [6, 5], strides = [1, 1]} : vector<18x30xf32> to vector<6x5xf32>
    %25 = vector.extract_strided_slice %7 {offsets = [0, 25], sizes = [6, 5], strides = [1, 1]} : vector<18x30xf32> to vector<6x5xf32>
    %cst_11 = arith.constant dense<0.000000e+00> : vector<6x6xf32>
    %26 = tpu.matmul %23, %24, %cst_11 {dimension_numbers = #tpu.dot_dimension_numbers<[1], [1], [0], [0], [0, 0, 1, 0], [], []>} : vector<6x5xf32>, vector<6x5xf32>, vector<6x6xf32> -> vector<6x6xf32>
    %cst_12 = arith.constant dense<0xFF800000> : vector<6xf32>
    %27 = vector.multi_reduction <maximumf>, %26, %cst_12 [1] : vector<6x6xf32> to vector<6xf32>
    %28 = vector.shape_cast %27 : vector<6xf32> to vector<6x1xf32>
    %29 = vector.broadcast %28 : vector<6x1xf32> to vector<6x6xf32>
    %30 = arith.subf %26, %29 : vector<6x6xf32>
    %31 = math.exp %30 : vector<6x6xf32>
    %cst_13 = arith.constant dense<0.000000e+00> : vector<6xf32>
    %32 = vector.multi_reduction <add>, %31, %cst_13 [1] : vector<6x6xf32> to vector<6xf32>
    %33 = vector.shape_cast %32 : vector<6xf32> to vector<6x1xf32>
    %34 = tpu.reciprocal %33 : vector<6x1xf32> -> vector<6x1xf32>
    %35 = vector.broadcast %34 : vector<6x1xf32> to vector<6x6xf32>
    %36 = arith.mulf %31, %35 : vector<6x6xf32>
    %cst_14 = arith.constant dense<0.000000e+00> : vector<6x5xf32>
    %37 = tpu.matmul %36, %25, %cst_14 {dimension_numbers = #tpu.dot_dimension_numbers<[1], [0], [0], [1], [0, 0, 1, 1], [], []>} : vector<6x6xf32>, vector<6x5xf32>, vector<6x5xf32> -> vector<6x5xf32>
    %38 = tpu.concatenate %22, %37 in 1 : vector<6x5xf32>, vector<6x5xf32> -> vector<6x10xf32>
    %39 = vector.extract_strided_slice %7 {offsets = [6, 0], sizes = [6, 5], strides = [1, 1]} : vector<18x30xf32> to vector<6x5xf32>
    %40 = vector.extract_strided_slice %7 {offsets = [6, 10], sizes = [6, 5], strides = [1, 1]} : vector<18x30xf32> to vector<6x5xf32>
    %41 = vector.extract_strided_slice %7 {offsets = [6, 20], sizes = [6, 5], strides = [1, 1]} : vector<18x30xf32> to vector<6x5xf32>
    %cst_15 = arith.constant dense<0.000000e+00> : vector<6x6xf32>
    %42 = tpu.matmul %39, %40, %cst_15 {dimension_numbers = #tpu.dot_dimension_numbers<[1], [1], [0], [0], [0, 0, 1, 0], [], []>} : vector<6x5xf32>, vector<6x5xf32>, vector<6x6xf32> -> vector<6x6xf32>
    %cst_16 = arith.constant dense<0xFF800000> : vector<6xf32>
    %43 = vector.multi_reduction <maximumf>, %42, %cst_16 [1] : vector<6x6xf32> to vector<6xf32>
    %44 = vector.shape_cast %43 : vector<6xf32> to vector<6x1xf32>
    %45 = vector.broadcast %44 : vector<6x1xf32> to vector<6x6xf32>
    %46 = arith.subf %42, %45 : vector<6x6xf32>
    %47 = math.exp %46 : vector<6x6xf32>
    %cst_17 = arith.constant dense<0.000000e+00> : vector<6xf32>
    %48 = vector.multi_reduction <add>, %47, %cst_17 [1] : vector<6x6xf32> to vector<6xf32>
    %49 = vector.shape_cast %48 : vector<6xf32> to vector<6x1xf32>
    %50 = tpu.reciprocal %49 : vector<6x1xf32> -> vector<6x1xf32>
    %51 = vector.broadcast %50 : vector<6x1xf32> to vector<6x6xf32>
    %52 = arith.mulf %47, %51 : vector<6x6xf32>
    %cst_18 = arith.constant dense<0.000000e+00> : vector<6x5xf32>
    %53 = tpu.matmul %52, %41, %cst_18 {dimension_numbers = #tpu.dot_dimension_numbers<[1], [0], [0], [1], [0, 0, 1, 1], [], []>} : vector<6x6xf32>, vector<6x5xf32>, vector<6x5xf32> -> vector<6x5xf32>
    %54 = vector.extract_strided_slice %7 {offsets = [6, 5], sizes = [6, 5], strides = [1, 1]} : vector<18x30xf32> to vector<6x5xf32>
    %55 = vector.extract_strided_slice %7 {offsets = [6, 15], sizes = [6, 5], strides = [1, 1]} : vector<18x30xf32> to vector<6x5xf32>
    %56 = vector.extract_strided_slice %7 {offsets = [6, 25], sizes = [6, 5], strides = [1, 1]} : vector<18x30xf32> to vector<6x5xf32>
    %cst_19 = arith.constant dense<0.000000e+00> : vector<6x6xf32>
    %57 = tpu.matmul %54, %55, %cst_19 {dimension_numbers = #tpu.dot_dimension_numbers<[1], [1], [0], [0], [0, 0, 1, 0], [], []>} : vector<6x5xf32>, vector<6x5xf32>, vector<6x6xf32> -> vector<6x6xf32>
    %cst_20 = arith.constant dense<0xFF800000> : vector<6xf32>
    %58 = vector.multi_reduction <maximumf>, %57, %cst_20 [1] : vector<6x6xf32> to vector<6xf32>
    %59 = vector.shape_cast %58 : vector<6xf32> to vector<6x1xf32>
    %60 = vector.broadcast %59 : vector<6x1xf32> to vector<6x6xf32>
    %61 = arith.subf %57, %60 : vector<6x6xf32>
    %62 = math.exp %61 : vector<6x6xf32>
    %cst_21 = arith.constant dense<0.000000e+00> : vector<6xf32>
    %63 = vector.multi_reduction <add>, %62, %cst_21 [1] : vector<6x6xf32> to vector<6xf32>
    %64 = vector.shape_cast %63 : vector<6xf32> to vector<6x1xf32>
    %65 = tpu.reciprocal %64 : vector<6x1xf32> -> vector<6x1xf32>
    %66 = vector.broadcast %65 : vector<6x1xf32> to vector<6x6xf32>
    %67 = arith.mulf %62, %66 : vector<6x6xf32>
    %cst_22 = arith.constant dense<0.000000e+00> : vector<6x5xf32>
    %68 = tpu.matmul %67, %56, %cst_22 {dimension_numbers = #tpu.dot_dimension_numbers<[1], [0], [0], [1], [0, 0, 1, 1], [], []>} : vector<6x6xf32>, vector<6x5xf32>, vector<6x5xf32> -> vector<6x5xf32>
    %69 = tpu.concatenate %53, %68 in 1 : vector<6x5xf32>, vector<6x5xf32> -> vector<6x10xf32>
    %70 = vector.extract_strided_slice %7 {offsets = [12, 0], sizes = [6, 5], strides = [1, 1]} : vector<18x30xf32> to vector<6x5xf32>
    %71 = vector.extract_strided_slice %7 {offsets = [12, 10], sizes = [6, 5], strides = [1, 1]} : vector<18x30xf32> to vector<6x5xf32>
    %72 = vector.extract_strided_slice %7 {offsets = [12, 20], sizes = [6, 5], strides = [1, 1]} : vector<18x30xf32> to vector<6x5xf32>
    %cst_23 = arith.constant dense<0.000000e+00> : vector<6x6xf32>
    %73 = tpu.matmul %70, %71, %cst_23 {dimension_numbers = #tpu.dot_dimension_numbers<[1], [1], [0], [0], [0, 0, 1, 0], [], []>} : vector<6x5xf32>, vector<6x5xf32>, vector<6x6xf32> -> vector<6x6xf32>
    %cst_24 = arith.constant dense<0xFF800000> : vector<6xf32>
    %74 = vector.multi_reduction <maximumf>, %73, %cst_24 [1] : vector<6x6xf32> to vector<6xf32>
    %75 = vector.shape_cast %74 : vector<6xf32> to vector<6x1xf32>
    %76 = vector.broadcast %75 : vector<6x1xf32> to vector<6x6xf32>
    %77 = arith.subf %73, %76 : vector<6x6xf32>
    %78 = math.exp %77 : vector<6x6xf32>
    %cst_25 = arith.constant dense<0.000000e+00> : vector<6xf32>
    %79 = vector.multi_reduction <add>, %78, %cst_25 [1] : vector<6x6xf32> to vector<6xf32>
    %80 = vector.shape_cast %79 : vector<6xf32> to vector<6x1xf32>
    %81 = tpu.reciprocal %80 : vector<6x1xf32> -> vector<6x1xf32>
    %82 = vector.broadcast %81 : vector<6x1xf32> to vector<6x6xf32>
    %83 = arith.mulf %78, %82 : vector<6x6xf32>
    %cst_26 = arith.constant dense<0.000000e+00> : vector<6x5xf32>
    %84 = tpu.matmul %83, %72, %cst_26 {dimension_numbers = #tpu.dot_dimension_numbers<[1], [0], [0], [1], [0, 0, 1, 1], [], []>} : vector<6x6xf32>, vector<6x5xf32>, vector<6x5xf32> -> vector<6x5xf32>
    %85 = vector.extract_strided_slice %7 {offsets = [12, 5], sizes = [6, 5], strides = [1, 1]} : vector<18x30xf32> to vector<6x5xf32>
    %86 = vector.extract_strided_slice %7 {offsets = [12, 15], sizes = [6, 5], strides = [1, 1]} : vector<18x30xf32> to vector<6x5xf32>
    %87 = vector.extract_strided_slice %7 {offsets = [12, 25], sizes = [6, 5], strides = [1, 1]} : vector<18x30xf32> to vector<6x5xf32>
    %cst_27 = arith.constant dense<0.000000e+00> : vector<6x6xf32>
    %88 = tpu.matmul %85, %86, %cst_27 {dimension_numbers = #tpu.dot_dimension_numbers<[1], [1], [0], [0], [0, 0, 1, 0], [], []>} : vector<6x5xf32>, vector<6x5xf32>, vector<6x6xf32> -> vector<6x6xf32>
    %cst_28 = arith.constant dense<0xFF800000> : vector<6xf32>
    %89 = vector.multi_reduction <maximumf>, %88, %cst_28 [1] : vector<6x6xf32> to vector<6xf32>
    %90 = vector.shape_cast %89 : vector<6xf32> to vector<6x1xf32>
    %91 = vector.broadcast %90 : vector<6x1xf32> to vector<6x6xf32>
    %92 = arith.subf %88, %91 : vector<6x6xf32>
    %93 = math.exp %92 : vector<6x6xf32>
    %cst_29 = arith.constant dense<0.000000e+00> : vector<6xf32>
    %94 = vector.multi_reduction <add>, %93, %cst_29 [1] : vector<6x6xf32> to vector<6xf32>
    %95 = vector.shape_cast %94 : vector<6xf32> to vector<6x1xf32>
    %96 = tpu.reciprocal %95 : vector<6x1xf32> -> vector<6x1xf32>
    %97 = vector.broadcast %96 : vector<6x1xf32> to vector<6x6xf32>
    %98 = arith.mulf %93, %97 : vector<6x6xf32>
    %cst_30 = arith.constant dense<0.000000e+00> : vector<6x5xf32>
    %99 = tpu.matmul %98, %87, %cst_30 {dimension_numbers = #tpu.dot_dimension_numbers<[1], [0], [0], [1], [0, 0, 1, 1], [], []>} : vector<6x6xf32>, vector<6x5xf32>, vector<6x5xf32> -> vector<6x5xf32>
    %100 = tpu.concatenate %84, %99 in 1 : vector<6x5xf32>, vector<6x5xf32> -> vector<6x10xf32>
    %101 = tpu.concatenate %38, %69, %100 in 0 : vector<6x10xf32>, vector<6x10xf32>, vector<6x10xf32> -> vector<18x10xf32>
    %c0_31 = arith.constant 0 : index
    %c0_32 = arith.constant 0 : index
    %c0_33 = arith.constant 0 : index
    %102 = vector.load %arg3[%c0_31, %c0_32, %c0_33] : memref<2x10x10xf32, #tpu.memory_space<vmem>>, vector<1x10x10xf32>
    %103 = vector.shape_cast %102 : vector<1x10x10xf32> to vector<10x10xf32>
    %cst_34 = arith.constant dense<0.000000e+00> : vector<18x10xf32>
    %104 = tpu.matmul %101, %103, %cst_34 {dimension_numbers = #tpu.dot_dimension_numbers<[1], [0], [0], [1], [0, 0, 1, 1], [], []>} : vector<18x10xf32>, vector<10x10xf32>, vector<18x10xf32> -> vector<18x10xf32>
    %c0_35 = arith.constant 0 : index
    %c0_36 = arith.constant 0 : index
    %c0_37 = arith.constant 0 : index
    %105 = vector.load %arg4[%c0_35, %c0_36, %c0_37] : memref<2x1x10xf32, #tpu.memory_space<vmem>>, vector<1x1x10xf32>
    %106 = vector.shape_cast %105 : vector<1x1x10xf32> to vector<1x10xf32>
    %107 = vector.broadcast %106 : vector<1x10xf32> to vector<18x10xf32>
    %108 = arith.addf %104, %107 : vector<18x10xf32>
    %109 = arith.addf %0, %108 : vector<18x10xf32>
    %c0_38 = arith.constant 0 : index
    %c0_39 = arith.constant 0 : index
    %c0_40 = arith.constant 0 : index
    %110 = vector.load %arg5[%c0_38, %c0_39, %c0_40] : memref<2x1x10xf32, #tpu.memory_space<vmem>>, vector<1x1x10xf32>
    %111 = vector.shape_cast %110 : vector<1x1x10xf32> to vector<1x10xf32>
    %c0_41 = arith.constant 0 : index
    %c0_42 = arith.constant 0 : index
    %c0_43 = arith.constant 0 : index
    %112 = vector.load %arg6[%c0_41, %c0_42, %c0_43] : memref<2x1x10xf32, #tpu.memory_space<vmem>>, vector<1x1x10xf32>
    %113 = vector.shape_cast %112 : vector<1x1x10xf32> to vector<1x10xf32>
    %cst_44 = arith.constant dense<0.000000e+00> : vector<18xf32>
    %114 = vector.multi_reduction <add>, %109, %cst_44 [1] : vector<18x10xf32> to vector<18xf32>
    %115 = vector.shape_cast %114 : vector<18xf32> to vector<18x1xf32>
    %cst_45 = arith.constant 1.000000e+01 : f32
    %116 = vector.broadcast %cst_45 : f32 to vector<18x1xf32>
    %117 = arith.divf %115, %116 : vector<18x1xf32>
    %118 = vector.broadcast %117 : vector<18x1xf32> to vector<18x10xf32>
    %119 = arith.subf %109, %118 : vector<18x10xf32>
    %120 = arith.mulf %119, %119 : vector<18x10xf32>
    %cst_46 = arith.constant dense<0.000000e+00> : vector<18xf32>
    %121 = vector.multi_reduction <add>, %120, %cst_46 [1] : vector<18x10xf32> to vector<18xf32>
    %122 = vector.shape_cast %121 : vector<18xf32> to vector<18x1xf32>
    %cst_47 = arith.constant 1.000000e+01 : f32
    %123 = vector.broadcast %cst_47 : f32 to vector<18x1xf32>
    %124 = arith.divf %122, %123 : vector<18x1xf32>
    %cst_48 = arith.constant 9.99999993E-9 : f32
    %125 = vector.broadcast %cst_48 : f32 to vector<18x1xf32>
    %126 = arith.addf %124, %125 : vector<18x1xf32>
    %127 = math.rsqrt %126 : vector<18x1xf32>
    %128 = vector.broadcast %127 : vector<18x1xf32> to vector<18x10xf32>
    %129 = arith.mulf %119, %128 : vector<18x10xf32>
    %130 = vector.broadcast %111 : vector<1x10xf32> to vector<18x10xf32>
    %131 = arith.mulf %129, %130 : vector<18x10xf32>
    %132 = vector.broadcast %113 : vector<1x10xf32> to vector<18x10xf32>
    %133 = arith.addf %131, %132 : vector<18x10xf32>
    %c0_49 = arith.constant 0 : index
    %c0_50 = arith.constant 0 : index
    %c0_51 = arith.constant 0 : index
    %134 = vector.load %arg9[%c0_49, %c0_50, %c0_51] : memref<2x10x2048xf32, #tpu.memory_space<vmem>>, vector<1x10x2048xf32>
    %135 = vector.shape_cast %134 : vector<1x10x2048xf32> to vector<10x2048xf32>
    %cst_52 = arith.constant dense<0.000000e+00> : vector<18x2048xf32>
    %136 = tpu.matmul %133, %135, %cst_52 {dimension_numbers = #tpu.dot_dimension_numbers<[1], [0], [0], [1], [0, 0, 1, 1], [], []>} : vector<18x10xf32>, vector<10x2048xf32>, vector<18x2048xf32> -> vector<18x2048xf32>
    %c0_53 = arith.constant 0 : index
    %c0_54 = arith.constant 0 : index
    %c0_55 = arith.constant 0 : index
    %137 = vector.load %arg10[%c0_53, %c0_54, %c0_55] : memref<2x1x2048xf32, #tpu.memory_space<vmem>>, vector<1x1x2048xf32>
    %138 = vector.shape_cast %137 : vector<1x1x2048xf32> to vector<1x2048xf32>
    %139 = vector.broadcast %138 : vector<1x2048xf32> to vector<18x2048xf32>
    %140 = arith.addf %136, %139 : vector<18x2048xf32>
    %cst_56 = arith.constant 0.000000e+00 : f32
    %141 = vector.broadcast %cst_56 : f32 to vector<18x2048xf32>
    %142 = arith.maximumf %140, %141 : vector<18x2048xf32>
    %c0_57 = arith.constant 0 : index
    %c0_58 = arith.constant 0 : index
    %c0_59 = arith.constant 0 : index
    %143 = vector.load %arg11[%c0_57, %c0_58, %c0_59] : memref<2x2048x10xf32, #tpu.memory_space<vmem>>, vector<1x2048x10xf32>
    %144 = vector.shape_cast %143 : vector<1x2048x10xf32> to vector<2048x10xf32>
    %cst_60 = arith.constant dense<0.000000e+00> : vector<18x10xf32>
    %145 = tpu.matmul %142, %144, %cst_60 {dimension_numbers = #tpu.dot_dimension_numbers<[1], [0], [0], [1], [0, 0, 1, 1], [], []>} : vector<18x2048xf32>, vector<2048x10xf32>, vector<18x10xf32> -> vector<18x10xf32>
    %c0_61 = arith.constant 0 : index
    %c0_62 = arith.constant 0 : index
    %c0_63 = arith.constant 0 : index
    %146 = vector.load %arg12[%c0_61, %c0_62, %c0_63] : memref<2x1x10xf32, #tpu.memory_space<vmem>>, vector<1x1x10xf32>
    %147 = vector.shape_cast %146 : vector<1x1x10xf32> to vector<1x10xf32>
    %148 = vector.broadcast %147 : vector<1x10xf32> to vector<18x10xf32>
    %149 = arith.addf %145, %148 : vector<18x10xf32>
    %150 = arith.addf %133, %149 : vector<18x10xf32>
    %c0_64 = arith.constant 0 : index
    %c0_65 = arith.constant 0 : index
    %c0_66 = arith.constant 0 : index
    %151 = vector.load %arg7[%c0_64, %c0_65, %c0_66] : memref<2x1x10xf32, #tpu.memory_space<vmem>>, vector<1x1x10xf32>
    %152 = vector.shape_cast %151 : vector<1x1x10xf32> to vector<1x10xf32>
    %c0_67 = arith.constant 0 : index
    %c0_68 = arith.constant 0 : index
    %c0_69 = arith.constant 0 : index
    %153 = vector.load %arg8[%c0_67, %c0_68, %c0_69] : memref<2x1x10xf32, #tpu.memory_space<vmem>>, vector<1x1x10xf32>
    %154 = vector.shape_cast %153 : vector<1x1x10xf32> to vector<1x10xf32>
    %cst_70 = arith.constant dense<0.000000e+00> : vector<18xf32>
    %155 = vector.multi_reduction <add>, %150, %cst_70 [1] : vector<18x10xf32> to vector<18xf32>
    %156 = vector.shape_cast %155 : vector<18xf32> to vector<18x1xf32>
    %cst_71 = arith.constant 1.000000e+01 : f32
    %157 = vector.broadcast %cst_71 : f32 to vector<18x1xf32>
    %158 = arith.divf %156, %157 : vector<18x1xf32>
    %159 = vector.broadcast %158 : vector<18x1xf32> to vector<18x10xf32>
    %160 = arith.subf %150, %159 : vector<18x10xf32>
    %161 = arith.mulf %160, %160 : vector<18x10xf32>
    %cst_72 = arith.constant dense<0.000000e+00> : vector<18xf32>
    %162 = vector.multi_reduction <add>, %161, %cst_72 [1] : vector<18x10xf32> to vector<18xf32>
    %163 = vector.shape_cast %162 : vector<18xf32> to vector<18x1xf32>
    %cst_73 = arith.constant 1.000000e+01 : f32
    %164 = vector.broadcast %cst_73 : f32 to vector<18x1xf32>
    %165 = arith.divf %163, %164 : vector<18x1xf32>
    %cst_74 = arith.constant 9.99999993E-9 : f32
    %166 = vector.broadcast %cst_74 : f32 to vector<18x1xf32>
    %167 = arith.addf %165, %166 : vector<18x1xf32>
    %168 = math.rsqrt %167 : vector<18x1xf32>
    %169 = vector.broadcast %168 : vector<18x1xf32> to vector<18x10xf32>
    %170 = arith.mulf %160, %169 : vector<18x10xf32>
    %171 = vector.broadcast %152 : vector<1x10xf32> to vector<18x10xf32>
    %172 = arith.mulf %170, %171 : vector<18x10xf32>
    %173 = vector.broadcast %154 : vector<1x10xf32> to vector<18x10xf32>
    %174 = arith.addf %172, %173 : vector<18x10xf32>
    %c1 = arith.constant 1 : index
    %c0_75 = arith.constant 0 : index
    %c0_76 = arith.constant 0 : index
    %175 = vector.load %arg1[%c1, %c0_75, %c0_76] : memref<2x10x30xf32, #tpu.memory_space<vmem>>, vector<1x10x30xf32>
    %176 = vector.shape_cast %175 : vector<1x10x30xf32> to vector<10x30xf32>
    %cst_77 = arith.constant dense<0.000000e+00> : vector<18x30xf32>
    %177 = tpu.matmul %174, %176, %cst_77 {dimension_numbers = #tpu.dot_dimension_numbers<[1], [0], [0], [1], [0, 0, 1, 1], [], []>} : vector<18x10xf32>, vector<10x30xf32>, vector<18x30xf32> -> vector<18x30xf32>
    %c1_78 = arith.constant 1 : index
    %c0_79 = arith.constant 0 : index
    %c0_80 = arith.constant 0 : index
    %178 = vector.load %arg2[%c1_78, %c0_79, %c0_80] : memref<2x1x30xf32, #tpu.memory_space<vmem>>, vector<1x1x30xf32>
    %179 = vector.shape_cast %178 : vector<1x1x30xf32> to vector<1x30xf32>
    %180 = vector.broadcast %179 : vector<1x30xf32> to vector<18x30xf32>
    %181 = arith.addf %177, %180 : vector<18x30xf32>
    %182 = vector.extract_strided_slice %181 {offsets = [0, 0], sizes = [6, 5], strides = [1, 1]} : vector<18x30xf32> to vector<6x5xf32>
    %183 = vector.extract_strided_slice %181 {offsets = [0, 10], sizes = [6, 5], strides = [1, 1]} : vector<18x30xf32> to vector<6x5xf32>
    %184 = vector.extract_strided_slice %181 {offsets = [0, 20], sizes = [6, 5], strides = [1, 1]} : vector<18x30xf32> to vector<6x5xf32>
    %cst_81 = arith.constant dense<0.000000e+00> : vector<6x6xf32>
    %185 = tpu.matmul %182, %183, %cst_81 {dimension_numbers = #tpu.dot_dimension_numbers<[1], [1], [0], [0], [0, 0, 1, 0], [], []>} : vector<6x5xf32>, vector<6x5xf32>, vector<6x6xf32> -> vector<6x6xf32>
    %cst_82 = arith.constant dense<0xFF800000> : vector<6xf32>
    %186 = vector.multi_reduction <maximumf>, %185, %cst_82 [1] : vector<6x6xf32> to vector<6xf32>
    %187 = vector.shape_cast %186 : vector<6xf32> to vector<6x1xf32>
    %188 = vector.broadcast %187 : vector<6x1xf32> to vector<6x6xf32>
    %189 = arith.subf %185, %188 : vector<6x6xf32>
    %190 = math.exp %189 : vector<6x6xf32>
    %cst_83 = arith.constant dense<0.000000e+00> : vector<6xf32>
    %191 = vector.multi_reduction <add>, %190, %cst_83 [1] : vector<6x6xf32> to vector<6xf32>
    %192 = vector.shape_cast %191 : vector<6xf32> to vector<6x1xf32>
    %193 = tpu.reciprocal %192 : vector<6x1xf32> -> vector<6x1xf32>
    %194 = vector.broadcast %193 : vector<6x1xf32> to vector<6x6xf32>
    %195 = arith.mulf %190, %194 : vector<6x6xf32>
    %cst_84 = arith.constant dense<0.000000e+00> : vector<6x5xf32>
    %196 = tpu.matmul %195, %184, %cst_84 {dimension_numbers = #tpu.dot_dimension_numbers<[1], [0], [0], [1], [0, 0, 1, 1], [], []>} : vector<6x6xf32>, vector<6x5xf32>, vector<6x5xf32> -> vector<6x5xf32>
    %197 = vector.extract_strided_slice %181 {offsets = [0, 5], sizes = [6, 5], strides = [1, 1]} : vector<18x30xf32> to vector<6x5xf32>
    %198 = vector.extract_strided_slice %181 {offsets = [0, 15], sizes = [6, 5], strides = [1, 1]} : vector<18x30xf32> to vector<6x5xf32>
    %199 = vector.extract_strided_slice %181 {offsets = [0, 25], sizes = [6, 5], strides = [1, 1]} : vector<18x30xf32> to vector<6x5xf32>
    %cst_85 = arith.constant dense<0.000000e+00> : vector<6x6xf32>
    %200 = tpu.matmul %197, %198, %cst_85 {dimension_numbers = #tpu.dot_dimension_numbers<[1], [1], [0], [0], [0, 0, 1, 0], [], []>} : vector<6x5xf32>, vector<6x5xf32>, vector<6x6xf32> -> vector<6x6xf32>
    %cst_86 = arith.constant dense<0xFF800000> : vector<6xf32>
    %201 = vector.multi_reduction <maximumf>, %200, %cst_86 [1] : vector<6x6xf32> to vector<6xf32>
    %202 = vector.shape_cast %201 : vector<6xf32> to vector<6x1xf32>
    %203 = vector.broadcast %202 : vector<6x1xf32> to vector<6x6xf32>
    %204 = arith.subf %200, %203 : vector<6x6xf32>
    %205 = math.exp %204 : vector<6x6xf32>
    %cst_87 = arith.constant dense<0.000000e+00> : vector<6xf32>
    %206 = vector.multi_reduction <add>, %205, %cst_87 [1] : vector<6x6xf32> to vector<6xf32>
    %207 = vector.shape_cast %206 : vector<6xf32> to vector<6x1xf32>
    %208 = tpu.reciprocal %207 : vector<6x1xf32> -> vector<6x1xf32>
    %209 = vector.broadcast %208 : vector<6x1xf32> to vector<6x6xf32>
    %210 = arith.mulf %205, %209 : vector<6x6xf32>
    %cst_88 = arith.constant dense<0.000000e+00> : vector<6x5xf32>
    %211 = tpu.matmul %210, %199, %cst_88 {dimension_numbers = #tpu.dot_dimension_numbers<[1], [0], [0], [1], [0, 0, 1, 1], [], []>} : vector<6x6xf32>, vector<6x5xf32>, vector<6x5xf32> -> vector<6x5xf32>
    %212 = tpu.concatenate %196, %211 in 1 : vector<6x5xf32>, vector<6x5xf32> -> vector<6x10xf32>
    %213 = vector.extract_strided_slice %181 {offsets = [6, 0], sizes = [6, 5], strides = [1, 1]} : vector<18x30xf32> to vector<6x5xf32>
    %214 = vector.extract_strided_slice %181 {offsets = [6, 10], sizes = [6, 5], strides = [1, 1]} : vector<18x30xf32> to vector<6x5xf32>
    %215 = vector.extract_strided_slice %181 {offsets = [6, 20], sizes = [6, 5], strides = [1, 1]} : vector<18x30xf32> to vector<6x5xf32>
    %cst_89 = arith.constant dense<0.000000e+00> : vector<6x6xf32>
    %216 = tpu.matmul %213, %214, %cst_89 {dimension_numbers = #tpu.dot_dimension_numbers<[1], [1], [0], [0], [0, 0, 1, 0], [], []>} : vector<6x5xf32>, vector<6x5xf32>, vector<6x6xf32> -> vector<6x6xf32>
    %cst_90 = arith.constant dense<0xFF800000> : vector<6xf32>
    %217 = vector.multi_reduction <maximumf>, %216, %cst_90 [1] : vector<6x6xf32> to vector<6xf32>
    %218 = vector.shape_cast %217 : vector<6xf32> to vector<6x1xf32>
    %219 = vector.broadcast %218 : vector<6x1xf32> to vector<6x6xf32>
    %220 = arith.subf %216, %219 : vector<6x6xf32>
    %221 = math.exp %220 : vector<6x6xf32>
    %cst_91 = arith.constant dense<0.000000e+00> : vector<6xf32>
    %222 = vector.multi_reduction <add>, %221, %cst_91 [1] : vector<6x6xf32> to vector<6xf32>
    %223 = vector.shape_cast %222 : vector<6xf32> to vector<6x1xf32>
    %224 = tpu.reciprocal %223 : vector<6x1xf32> -> vector<6x1xf32>
    %225 = vector.broadcast %224 : vector<6x1xf32> to vector<6x6xf32>
    %226 = arith.mulf %221, %225 : vector<6x6xf32>
    %cst_92 = arith.constant dense<0.000000e+00> : vector<6x5xf32>
    %227 = tpu.matmul %226, %215, %cst_92 {dimension_numbers = #tpu.dot_dimension_numbers<[1], [0], [0], [1], [0, 0, 1, 1], [], []>} : vector<6x6xf32>, vector<6x5xf32>, vector<6x5xf32> -> vector<6x5xf32>
    %228 = vector.extract_strided_slice %181 {offsets = [6, 5], sizes = [6, 5], strides = [1, 1]} : vector<18x30xf32> to vector<6x5xf32>
    %229 = vector.extract_strided_slice %181 {offsets = [6, 15], sizes = [6, 5], strides = [1, 1]} : vector<18x30xf32> to vector<6x5xf32>
    %230 = vector.extract_strided_slice %181 {offsets = [6, 25], sizes = [6, 5], strides = [1, 1]} : vector<18x30xf32> to vector<6x5xf32>
    %cst_93 = arith.constant dense<0.000000e+00> : vector<6x6xf32>
    %231 = tpu.matmul %228, %229, %cst_93 {dimension_numbers = #tpu.dot_dimension_numbers<[1], [1], [0], [0], [0, 0, 1, 0], [], []>} : vector<6x5xf32>, vector<6x5xf32>, vector<6x6xf32> -> vector<6x6xf32>
    %cst_94 = arith.constant dense<0xFF800000> : vector<6xf32>
    %232 = vector.multi_reduction <maximumf>, %231, %cst_94 [1] : vector<6x6xf32> to vector<6xf32>
    %233 = vector.shape_cast %232 : vector<6xf32> to vector<6x1xf32>
    %234 = vector.broadcast %233 : vector<6x1xf32> to vector<6x6xf32>
    %235 = arith.subf %231, %234 : vector<6x6xf32>
    %236 = math.exp %235 : vector<6x6xf32>
    %cst_95 = arith.constant dense<0.000000e+00> : vector<6xf32>
    %237 = vector.multi_reduction <add>, %236, %cst_95 [1] : vector<6x6xf32> to vector<6xf32>
    %238 = vector.shape_cast %237 : vector<6xf32> to vector<6x1xf32>
    %239 = tpu.reciprocal %238 : vector<6x1xf32> -> vector<6x1xf32>
    %240 = vector.broadcast %239 : vector<6x1xf32> to vector<6x6xf32>
    %241 = arith.mulf %236, %240 : vector<6x6xf32>
    %cst_96 = arith.constant dense<0.000000e+00> : vector<6x5xf32>
    %242 = tpu.matmul %241, %230, %cst_96 {dimension_numbers = #tpu.dot_dimension_numbers<[1], [0], [0], [1], [0, 0, 1, 1], [], []>} : vector<6x6xf32>, vector<6x5xf32>, vector<6x5xf32> -> vector<6x5xf32>
    %243 = tpu.concatenate %227, %242 in 1 : vector<6x5xf32>, vector<6x5xf32> -> vector<6x10xf32>
    %244 = vector.extract_strided_slice %181 {offsets = [12, 0], sizes = [6, 5], strides = [1, 1]} : vector<18x30xf32> to vector<6x5xf32>
    %245 = vector.extract_strided_slice %181 {offsets = [12, 10], sizes = [6, 5], strides = [1, 1]} : vector<18x30xf32> to vector<6x5xf32>
    %246 = vector.extract_strided_slice %181 {offsets = [12, 20], sizes = [6, 5], strides = [1, 1]} : vector<18x30xf32> to vector<6x5xf32>
    %cst_97 = arith.constant dense<0.000000e+00> : vector<6x6xf32>
    %247 = tpu.matmul %244, %245, %cst_97 {dimension_numbers = #tpu.dot_dimension_numbers<[1], [1], [0], [0], [0, 0, 1, 0], [], []>} : vector<6x5xf32>, vector<6x5xf32>, vector<6x6xf32> -> vector<6x6xf32>
    %cst_98 = arith.constant dense<0xFF800000> : vector<6xf32>
    %248 = vector.multi_reduction <maximumf>, %247, %cst_98 [1] : vector<6x6xf32> to vector<6xf32>
    %249 = vector.shape_cast %248 : vector<6xf32> to vector<6x1xf32>
    %250 = vector.broadcast %249 : vector<6x1xf32> to vector<6x6xf32>
    %251 = arith.subf %247, %250 : vector<6x6xf32>
    %252 = math.exp %251 : vector<6x6xf32>
    %cst_99 = arith.constant dense<0.000000e+00> : vector<6xf32>
    %253 = vector.multi_reduction <add>, %252, %cst_99 [1] : vector<6x6xf32> to vector<6xf32>
    %254 = vector.shape_cast %253 : vector<6xf32> to vector<6x1xf32>
    %255 = tpu.reciprocal %254 : vector<6x1xf32> -> vector<6x1xf32>
    %256 = vector.broadcast %255 : vector<6x1xf32> to vector<6x6xf32>
    %257 = arith.mulf %252, %256 : vector<6x6xf32>
    %cst_100 = arith.constant dense<0.000000e+00> : vector<6x5xf32>
    %258 = tpu.matmul %257, %246, %cst_100 {dimension_numbers = #tpu.dot_dimension_numbers<[1], [0], [0], [1], [0, 0, 1, 1], [], []>} : vector<6x6xf32>, vector<6x5xf32>, vector<6x5xf32> -> vector<6x5xf32>
    %259 = vector.extract_strided_slice %181 {offsets = [12, 5], sizes = [6, 5], strides = [1, 1]} : vector<18x30xf32> to vector<6x5xf32>
    %260 = vector.extract_strided_slice %181 {offsets = [12, 15], sizes = [6, 5], strides = [1, 1]} : vector<18x30xf32> to vector<6x5xf32>
    %261 = vector.extract_strided_slice %181 {offsets = [12, 25], sizes = [6, 5], strides = [1, 1]} : vector<18x30xf32> to vector<6x5xf32>
    %cst_101 = arith.constant dense<0.000000e+00> : vector<6x6xf32>
    %262 = tpu.matmul %259, %260, %cst_101 {dimension_numbers = #tpu.dot_dimension_numbers<[1], [1], [0], [0], [0, 0, 1, 0], [], []>} : vector<6x5xf32>, vector<6x5xf32>, vector<6x6xf32> -> vector<6x6xf32>
    %cst_102 = arith.constant dense<0xFF800000> : vector<6xf32>
    %263 = vector.multi_reduction <maximumf>, %262, %cst_102 [1] : vector<6x6xf32> to vector<6xf32>
    %264 = vector.shape_cast %263 : vector<6xf32> to vector<6x1xf32>
    %265 = vector.broadcast %264 : vector<6x1xf32> to vector<6x6xf32>
    %266 = arith.subf %262, %265 : vector<6x6xf32>
    %267 = math.exp %266 : vector<6x6xf32>
    %cst_103 = arith.constant dense<0.000000e+00> : vector<6xf32>
    %268 = vector.multi_reduction <add>, %267, %cst_103 [1] : vector<6x6xf32> to vector<6xf32>
    %269 = vector.shape_cast %268 : vector<6xf32> to vector<6x1xf32>
    %270 = tpu.reciprocal %269 : vector<6x1xf32> -> vector<6x1xf32>
    %271 = vector.broadcast %270 : vector<6x1xf32> to vector<6x6xf32>
    %272 = arith.mulf %267, %271 : vector<6x6xf32>
    %cst_104 = arith.constant dense<0.000000e+00> : vector<6x5xf32>
    %273 = tpu.matmul %272, %261, %cst_104 {dimension_numbers = #tpu.dot_dimension_numbers<[1], [0], [0], [1], [0, 0, 1, 1], [], []>} : vector<6x6xf32>, vector<6x5xf32>, vector<6x5xf32> -> vector<6x5xf32>
    %274 = tpu.concatenate %258, %273 in 1 : vector<6x5xf32>, vector<6x5xf32> -> vector<6x10xf32>
    %275 = tpu.concatenate %212, %243, %274 in 0 : vector<6x10xf32>, vector<6x10xf32>, vector<6x10xf32> -> vector<18x10xf32>
    %c1_105 = arith.constant 1 : index
    %c0_106 = arith.constant 0 : index
    %c0_107 = arith.constant 0 : index
    %276 = vector.load %arg3[%c1_105, %c0_106, %c0_107] : memref<2x10x10xf32, #tpu.memory_space<vmem>>, vector<1x10x10xf32>
    %277 = vector.shape_cast %276 : vector<1x10x10xf32> to vector<10x10xf32>
    %cst_108 = arith.constant dense<0.000000e+00> : vector<18x10xf32>
    %278 = tpu.matmul %275, %277, %cst_108 {dimension_numbers = #tpu.dot_dimension_numbers<[1], [0], [0], [1], [0, 0, 1, 1], [], []>} : vector<18x10xf32>, vector<10x10xf32>, vector<18x10xf32> -> vector<18x10xf32>
    %c1_109 = arith.constant 1 : index
    %c0_110 = arith.constant 0 : index
    %c0_111 = arith.constant 0 : index
    %279 = vector.load %arg4[%c1_109, %c0_110, %c0_111] : memref<2x1x10xf32, #tpu.memory_space<vmem>>, vector<1x1x10xf32>
    %280 = vector.shape_cast %279 : vector<1x1x10xf32> to vector<1x10xf32>
    %281 = vector.broadcast %280 : vector<1x10xf32> to vector<18x10xf32>
    %282 = arith.addf %278, %281 : vector<18x10xf32>
    %283 = arith.addf %174, %282 : vector<18x10xf32>
    %c1_112 = arith.constant 1 : index
    %c0_113 = arith.constant 0 : index
    %c0_114 = arith.constant 0 : index
    %284 = vector.load %arg5[%c1_112, %c0_113, %c0_114] : memref<2x1x10xf32, #tpu.memory_space<vmem>>, vector<1x1x10xf32>
    %285 = vector.shape_cast %284 : vector<1x1x10xf32> to vector<1x10xf32>
    %c1_115 = arith.constant 1 : index
    %c0_116 = arith.constant 0 : index
    %c0_117 = arith.constant 0 : index
    %286 = vector.load %arg6[%c1_115, %c0_116, %c0_117] : memref<2x1x10xf32, #tpu.memory_space<vmem>>, vector<1x1x10xf32>
    %287 = vector.shape_cast %286 : vector<1x1x10xf32> to vector<1x10xf32>
    %cst_118 = arith.constant dense<0.000000e+00> : vector<18xf32>
    %288 = vector.multi_reduction <add>, %283, %cst_118 [1] : vector<18x10xf32> to vector<18xf32>
    %289 = vector.shape_cast %288 : vector<18xf32> to vector<18x1xf32>
    %cst_119 = arith.constant 1.000000e+01 : f32
    %290 = vector.broadcast %cst_119 : f32 to vector<18x1xf32>
    %291 = arith.divf %289, %290 : vector<18x1xf32>
    %292 = vector.broadcast %291 : vector<18x1xf32> to vector<18x10xf32>
    %293 = arith.subf %283, %292 : vector<18x10xf32>
    %294 = arith.mulf %293, %293 : vector<18x10xf32>
    %cst_120 = arith.constant dense<0.000000e+00> : vector<18xf32>
    %295 = vector.multi_reduction <add>, %294, %cst_120 [1] : vector<18x10xf32> to vector<18xf32>
    %296 = vector.shape_cast %295 : vector<18xf32> to vector<18x1xf32>
    %cst_121 = arith.constant 1.000000e+01 : f32
    %297 = vector.broadcast %cst_121 : f32 to vector<18x1xf32>
    %298 = arith.divf %296, %297 : vector<18x1xf32>
    %cst_122 = arith.constant 9.99999993E-9 : f32
    %299 = vector.broadcast %cst_122 : f32 to vector<18x1xf32>
    %300 = arith.addf %298, %299 : vector<18x1xf32>
    %301 = math.rsqrt %300 : vector<18x1xf32>
    %302 = vector.broadcast %301 : vector<18x1xf32> to vector<18x10xf32>
    %303 = arith.mulf %293, %302 : vector<18x10xf32>
    %304 = vector.broadcast %285 : vector<1x10xf32> to vector<18x10xf32>
    %305 = arith.mulf %303, %304 : vector<18x10xf32>
    %306 = vector.broadcast %287 : vector<1x10xf32> to vector<18x10xf32>
    %307 = arith.addf %305, %306 : vector<18x10xf32>
    %c1_123 = arith.constant 1 : index
    %c0_124 = arith.constant 0 : index
    %c0_125 = arith.constant 0 : index
    %308 = vector.load %arg9[%c1_123, %c0_124, %c0_125] : memref<2x10x2048xf32, #tpu.memory_space<vmem>>, vector<1x10x2048xf32>
    %309 = vector.shape_cast %308 : vector<1x10x2048xf32> to vector<10x2048xf32>
    %cst_126 = arith.constant dense<0.000000e+00> : vector<18x2048xf32>
    %310 = tpu.matmul %307, %309, %cst_126 {dimension_numbers = #tpu.dot_dimension_numbers<[1], [0], [0], [1], [0, 0, 1, 1], [], []>} : vector<18x10xf32>, vector<10x2048xf32>, vector<18x2048xf32> -> vector<18x2048xf32>
    %c1_127 = arith.constant 1 : index
    %c0_128 = arith.constant 0 : index
    %c0_129 = arith.constant 0 : index
    %311 = vector.load %arg10[%c1_127, %c0_128, %c0_129] : memref<2x1x2048xf32, #tpu.memory_space<vmem>>, vector<1x1x2048xf32>
    %312 = vector.shape_cast %311 : vector<1x1x2048xf32> to vector<1x2048xf32>
    %313 = vector.broadcast %312 : vector<1x2048xf32> to vector<18x2048xf32>
    %314 = arith.addf %310, %313 : vector<18x2048xf32>
    %cst_130 = arith.constant 0.000000e+00 : f32
    %315 = vector.broadcast %cst_130 : f32 to vector<18x2048xf32>
    %316 = arith.maximumf %314, %315 : vector<18x2048xf32>
    %c1_131 = arith.constant 1 : index
    %c0_132 = arith.constant 0 : index
    %c0_133 = arith.constant 0 : index
    %317 = vector.load %arg11[%c1_131, %c0_132, %c0_133] : memref<2x2048x10xf32, #tpu.memory_space<vmem>>, vector<1x2048x10xf32>
    %318 = vector.shape_cast %317 : vector<1x2048x10xf32> to vector<2048x10xf32>
    %cst_134 = arith.constant dense<0.000000e+00> : vector<18x10xf32>
    %319 = tpu.matmul %316, %318, %cst_134 {dimension_numbers = #tpu.dot_dimension_numbers<[1], [0], [0], [1], [0, 0, 1, 1], [], []>} : vector<18x2048xf32>, vector<2048x10xf32>, vector<18x10xf32> -> vector<18x10xf32>
    %c1_135 = arith.constant 1 : index
    %c0_136 = arith.constant 0 : index
    %c0_137 = arith.constant 0 : index
    %320 = vector.load %arg12[%c1_135, %c0_136, %c0_137] : memref<2x1x10xf32, #tpu.memory_space<vmem>>, vector<1x1x10xf32>
    %321 = vector.shape_cast %320 : vector<1x1x10xf32> to vector<1x10xf32>
    %322 = vector.broadcast %321 : vector<1x10xf32> to vector<18x10xf32>
    %323 = arith.addf %319, %322 : vector<18x10xf32>
    %324 = arith.addf %307, %323 : vector<18x10xf32>
    %c1_138 = arith.constant 1 : index
    %c0_139 = arith.constant 0 : index
    %c0_140 = arith.constant 0 : index
    %325 = vector.load %arg7[%c1_138, %c0_139, %c0_140] : memref<2x1x10xf32, #tpu.memory_space<vmem>>, vector<1x1x10xf32>
    %326 = vector.shape_cast %325 : vector<1x1x10xf32> to vector<1x10xf32>
    %c1_141 = arith.constant 1 : index
    %c0_142 = arith.constant 0 : index
    %c0_143 = arith.constant 0 : index
    %327 = vector.load %arg8[%c1_141, %c0_142, %c0_143] : memref<2x1x10xf32, #tpu.memory_space<vmem>>, vector<1x1x10xf32>
    %328 = vector.shape_cast %327 : vector<1x1x10xf32> to vector<1x10xf32>
    %cst_144 = arith.constant dense<0.000000e+00> : vector<18xf32>
    %329 = vector.multi_reduction <add>, %324, %cst_144 [1] : vector<18x10xf32> to vector<18xf32>
    %330 = vector.shape_cast %329 : vector<18xf32> to vector<18x1xf32>
    %cst_145 = arith.constant 1.000000e+01 : f32
    %331 = vector.broadcast %cst_145 : f32 to vector<18x1xf32>
    %332 = arith.divf %330, %331 : vector<18x1xf32>
    %333 = vector.broadcast %332 : vector<18x1xf32> to vector<18x10xf32>
    %334 = arith.subf %324, %333 : vector<18x10xf32>
    %335 = arith.mulf %334, %334 : vector<18x10xf32>
    %cst_146 = arith.constant dense<0.000000e+00> : vector<18xf32>
    %336 = vector.multi_reduction <add>, %335, %cst_146 [1] : vector<18x10xf32> to vector<18xf32>
    %337 = vector.shape_cast %336 : vector<18xf32> to vector<18x1xf32>
    %cst_147 = arith.constant 1.000000e+01 : f32
    %338 = vector.broadcast %cst_147 : f32 to vector<18x1xf32>
    %339 = arith.divf %337, %338 : vector<18x1xf32>
    %cst_148 = arith.constant 9.99999993E-9 : f32
    %340 = vector.broadcast %cst_148 : f32 to vector<18x1xf32>
    %341 = arith.addf %339, %340 : vector<18x1xf32>
    %342 = math.rsqrt %341 : vector<18x1xf32>
    %343 = vector.broadcast %342 : vector<18x1xf32> to vector<18x10xf32>
    %344 = arith.mulf %334, %343 : vector<18x10xf32>
    %345 = vector.broadcast %326 : vector<1x10xf32> to vector<18x10xf32>
    %346 = arith.mulf %344, %345 : vector<18x10xf32>
    %347 = vector.broadcast %328 : vector<1x10xf32> to vector<18x10xf32>
    %348 = arith.addf %346, %347 : vector<18x10xf32>
    %c0_149 = arith.constant 0 : index
    %c0_150 = arith.constant 0 : index
    %349 = vector.load %arg13[%c0_149, %c0_150] : memref<18x10xf32, #tpu.memory_space<vmem>>, vector<18x10xf32>
    tpu.vector_store %arg13[%c0_149, %c0_150], %348 {strides = array<i32>} : memref<18x10xf32, #tpu.memory_space<vmem>>, vector<18x10xf32>,
    return
  }
}

</mosaic_0001>

<llo_original>
// kernel: encoder_forward.1
$region0: #{encoder_forward.1}
  #allocation0 [shape = 'u32[]', space=smem, size = 0x4, offset = 0x4, fixed_abs, tag = 'smem constant byte address 0x4 - core index']
  #allocation1 [shape = 'u32[72,128]{1,0:T(1,128)}', space=vmem, size = 0x9000, scoped, tag = 'internal scratch']
  %s0 = inlined_call_operand.vmem [shape: f32[18,10], index: 0, kind: input, shape index: {}]
  %s1 = inlined_call_operand.vmem [shape: f32[2,10,30], index: 1, kind: input, shape index: {}]
  %s2 = inlined_call_operand.vmem [shape: f32[2,1,30], index: 2, kind: input, shape index: {}]
  %s3 = inlined_call_operand.vmem [shape: f32[2,10,10], index: 3, kind: input, shape index: {}]
  %s4 = inlined_call_operand.vmem [shape: f32[2,1,10], index: 4, kind: input, shape index: {}]
  %s5 = inlined_call_operand.vmem [shape: f32[2,1,10], index: 5, kind: input, shape index: {}]
  %s6 = inlined_call_operand.vmem [shape: f32[2,1,10], index: 6, kind: input, shape index: {}]
  %s7 = inlined_call_operand.vmem [shape: f32[2,1,10], index: 7, kind: input, shape index: {}]
  %s8 = inlined_call_operand.vmem [shape: f32[2,1,10], index: 8, kind: input, shape index: {}]
  %s9 = inlined_call_operand.vmem [shape: f32[2,10,2048], index: 9, kind: input, shape index: {}]
  %s10 = inlined_call_operand.vmem [shape: f32[2,1,2048], index: 10, kind: input, shape index: {}]
  %s11 = inlined_call_operand.vmem [shape: f32[2,2048,10], index: 11, kind: input, shape index: {}]
  %s12 = inlined_call_operand.vmem [shape: f32[2,1,10], index: 12, kind: input, shape index: {}]
  %s13 = inlined_call_operand.vmem [shape: f32[18,10], index: 13, kind: output, shape index: {}]
  %s14 = sld [smem:[#allocation0]]
  $region62: #{encoder_forward.1} parent=0
    _
  %s16 = ssub.s32 1, %s14
  %s17 = scalar_select 0, %s16, %s14
  // Predicated region
  $region2: #{encoder_forward.1} parent=0 // pred_check
    _
  $region3: #{encoder_forward.1} parent=0 // pred_check_branch
    %19 = sbr.rel (0) target = $region5
  $region4: #{encoder_forward.1} parent=0 // pred_region
    _
  $region5: #{encoder_forward.1} parent=0 // pred_fallthru
    _
  // Predicated region
  $region6: #{encoder_forward.1} parent=0 // pred_check
    _
  $region7: #{encoder_forward.1} parent=0 // pred_check_branch
    %21 = sbr.rel (0) target = $region9
  $region8: #{encoder_forward.1} parent=0 // pred_region
    _
  $region9: #{encoder_forward.1} parent=0 // pred_fallthru
    _
  // Predicated region
  $region10: #{encoder_forward.1} parent=0 // pred_check
    _
  $region11: #{encoder_forward.1} parent=0 // pred_check_branch
    %23 = sbr.rel (0) target = $region13
  $region12: #{encoder_forward.1} parent=0 // pred_region
    _
  $region13: #{encoder_forward.1} parent=0 // pred_fallthru
    _
  // Predicated region
  $region14: #{encoder_forward.1} parent=0 // pred_check
    _
  $region15: #{encoder_forward.1} parent=0 // pred_check_branch
    %25 = sbr.rel (0) target = $region17
  $region16: #{encoder_forward.1} parent=0 // pred_region
    _
  $region17: #{encoder_forward.1} parent=0 // pred_fallthru
    _
  // Predicated region
  $region18: #{encoder_forward.1} parent=0 // pred_check
    _
  $region19: #{encoder_forward.1} parent=0 // pred_check_branch
    %27 = sbr.rel (0) target = $region21
  $region20: #{encoder_forward.1} parent=0 // pred_region
    _
  $region21: #{encoder_forward.1} parent=0 // pred_fallthru
    _
  // Predicated region
  $region22: #{encoder_forward.1} parent=0 // pred_check
    _
  $region23: #{encoder_forward.1} parent=0 // pred_check_branch
    %29 = sbr.rel (0) target = $region25
  $region24: #{encoder_forward.1} parent=0 // pred_region
    _
  $region25: #{encoder_forward.1} parent=0 // pred_fallthru
    _
  // Predicated region
  $region26: #{encoder_forward.1} parent=0 // pred_check
    _
  $region27: #{encoder_forward.1} parent=0 // pred_check_branch
    %31 = sbr.rel (0) target = $region29
  $region28: #{encoder_forward.1} parent=0 // pred_region
    _
  $region29: #{encoder_forward.1} parent=0 // pred_fallthru
    _
  // Predicated region
  $region30: #{encoder_forward.1} parent=0 // pred_check
    _
  $region31: #{encoder_forward.1} parent=0 // pred_check_branch
    %33 = sbr.rel (0) target = $region33
  $region32: #{encoder_forward.1} parent=0 // pred_region
    _
  $region33: #{encoder_forward.1} parent=0 // pred_fallthru
    _
  // Predicated region
  $region34: #{encoder_forward.1} parent=0 // pred_check
    _
  $region35: #{encoder_forward.1} parent=0 // pred_check_branch
    %35 = sbr.rel (0) target = $region37
  $region36: #{encoder_forward.1} parent=0 // pred_region
    _
  $region37: #{encoder_forward.1} parent=0 // pred_fallthru
    _
  // Predicated region
  $region38: #{encoder_forward.1} parent=0 // pred_check
    _
  $region39: #{encoder_forward.1} parent=0 // pred_check_branch
    %37 = sbr.rel (0) target = $region41
  $region40: #{encoder_forward.1} parent=0 // pred_region
    _
  $region41: #{encoder_forward.1} parent=0 // pred_fallthru
    _
  // Predicated region
  $region42: #{encoder_forward.1} parent=0 // pred_check
    _
  $region43: #{encoder_forward.1} parent=0 // pred_check_branch
    %39 = sbr.rel (0) target = $region45
  $region44: #{encoder_forward.1} parent=0 // pred_region
    _
  $region45: #{encoder_forward.1} parent=0 // pred_fallthru
    _
  // Predicated region
  $region46: #{encoder_forward.1} parent=0 // pred_check
    _
  $region47: #{encoder_forward.1} parent=0 // pred_check_branch
    %41 = sbr.rel (0) target = $region49
  $region48: #{encoder_forward.1} parent=0 // pred_region
    _
  $region49: #{encoder_forward.1} parent=0 // pred_fallthru
    _
  // Predicated region
  $region50: #{encoder_forward.1} parent=0 // pred_check
    _
  $region51: #{encoder_forward.1} parent=0 // pred_check_branch
    %43 = sbr.rel (0) target = $region53
  $region52: #{encoder_forward.1} parent=0 // pred_region
    _
  $region53: #{encoder_forward.1} parent=0 // pred_fallthru
    _
  %v44 = vld [vmem:[%s0] sm:$0xff]
  %v45 = vld [vmem:[%s0 + $0x8] sm:$0xff]
  %v46 = vld [vmem:[%s0 + $0x10] sm:$0x3]
  %v47 = vld [vmem:[%s1] sm:$0xff]
  %v48 = vld [vmem:[%s1 + $0x8] sm:$0x3]
  %v49 = vld [vmem:[%s2] sm:$0x1]
  %v51 = vperm.slane %v49, 0
  %vm53 = vcmask 80896
  %v55 = vsel %vm53, %v44, 0
  %v58 = vsel %vm53, %v45, 0
  %v61 = vsel %vm53, %v46, 0
  %vm63 = vcmask 1041408
  %v65 = vsel %vm63, %v48, 0
  %67 = vmatpush.msra.mxu0 0.0
  %68 = vmatpush.msra.mxu0 0.0
  %69 = vmatpush.msra.mxu0 0.0
  %70 = vmatpush.msra.mxu0 0.0
  %71 = vmatpush.msra.mxu0 0.0
  %72 = vmatpush.msra.mxu0 0.0
  %73 = vmatpush.msra.mxu0 0.0
  %74 = vmatpush.msra.mxu0 0.0
  %75 = vmatpush.msra.mxu0 0.0
  %76 = vmatpush.msra.mxu0 0.0
  %77 = vmatpush.msra.mxu0 0.0
  %78 = vmatpush.msra.mxu0 0.0
  %79 = vmatpush.msra.mxu0 0.0
  %80 = vmatpush.msra.mxu0 0.0
  %81 = vmatpush.msra.mxu0 %v65
  %82 = vmatpush.msra.mxu0 %v47
  %83 = vmatmul.f32.gmra.mxu0 %v55
  %v84 = vpop.f32.mrf.mxu0
  %v85 = vadd.f32 %v51, %v84
  %86 = vmatmul.f32.gmra.mxu0 %v58
  %v87 = vpop.f32.mrf.mxu0
  %v88 = vadd.f32 %v51, %v87
  %89 = vmatmul.f32.gmra.mxu0 %v61
  %v90 = vpop.f32.mrf.mxu0
  %v91 = vadd.f32 %v51, %v90
  %92 = vdwg.mxu0
  %94 = vrot.lane.b32.xlu0 %v85, 118
  %v95 = vpop.permute.xlu0 %94
  %vm96 = vcmask 39936
  %v97 = vsel %vm96, %v85, 0
  %v99 = vsel %vm96, %v95, 0
  %101 = vmatpush.xpose.msra.mxu0 0.0
  %102 = vmatpush.xpose.msra.mxu0 0.0
  %103 = vmatpush.xpose.msra.mxu0 0.0
  %104 = vmatpush.xpose.msra.mxu0 0.0
  %105 = vmatpush.xpose.msra.mxu0 0.0
  %106 = vmatpush.xpose.msra.mxu0 0.0
  %107 = vmatpush.xpose.msra.mxu0 0.0
  %108 = vmatpush.xpose.msra.mxu0 0.0
  %109 = vmatpush.xpose.msra.mxu0 0.0
  %110 = vmatpush.xpose.msra.mxu0 0.0
  %111 = vmatpush.xpose.msra.mxu0 0.0
  %112 = vmatpush.xpose.msra.mxu0 0.0
  %113 = vmatpush.xpose.msra.mxu0 0.0
  %114 = vmatpush.xpose.msra.mxu0 0.0
  %115 = vmatpush.xpose.msra.mxu0 0.0
  %116 = vmatpush.xpose.msra.mxu0 %v99
  %117 = vmatmul.f32.gmra.mxu0 %v97
  %v118 = vpop.f32.mrf.mxu0
  %v119 = vadd.f32 0.0, %v118
  %120 = vdwg.mxu0
  %vm121 = vcmask 46080
  %v122 = vsel %vm121, %v119, -inf
  %123 = vmax.xlane.f32.xlu0 %v122
  %v124 = vpop.xlane.xlu0 %123
  %v125 = vsub.f32 %v119, %v124
  %v126 = vmul.f32 %v125, 1.442695
  %v127 = vpow.pop %v126
  %v128 = vsel %vm121, %v127, 0.0
  %129 = vadd.xlane.f32.xlu0 %v128
  %v130 = vpop.xlane.xlu0 %129
  %v131 = vrcp.pop %v130
  %v132 = vmul.f32 %v130, %v131
  %v133 = vsub.f32 1.0, %v132
  %v134 = vmul.f32 %v131, %v133
  %v135 = vadd.f32 %v131, %v134
  %vm136 = vweird.f32 %v130
  %vm137 = vweird.f32 %v131
  %vm138 = vmor %vm136, %vm137
  %v139 = vsel %vm138, %v131, %v135
  %v140 = vand.u32 2147483647, %v130
  %vm141 = vcmp.eq.f32.partialorder %v140, 8.507059e+37
  %v142 = vand.u32 %v130, 2147483648
  %v143 = vor.u32 1.1754944e-38, %v142
  %v144 = vsel %vm141, %v143, %v139
  %v145 = vmul.f32 %v127, %v144
  %146 = vrot.lane.b32.xlu0 %v85, 108
  %v147 = vpop.permute.xlu0 %146
  %vm148 = vcmask 48128
  %v150 = vsel %vm148, %v145, 0
  %vm152 = vcmask 1045504
  %v153 = vsel %vm152, %v147, 0
  %155 = vmatpush.msra.mxu0 0.0
  %156 = vmatpush.msra.mxu0 0.0
  %157 = vmatpush.msra.mxu0 0.0
  %158 = vmatpush.msra.mxu0 0.0
  %159 = vmatpush.msra.mxu0 0.0
  %160 = vmatpush.msra.mxu0 0.0
  %161 = vmatpush.msra.mxu0 0.0
  %162 = vmatpush.msra.mxu0 0.0
  %163 = vmatpush.msra.mxu0 0.0
  %164 = vmatpush.msra.mxu0 0.0
  %165 = vmatpush.msra.mxu0 0.0
  %166 = vmatpush.msra.mxu0 0.0
  %167 = vmatpush.msra.mxu0 0.0
  %168 = vmatpush.msra.mxu0 0.0
  %169 = vmatpush.msra.mxu0 0.0
  %170 = vmatpush.msra.mxu0 %v153
  %171 = vmatmul.f32.gmra.mxu0 %v150
  %v172 = vpop.f32.mrf.mxu0
  %v173 = vadd.f32 0.0, %v172
  %174 = vdwg.mxu0
  %175 = vrot.lane.b32.xlu0 %v85, 123
  %v176 = vpop.permute.xlu0 %175
  %177 = vrot.lane.b32.xlu0 %v85, 113
  %v178 = vpop.permute.xlu0 %177
  %v179 = vsel %vm96, %v176, 0
  %v181 = vsel %vm96, %v178, 0
  %183 = vmatpush.xpose.msra.mxu0 0.0
  %184 = vmatpush.xpose.msra.mxu0 0.0
  %185 = vmatpush.xpose.msra.mxu0 0.0
  %186 = vmatpush.xpose.msra.mxu0 0.0
  %187 = vmatpush.xpose.msra.mxu0 0.0
  %188 = vmatpush.xpose.msra.mxu0 0.0
  %189 = vmatpush.xpose.msra.mxu0 0.0
  %190 = vmatpush.xpose.msra.mxu0 0.0
  %191 = vmatpush.xpose.msra.mxu0 0.0
  %192 = vmatpush.xpose.msra.mxu0 0.0
  %193 = vmatpush.xpose.msra.mxu0 0.0
  %194 = vmatpush.xpose.msra.mxu0 0.0
  %195 = vmatpush.xpose.msra.mxu0 0.0
  %196 = vmatpush.xpose.msra.mxu0 0.0
  %197 = vmatpush.xpose.msra.mxu0 0.0
  %198 = vmatpush.xpose.msra.mxu0 %v181
  %199 = vmatmul.f32.gmra.mxu0 %v179
  %v200 = vpop.f32.mrf.mxu0
  %v201 = vadd.f32 0.0, %v200
  %202 = vdwg.mxu0
  %v203 = vsel %vm121, %v201, -inf
  %204 = vmax.xlane.f32.xlu0 %v203
  %v205 = vpop.xlane.xlu0 %204
  %v206 = vsub.f32 %v201, %v205
  %v207 = vmul.f32 %v206, 1.442695
  %v208 = vpow.pop %v207
  %v209 = vsel %vm121, %v208, 0.0
  %210 = vadd.xlane.f32.xlu0 %v209
  %v211 = vpop.xlane.xlu0 %210
  %v212 = vrcp.pop %v211
  %v213 = vmul.f32 %v211, %v212
  %v214 = vsub.f32 1.0, %v213
  %v215 = vmul.f32 %v212, %v214
  %v216 = vadd.f32 %v212, %v215
  %vm217 = vweird.f32 %v211
  %vm218 = vweird.f32 %v212
  %vm219 = vmor %vm217, %vm218
  %v220 = vsel %vm219, %v212, %v216
  %v221 = vand.u32 2147483647, %v211
  %vm222 = vcmp.eq.f32.partialorder %v221, 8.507059e+37
  %v223 = vand.u32 %v211, 2147483648
  %v224 = vor.u32 1.1754944e-38, %v223
  %v225 = vsel %vm222, %v224, %v220
  %v226 = vmul.f32 %v208, %v225
  %227 = vrot.lane.b32.xlu0 %v85, 103
  %v228 = vpop.permute.xlu0 %227
  %v230 = vsel %vm148, %v226, 0
  %v232 = vsel %vm152, %v228, 0
  %234 = vmatpush.msra.mxu0 0.0
  %235 = vmatpush.msra.mxu0 0.0
  %236 = vmatpush.msra.mxu0 0.0
  %237 = vmatpush.msra.mxu0 0.0
  %238 = vmatpush.msra.mxu0 0.0
  %239 = vmatpush.msra.mxu0 0.0
  %240 = vmatpush.msra.mxu0 0.0
  %241 = vmatpush.msra.mxu0 0.0
  %242 = vmatpush.msra.mxu0 0.0
  %243 = vmatpush.msra.mxu0 0.0
  %244 = vmatpush.msra.mxu0 0.0
  %245 = vmatpush.msra.mxu0 0.0
  %246 = vmatpush.msra.mxu0 0.0
  %247 = vmatpush.msra.mxu0 0.0
  %248 = vmatpush.msra.mxu0 0.0
  %249 = vmatpush.msra.mxu0 %v232
  %250 = vmatmul.f32.gmra.mxu0 %v230
  %v251 = vpop.f32.mrf.mxu0
  %v252 = vadd.f32 0.0, %v251
  %253 = vdwg.mxu0
  %255 = vrot.lane.b32.xlu0 %v252, 5
  %v256 = vpop.permute.xlu0 %255
  %v258 = vsel %vm96, %v173, %v256
  %v260 = vrot.slane %v85, 6
  %v261 = vrot.slane %v88, 6
  %v262 = vsel %vm63, %v260, %v261
  %263 = vrot.lane.b32.xlu0 %v262, 118
  %v264 = vpop.permute.xlu0 %263
  %v265 = vsel %vm96, %v262, 0
  %v267 = vsel %vm96, %v264, 0
  %269 = vmatpush.xpose.msra.mxu0 0.0
  %270 = vmatpush.xpose.msra.mxu0 0.0
  %271 = vmatpush.xpose.msra.mxu0 0.0
  %272 = vmatpush.xpose.msra.mxu0 0.0
  %273 = vmatpush.xpose.msra.mxu0 0.0
  %274 = vmatpush.xpose.msra.mxu0 0.0
  %275 = vmatpush.xpose.msra.mxu0 0.0
  %276 = vmatpush.xpose.msra.mxu0 0.0
  %277 = vmatpush.xpose.msra.mxu0 0.0
  %278 = vmatpush.xpose.msra.mxu0 0.0
  %279 = vmatpush.xpose.msra.mxu0 0.0
  %280 = vmatpush.xpose.msra.mxu0 0.0
  %281 = vmatpush.xpose.msra.mxu0 0.0
  %282 = vmatpush.xpose.msra.mxu0 0.0
  %283 = vmatpush.xpose.msra.mxu0 0.0
  %284 = vmatpush.xpose.msra.mxu0 %v267
  %285 = vmatmul.f32.gmra.mxu0 %v265
  %v286 = vpop.f32.mrf.mxu0
  %v287 = vadd.f32 0.0, %v286
  %288 = vdwg.mxu0
  %v289 = vsel %vm121, %v287, -inf
  %290 = vmax.xlane.f32.xlu0 %v289
  %v291 = vpop.xlane.xlu0 %290
  %v292 = vsub.f32 %v287, %v291
  %v293 = vmul.f32 %v292, 1.442695
  %v294 = vpow.pop %v293
  %v295 = vsel %vm121, %v294, 0.0
  %296 = vadd.xlane.f32.xlu0 %v295
  %v297 = vpop.xlane.xlu0 %296
  %v298 = vrcp.pop %v297
  %v299 = vmul.f32 %v297, %v298
  %v300 = vsub.f32 1.0, %v299
  %v301 = vmul.f32 %v298, %v300
  %v302 = vadd.f32 %v298, %v301
  %vm303 = vweird.f32 %v297
  %vm304 = vweird.f32 %v298
  %vm305 = vmor %vm303, %vm304
  %v306 = vsel %vm305, %v298, %v302
  %v307 = vand.u32 2147483647, %v297
  %vm308 = vcmp.eq.f32.partialorder %v307, 8.507059e+37
  %v309 = vand.u32 %v297, 2147483648
  %v310 = vor.u32 1.1754944e-38, %v309
  %v311 = vsel %vm308, %v310, %v306
  %v312 = vmul.f32 %v294, %v311
  %313 = vrot.lane.b32.xlu0 %v262, 108
  %v314 = vpop.permute.xlu0 %313
  %v316 = vsel %vm148, %v312, 0
  %v318 = vsel %vm152, %v314, 0
  %320 = vmatpush.msra.mxu0 0.0
  %321 = vmatpush.msra.mxu0 0.0
  %322 = vmatpush.msra.mxu0 0.0
  %323 = vmatpush.msra.mxu0 0.0
  %324 = vmatpush.msra.mxu0 0.0
  %325 = vmatpush.msra.mxu0 0.0
  %326 = vmatpush.msra.mxu0 0.0
  %327 = vmatpush.msra.mxu0 0.0
  %328 = vmatpush.msra.mxu0 0.0
  %329 = vmatpush.msra.mxu0 0.0
  %330 = vmatpush.msra.mxu0 0.0
  %331 = vmatpush.msra.mxu0 0.0
  %332 = vmatpush.msra.mxu0 0.0
  %333 = vmatpush.msra.mxu0 0.0
  %334 = vmatpush.msra.mxu0 0.0
  %335 = vmatpush.msra.mxu0 %v318
  %336 = vmatmul.f32.gmra.mxu0 %v316
  %v337 = vpop.f32.mrf.mxu0
  %v338 = vadd.f32 0.0, %v337
  %339 = vdwg.mxu0
  %340 = vrot.lane.b32.xlu0 %v262, 123
  %v341 = vpop.permute.xlu0 %340
  %342 = vrot.lane.b32.xlu0 %v262, 113
  %v343 = vpop.permute.xlu0 %342
  %v344 = vsel %vm96, %v341, 0
  %v346 = vsel %vm96, %v343, 0
  %348 = vmatpush.xpose.msra.mxu0 0.0
  %349 = vmatpush.xpose.msra.mxu0 0.0
  %350 = vmatpush.xpose.msra.mxu0 0.0
  %351 = vmatpush.xpose.msra.mxu0 0.0
  %352 = vmatpush.xpose.msra.mxu0 0.0
  %353 = vmatpush.xpose.msra.mxu0 0.0
  %354 = vmatpush.xpose.msra.mxu0 0.0
  %355 = vmatpush.xpose.msra.mxu0 0.0
  %356 = vmatpush.xpose.msra.mxu0 0.0
  %357 = vmatpush.xpose.msra.mxu0 0.0
  %358 = vmatpush.xpose.msra.mxu0 0.0
  %359 = vmatpush.xpose.msra.mxu0 0.0
  %360 = vmatpush.xpose.msra.mxu0 0.0
  %361 = vmatpush.xpose.msra.mxu0 0.0
  %362 = vmatpush.xpose.msra.mxu0 0.0
  %363 = vmatpush.xpose.msra.mxu0 %v346
  %364 = vmatmul.f32.gmra.mxu0 %v344
  %v365 = vpop.f32.mrf.mxu0
  %v366 = vadd.f32 0.0, %v365
  %367 = vdwg.mxu0
  %v368 = vsel %vm121, %v366, -inf
  %369 = vmax.xlane.f32.xlu0 %v368
  %v370 = vpop.xlane.xlu0 %369
  %v371 = vsub.f32 %v366, %v370
  %v372 = vmul.f32 %v371, 1.442695
  %v373 = vpow.pop %v372
  %v374 = vsel %vm121, %v373, 0.0
  %375 = vadd.xlane.f32.xlu0 %v374
  %v376 = vpop.xlane.xlu0 %375
  %v377 = vrcp.pop %v376
  %v378 = vmul.f32 %v376, %v377
  %v379 = vsub.f32 1.0, %v378
  %v380 = vmul.f32 %v377, %v379
  %v381 = vadd.f32 %v377, %v380
  %vm382 = vweird.f32 %v376
  %vm383 = vweird.f32 %v377
  %vm384 = vmor %vm382, %vm383
  %v385 = vsel %vm384, %v377, %v381
  %v386 = vand.u32 2147483647, %v376
  %vm387 = vcmp.eq.f32.partialorder %v386, 8.507059e+37
  %v388 = vand.u32 %v376, 2147483648
  %v389 = vor.u32 1.1754944e-38, %v388
  %v390 = vsel %vm387, %v389, %v385
  %v391 = vmul.f32 %v373, %v390
  %392 = vrot.lane.b32.xlu0 %v262, 103
  %v393 = vpop.permute.xlu0 %392
  %v395 = vsel %vm148, %v391, 0
  %v397 = vsel %vm152, %v393, 0
  %399 = vmatpush.msra.mxu0 0.0
  %400 = vmatpush.msra.mxu0 0.0
  %401 = vmatpush.msra.mxu0 0.0
  %402 = vmatpush.msra.mxu0 0.0
  %403 = vmatpush.msra.mxu0 0.0
  %404 = vmatpush.msra.mxu0 0.0
  %405 = vmatpush.msra.mxu0 0.0
  %406 = vmatpush.msra.mxu0 0.0
  %407 = vmatpush.msra.mxu0 0.0
  %408 = vmatpush.msra.mxu0 0.0
  %409 = vmatpush.msra.mxu0 0.0
  %410 = vmatpush.msra.mxu0 0.0
  %411 = vmatpush.msra.mxu0 0.0
  %412 = vmatpush.msra.mxu0 0.0
  %413 = vmatpush.msra.mxu0 0.0
  %414 = vmatpush.msra.mxu0 %v397
  %415 = vmatmul.f32.gmra.mxu0 %v395
  %v416 = vpop.f32.mrf.mxu0
  %v417 = vadd.f32 0.0, %v416
  %418 = vdwg.mxu0
  %420 = vrot.lane.b32.xlu0 %v417, 5
  %v421 = vpop.permute.xlu0 %420
  %v423 = vsel %vm96, %v338, %v421
  %vm425 = vcmask 1043456
  %v426 = vrot.slane %v88, 4
  %v427 = vrot.slane %v91, 4
  %v428 = vsel %vm425, %v426, %v427
  %429 = vrot.lane.b32.xlu0 %v428, 118
  %v430 = vpop.permute.xlu0 %429
  %v431 = vsel %vm96, %v428, 0
  %v433 = vsel %vm96, %v430, 0
  %435 = vmatpush.xpose.msra.mxu0 0.0
  %436 = vmatpush.xpose.msra.mxu0 0.0
  %437 = vmatpush.xpose.msra.mxu0 0.0
  %438 = vmatpush.xpose.msra.mxu0 0.0
  %439 = vmatpush.xpose.msra.mxu0 0.0
  %440 = vmatpush.xpose.msra.mxu0 0.0
  %441 = vmatpush.xpose.msra.mxu0 0.0
  %442 = vmatpush.xpose.msra.mxu0 0.0
  %443 = vmatpush.xpose.msra.mxu0 0.0
  %444 = vmatpush.xpose.msra.mxu0 0.0
  %445 = vmatpush.xpose.msra.mxu0 0.0
  %446 = vmatpush.xpose.msra.mxu0 0.0
  %447 = vmatpush.xpose.msra.mxu0 0.0
  %448 = vmatpush.xpose.msra.mxu0 0.0
  %449 = vmatpush.xpose.msra.mxu0 0.0
  %450 = vmatpush.xpose.msra.mxu0 %v433
  %451 = vmatmul.f32.gmra.mxu0 %v431
  %v452 = vpop.f32.mrf.mxu0
  %v453 = vadd.f32 0.0, %v452
  %454 = vdwg.mxu0
  %v455 = vsel %vm121, %v453, -inf
  %456 = vmax.xlane.f32.xlu0 %v455
  %v457 = vpop.xlane.xlu0 %456
  %v458 = vsub.f32 %v453, %v457
  %v459 = vmul.f32 %v458, 1.442695
  %v460 = vpow.pop %v459
  %v461 = vsel %vm121, %v460, 0.0
  %462 = vadd.xlane.f32.xlu0 %v461
  %v463 = vpop.xlane.xlu0 %462
  %v464 = vrcp.pop %v463
  %v465 = vmul.f32 %v463, %v464
  %v466 = vsub.f32 1.0, %v465
  %v467 = vmul.f32 %v464, %v466
  %v468 = vadd.f32 %v464, %v467
  %vm469 = vweird.f32 %v463
  %vm470 = vweird.f32 %v464
  %vm471 = vmor %vm469, %vm470
  %v472 = vsel %vm471, %v464, %v468
  %v473 = vand.u32 2147483647, %v463
  %vm474 = vcmp.eq.f32.partialorder %v473, 8.507059e+37
  %v475 = vand.u32 %v463, 2147483648
  %v476 = vor.u32 1.1754944e-38, %v475
  %v477 = vsel %vm474, %v476, %v472
  %v478 = vmul.f32 %v460, %v477
  %479 = vrot.lane.b32.xlu0 %v428, 108
  %v480 = vpop.permute.xlu0 %479
  %v482 = vsel %vm148, %v478, 0
  %v484 = vsel %vm152, %v480, 0
  %486 = vmatpush.msra.mxu0 0.0
  %487 = vmatpush.msra.mxu0 0.0
  %488 = vmatpush.msra.mxu0 0.0
  %489 = vmatpush.msra.mxu0 0.0
  %490 = vmatpush.msra.mxu0 0.0
  %491 = vmatpush.msra.mxu0 0.0
  %492 = vmatpush.msra.mxu0 0.0
  %493 = vmatpush.msra.mxu0 0.0
  %494 = vmatpush.msra.mxu0 0.0
  %495 = vmatpush.msra.mxu0 0.0
  %496 = vmatpush.msra.mxu0 0.0
  %497 = vmatpush.msra.mxu0 0.0
  %498 = vmatpush.msra.mxu0 0.0
  %499 = vmatpush.msra.mxu0 0.0
  %500 = vmatpush.msra.mxu0 0.0
  %501 = vmatpush.msra.mxu0 %v484
  %502 = vmatmul.f32.gmra.mxu0 %v482
  %v503 = vpop.f32.mrf.mxu0
  %v504 = vadd.f32 0.0, %v503
  %505 = vdwg.mxu0
  %506 = vrot.lane.b32.xlu0 %v428, 123
  %v507 = vpop.permute.xlu0 %506
  %508 = vrot.lane.b32.xlu0 %v428, 113
  %v509 = vpop.permute.xlu0 %508
  %v510 = vsel %vm96, %v507, 0
  %v512 = vsel %vm96, %v509, 0
  %514 = vmatpush.xpose.msra.mxu0 0.0
  %515 = vmatpush.xpose.msra.mxu0 0.0
  %516 = vmatpush.xpose.msra.mxu0 0.0
  %517 = vmatpush.xpose.msra.mxu0 0.0
  %518 = vmatpush.xpose.msra.mxu0 0.0
  %519 = vmatpush.xpose.msra.mxu0 0.0
  %520 = vmatpush.xpose.msra.mxu0 0.0
  %521 = vmatpush.xpose.msra.mxu0 0.0
  %522 = vmatpush.xpose.msra.mxu0 0.0
  %523 = vmatpush.xpose.msra.mxu0 0.0
  %524 = vmatpush.xpose.msra.mxu0 0.0
  %525 = vmatpush.xpose.msra.mxu0 0.0
  %526 = vmatpush.xpose.msra.mxu0 0.0
  %527 = vmatpush.xpose.msra.mxu0 0.0
  %528 = vmatpush.xpose.msra.mxu0 0.0
  %529 = vmatpush.xpose.msra.mxu0 %v512
  %530 = vmatmul.f32.gmra.mxu0 %v510
  %v531 = vpop.f32.mrf.mxu0
  %v532 = vadd.f32 0.0, %v531
  %533 = vdwg.mxu0
  %v534 = vsel %vm121, %v532, -inf
  %535 = vmax.xlane.f32.xlu0 %v534
  %v536 = vpop.xlane.xlu0 %535
  %v537 = vsub.f32 %v532, %v536
  %v538 = vmul.f32 %v537, 1.442695
  %v539 = vpow.pop %v538
  %v540 = vsel %vm121, %v539, 0.0
  %541 = vadd.xlane.f32.xlu0 %v540
  %v542 = vpop.xlane.xlu0 %541
  %v543 = vrcp.pop %v542
  %v544 = vmul.f32 %v542, %v543
  %v545 = vsub.f32 1.0, %v544
  %v546 = vmul.f32 %v543, %v545
  %v547 = vadd.f32 %v543, %v546
  %vm548 = vweird.f32 %v542
  %vm549 = vweird.f32 %v543
  %vm550 = vmor %vm548, %vm549
  %v551 = vsel %vm550, %v543, %v547
  %v552 = vand.u32 2147483647, %v542
  %vm553 = vcmp.eq.f32.partialorder %v552, 8.507059e+37
  %v554 = vand.u32 %v542, 2147483648
  %v555 = vor.u32 1.1754944e-38, %v554
  %v556 = vsel %vm553, %v555, %v551
  %v557 = vmul.f32 %v539, %v556
  %558 = vrot.lane.b32.xlu0 %v428, 103
  %v559 = vpop.permute.xlu0 %558
  %v561 = vsel %vm148, %v557, 0
  %v563 = vsel %vm152, %v559, 0
  %565 = vmatpush.msra.mxu0 0.0
  %566 = vmatpush.msra.mxu0 0.0
  %567 = vmatpush.msra.mxu0 0.0
  %568 = vmatpush.msra.mxu0 0.0
  %569 = vmatpush.msra.mxu0 0.0
  %570 = vmatpush.msra.mxu0 0.0
  %571 = vmatpush.msra.mxu0 0.0
  %572 = vmatpush.msra.mxu0 0.0
  %573 = vmatpush.msra.mxu0 0.0
  %574 = vmatpush.msra.mxu0 0.0
  %575 = vmatpush.msra.mxu0 0.0
  %576 = vmatpush.msra.mxu0 0.0
  %577 = vmatpush.msra.mxu0 0.0
  %578 = vmatpush.msra.mxu0 0.0
  %579 = vmatpush.msra.mxu0 0.0
  %580 = vmatpush.msra.mxu0 %v563
  %581 = vmatmul.f32.gmra.mxu0 %v561
  %v582 = vpop.f32.mrf.mxu0
  %v583 = vadd.f32 0.0, %v582
  %584 = vdwg.mxu0
  %586 = vrot.lane.b32.xlu0 %v583, 5
  %v587 = vpop.permute.xlu0 %586
  %v589 = vsel %vm96, %v504, %v587
  %v591 = vrot.slane %v423, 2
  %v594 = vrot.slane %v589, 4
  %v596 = vsel %vm152, %v258, %v591
  %v597 = vsel %vm425, %v591, %v594
  %v598 = vld [vmem:[%s3] sm:$0xff]
  %v599 = vld [vmem:[%s3 + $0x8] sm:$0x3]
  %v600 = vld [vmem:[%s4] sm:$0x1]
  %v602 = vperm.slane %v600, 0
  %v605 = vsel %vm53, %v596, 0
  %v608 = vsel %vm53, %v597, 0
  %v610 = vsel %vm53, %v594, 0
  %v613 = vsel %vm63, %v599, 0
  %615 = vmatpush.msra.mxu0 0.0
  %616 = vmatpush.msra.mxu0 0.0
  %617 = vmatpush.msra.mxu0 0.0
  %618 = vmatpush.msra.mxu0 0.0
  %619 = vmatpush.msra.mxu0 0.0
  %620 = vmatpush.msra.mxu0 0.0
  %621 = vmatpush.msra.mxu0 0.0
  %622 = vmatpush.msra.mxu0 0.0
  %623 = vmatpush.msra.mxu0 0.0
  %624 = vmatpush.msra.mxu0 0.0
  %625 = vmatpush.msra.mxu0 0.0
  %626 = vmatpush.msra.mxu0 0.0
  %627 = vmatpush.msra.mxu0 0.0
  %628 = vmatpush.msra.mxu0 0.0
  %629 = vmatpush.msra.mxu0 %v613
  %630 = vmatpush.msra.mxu0 %v598
  %631 = vmatmul.f32.gmra.mxu0 %v605
  %v632 = vpop.f32.mrf.mxu0
  %v633 = vadd.f32 %v602, %v632
  %634 = vmatmul.f32.gmra.mxu0 %v608
  %v635 = vpop.f32.mrf.mxu0
  %v636 = vadd.f32 %v602, %v635
  %637 = vmatmul.f32.gmra.mxu0 %v610
  %v638 = vpop.f32.mrf.mxu0
  %v639 = vadd.f32 %v602, %v638
  %640 = vdwg.mxu0
  %v641 = vadd.f32 %v44, %v633
  %v642 = vadd.f32 %v45, %v636
  %v643 = vadd.f32 %v46, %v639
  %v644 = vld [vmem:[%s5] sm:$0x1]
  %v645 = vld [vmem:[%s6] sm:$0x1]
  %v646 = vsel %vm53, %v641, 0.0
  %647 = vadd.xlane.f32.xlu0 %v646
  %v648 = vpop.xlane.xlu0 %647
  %v649 = vsel %vm53, %v642, 0.0
  %650 = vadd.xlane.f32.xlu0 %v649
  %v651 = vpop.xlane.xlu0 %650
  %vm652 = vcmask 74752
  %v653 = vsel %vm652, %v643, 0.0
  %654 = vadd.xlane.f32.xlu0 %v653
  %v655 = vpop.xlane.xlu0 %654
  %v656 = vrcp.pop 10.0
  %v657 = vmul.f32 10.0, %v656
  %v658 = vsub.f32 1.0, %v657
  %v659 = vmul.f32 %v656, %v658
  %v660 = vadd.f32 %v656, %v659
  %vm661 = vweird.f32 %v656
  %v662 = vsel %vm661, %v656, %v660
  %v663 = vmul.f32 %v648, %v662
  %v664 = vmul.f32 %v651, %v662
  %v665 = vmul.f32 %v655, %v662
  %v666 = vsub.f32 %v641, %v663
  %v667 = vsub.f32 %v642, %v664
  %v668 = vsub.f32 %v643, %v665
  %v669 = vmul.f32 %v666, %v666
  %v670 = vmul.f32 %v667, %v667
  %v671 = vmul.f32 %v668, %v668
  %v672 = vsel %vm53, %v669, 0.0
  %673 = vadd.xlane.f32.xlu0 %v672
  %v674 = vpop.xlane.xlu0 %673
  %v675 = vsel %vm53, %v670, 0.0
  %676 = vadd.xlane.f32.xlu0 %v675
  %v677 = vpop.xlane.xlu0 %676
  %v678 = vsel %vm652, %v671, 0.0
  %679 = vadd.xlane.f32.xlu0 %v678
  %v680 = vpop.xlane.xlu0 %679
  %v681 = vmul.f32 %v674, %v662
  %v682 = vmul.f32 %v677, %v662
  %v683 = vmul.f32 %v680, %v662
  %v684 = vadd.f32 %v681, 1e-08
  %v685 = vadd.f32 %v682, 1e-08
  %v686 = vadd.f32 %v683, 1e-08
  %v687 = vrsqrt.pop %v684
  %v688 = vmul.f32 %v687, %v684
  %v689 = vmul.f32 %v688, %v687
  %v690 = vmul.f32 0.5, %v689
  %v691 = vsub.f32 1.5, %v690
  %v692 = vmul.f32 %v687, %v691
  %vm693 = vweird.f32 %v684
  %vm694 = vweird.f32 %v687
  %vm695 = vmor %vm693, %vm694
  %v696 = vsel %vm695, %v687, %v692
  %v697 = vrsqrt.pop %v685
  %v698 = vmul.f32 %v697, %v685
  %v699 = vmul.f32 %v698, %v697
  %v700 = vmul.f32 0.5, %v699
  %v701 = vsub.f32 1.5, %v700
  %v702 = vmul.f32 %v697, %v701
  %vm703 = vweird.f32 %v685
  %vm704 = vweird.f32 %v697
  %vm705 = vmor %vm703, %vm704
  %v706 = vsel %vm705, %v697, %v702
  %v707 = vrsqrt.pop %v686
  %v708 = vmul.f32 %v707, %v686
  %v709 = vmul.f32 %v708, %v707
  %v710 = vmul.f32 0.5, %v709
  %v711 = vsub.f32 1.5, %v710
  %v712 = vmul.f32 %v707, %v711
  %vm713 = vweird.f32 %v686
  %vm714 = vweird.f32 %v707
  %vm715 = vmor %vm713, %vm714
  %v716 = vsel %vm715, %v707, %v712
  %v717 = vmul.f32 %v666, %v696
  %v718 = vmul.f32 %v667, %v706
  %v719 = vmul.f32 %v668, %v716
  %v721 = vperm.slane %v644, 0
  %v723 = vmul.f32 %v717, %v721
  %v724 = vmul.f32 %v718, %v721
  %v725 = vmul.f32 %v719, %v721
  %v727 = vperm.slane %v645, 0
  %v729 = vadd.f32 %v723, %v727
  %v730 = vadd.f32 %v724, %v727
  %v731 = vadd.f32 %v725, %v727
  %v732 = vld [vmem:[%s9] sm:$0xff]
  %v733 = vld [vmem:[%s9 + $0x8] sm:$0xff]
  %v734 = vld [vmem:[%s9 + $0x10] sm:$0xff]
  %v735 = vld [vmem:[%s9 + $0x18] sm:$0xff]
  %v736 = vld [vmem:[%s9 + $0x20] sm:$0xff]
  %v737 = vld [vmem:[%s9 + $0x28] sm:$0xff]
  %v738 = vld [vmem:[%s9 + $0x30] sm:$0xff]
  %v739 = vld [vmem:[%s9 + $0x38] sm:$0xff]
  %v740 = vld [vmem:[%s9 + $0x40] sm:$0xff]
  %v741 = vld [vmem:[%s9 + $0x48] sm:$0xff]
  %v742 = vld [vmem:[%s9 + $0x50] sm:$0xff]
  %v743 = vld [vmem:[%s9 + $0x58] sm:$0xff]
  %v744 = vld [vmem:[%s9 + $0x60] sm:$0xff]
  %v745 = vld [vmem:[%s9 + $0x68] sm:$0xff]
  %v746 = vld [vmem:[%s9 + $0x70] sm:$0xff]
  %v747 = vld [vmem:[%s9 + $0x78] sm:$0xff]
  %v748 = vld [vmem:[%s9 + $0x80] sm:$0x3]
  %v749 = vld [vmem:[%s9 + $0x88] sm:$0x3]
  %v750 = vld [vmem:[%s9 + $0x90] sm:$0x3]
  %v751 = vld [vmem:[%s9 + $0x98] sm:$0x3]
  %v752 = vld [vmem:[%s9 + $0xa0] sm:$0x3]
  %v753 = vld [vmem:[%s9 + $0xa8] sm:$0x3]
  %v754 = vld [vmem:[%s9 + $0xb0] sm:$0x3]
  %v755 = vld [vmem:[%s9 + $0xb8] sm:$0x3]
  %v756 = vld [vmem:[%s9 + $0xc0] sm:$0x3]
  %v757 = vld [vmem:[%s9 + $0xc8] sm:$0x3]
  %v758 = vld [vmem:[%s9 + $0xd0] sm:$0x3]
  %v759 = vld [vmem:[%s9 + $0xd8] sm:$0x3]
  %v760 = vld [vmem:[%s9 + $0xe0] sm:$0x3]
  %v761 = vld [vmem:[%s9 + $0xe8] sm:$0x3]
  %v762 = vld [vmem:[%s9 + $0xf0] sm:$0x3]
  %v763 = vld [vmem:[%s9 + $0xf8] sm:$0x3]
  %v764 = vld [vmem:[%s10] sm:$0xff]
  %v765 = vld [vmem:[%s10 + $0x8] sm:$0xff]
  %v768 = vperm.slane %v764, 0
  %v769 = vperm.slane %v764, 1
  %v770 = vperm.slane %v764, 2
  %v771 = vperm.slane %v764, 3
  %v772 = vperm.slane %v764, 4
  %v773 = vperm.slane %v764, 5
  %v774 = vperm.slane %v764, 6
  %v775 = vperm.slane %v764, 7
  %v776 = vperm.slane %v765, 0
  %v777 = vperm.slane %v765, 1
  %v778 = vperm.slane %v765, 2
  %v779 = vperm.slane %v765, 3
  %v780 = vperm.slane %v765, 4
  %v781 = vperm.slane %v765, 5
  %v782 = vperm.slane %v765, 6
  %v783 = vperm.slane %v765, 7
  %v801 = vsel %vm53, %v729, 0
  %v804 = vsel %vm53, %v730, 0
  %v807 = vsel %vm53, %v731, 0
  %v810 = vsel %vm63, %v748, 0
  %v813 = vsel %vm63, %v749, 0
  %v816 = vsel %vm63, %v750, 0
  %v819 = vsel %vm63, %v751, 0
  %v822 = vsel %vm63, %v752, 0
  %v825 = vsel %vm63, %v753, 0
  %v828 = vsel %vm63, %v754, 0
  %v831 = vsel %vm63, %v755, 0
  %v834 = vsel %vm63, %v756, 0
  %v837 = vsel %vm63, %v757, 0
  %v840 = vsel %vm63, %v758, 0
  %v843 = vsel %vm63, %v759, 0
  %v846 = vsel %vm63, %v760, 0
  %v849 = vsel %vm63, %v761, 0
  %v852 = vsel %vm63, %v762, 0
  %v855 = vsel %vm63, %v763, 0
  %857 = vmatpush.msra.mxu0 0.0
  %858 = vmatpush.msra.mxu0 0.0
  %859 = vmatpush.msra.mxu0 0.0
  %860 = vmatpush.msra.mxu0 0.0
  %861 = vmatpush.msra.mxu0 0.0
  %862 = vmatpush.msra.mxu0 0.0
  %863 = vmatpush.msra.mxu0 0.0
  %864 = vmatpush.msra.mxu0 0.0
  %865 = vmatpush.msra.mxu0 0.0
  %866 = vmatpush.msra.mxu0 0.0
  %867 = vmatpush.msra.mxu0 0.0
  %868 = vmatpush.msra.mxu0 0.0
  %869 = vmatpush.msra.mxu0 0.0
  %870 = vmatpush.msra.mxu0 0.0
  %871 = vmatpush.msra.mxu0 %v810
  %872 = vmatpush.msra.mxu0 %v732
  %873 = vmatmul.f32.gmra.mxu0 %v801
  %v874 = vpop.f32.mrf.mxu0
  %v875 = vadd.f32 %v768, %v874
  %876 = vmatmul.f32.gmra.mxu0 %v804
  %v877 = vpop.f32.mrf.mxu0
  %v878 = vadd.f32 %v768, %v877
  %879 = vmatmul.f32.gmra.mxu0 %v807
  %v880 = vpop.f32.mrf.mxu0
  %v881 = vadd.f32 %v768, %v880
  %882 = vdwg.mxu0
  %883 = vmatpush.msra.mxu0 0.0
  %884 = vmatpush.msra.mxu0 0.0
  %885 = vmatpush.msra.mxu0 0.0
  %886 = vmatpush.msra.mxu0 0.0
  %887 = vmatpush.msra.mxu0 0.0
  %888 = vmatpush.msra.mxu0 0.0
  %889 = vmatpush.msra.mxu0 0.0
  %890 = vmatpush.msra.mxu0 0.0
  %891 = vmatpush.msra.mxu0 0.0
  %892 = vmatpush.msra.mxu0 0.0
  %893 = vmatpush.msra.mxu0 0.0
  %894 = vmatpush.msra.mxu0 0.0
  %895 = vmatpush.msra.mxu0 0.0
  %896 = vmatpush.msra.mxu0 0.0
  %897 = vmatpush.msra.mxu0 %v813
  %898 = vmatpush.msra.mxu0 %v733
  %899 = vmatmul.f32.gmra.mxu0 %v801
  %v900 = vpop.f32.mrf.mxu0
  %v901 = vadd.f32 %v769, %v900
  %902 = vmatmul.f32.gmra.mxu0 %v804
  %v903 = vpop.f32.mrf.mxu0
  %v904 = vadd.f32 %v769, %v903
  %905 = vmatmul.f32.gmra.mxu0 %v807
  %v906 = vpop.f32.mrf.mxu0
  %v907 = vadd.f32 %v769, %v906
  %908 = vdwg.mxu0
  %909 = vmatpush.msra.mxu0 0.0
  %910 = vmatpush.msra.mxu0 0.0
  %911 = vmatpush.msra.mxu0 0.0
  %912 = vmatpush.msra.mxu0 0.0
  %913 = vmatpush.msra.mxu0 0.0
  %914 = vmatpush.msra.mxu0 0.0
  %915 = vmatpush.msra.mxu0 0.0
  %916 = vmatpush.msra.mxu0 0.0
  %917 = vmatpush.msra.mxu0 0.0
  %918 = vmatpush.msra.mxu0 0.0
  %919 = vmatpush.msra.mxu0 0.0
  %920 = vmatpush.msra.mxu0 0.0
  %921 = vmatpush.msra.mxu0 0.0
  %922 = vmatpush.msra.mxu0 0.0
  %923 = vmatpush.msra.mxu0 %v816
  %924 = vmatpush.msra.mxu0 %v734
  %925 = vmatmul.f32.gmra.mxu0 %v801
  %v926 = vpop.f32.mrf.mxu0
  %v927 = vadd.f32 %v770, %v926
  %928 = vmatmul.f32.gmra.mxu0 %v804
  %v929 = vpop.f32.mrf.mxu0
  %v930 = vadd.f32 %v770, %v929
  %931 = vmatmul.f32.gmra.mxu0 %v807
  %v932 = vpop.f32.mrf.mxu0
  %v933 = vadd.f32 %v770, %v932
  %934 = vdwg.mxu0
  %935 = vmatpush.msra.mxu0 0.0
  %936 = vmatpush.msra.mxu0 0.0
  %937 = vmatpush.msra.mxu0 0.0
  %938 = vmatpush.msra.mxu0 0.0
  %939 = vmatpush.msra.mxu0 0.0
  %940 = vmatpush.msra.mxu0 0.0
  %941 = vmatpush.msra.mxu0 0.0
  %942 = vmatpush.msra.mxu0 0.0
  %943 = vmatpush.msra.mxu0 0.0
  %944 = vmatpush.msra.mxu0 0.0
  %945 = vmatpush.msra.mxu0 0.0
  %946 = vmatpush.msra.mxu0 0.0
  %947 = vmatpush.msra.mxu0 0.0
  %948 = vmatpush.msra.mxu0 0.0
  %949 = vmatpush.msra.mxu0 %v819
  %950 = vmatpush.msra.mxu0 %v735
  %951 = vmatmul.f32.gmra.mxu0 %v801
  %v952 = vpop.f32.mrf.mxu0
  %v953 = vadd.f32 %v771, %v952
  %954 = vmatmul.f32.gmra.mxu0 %v804
  %v955 = vpop.f32.mrf.mxu0
  %v956 = vadd.f32 %v771, %v955
  %957 = vmatmul.f32.gmra.mxu0 %v807
  %v958 = vpop.f32.mrf.mxu0
  %v959 = vadd.f32 %v771, %v958
  %960 = vdwg.mxu0
  %961 = vmatpush.msra.mxu0 0.0
  %962 = vmatpush.msra.mxu0 0.0
  %963 = vmatpush.msra.mxu0 0.0
  %964 = vmatpush.msra.mxu0 0.0
  %965 = vmatpush.msra.mxu0 0.0
  %966 = vmatpush.msra.mxu0 0.0
  %967 = vmatpush.msra.mxu0 0.0
  %968 = vmatpush.msra.mxu0 0.0
  %969 = vmatpush.msra.mxu0 0.0
  %970 = vmatpush.msra.mxu0 0.0
  %971 = vmatpush.msra.mxu0 0.0
  %972 = vmatpush.msra.mxu0 0.0
  %973 = vmatpush.msra.mxu0 0.0
  %974 = vmatpush.msra.mxu0 0.0
  %975 = vmatpush.msra.mxu0 %v822
  %976 = vmatpush.msra.mxu0 %v736
  %977 = vmatmul.f32.gmra.mxu0 %v801
  %v978 = vpop.f32.mrf.mxu0
  %v979 = vadd.f32 %v772, %v978
  %980 = vmatmul.f32.gmra.mxu0 %v804
  %v981 = vpop.f32.mrf.mxu0
  %v982 = vadd.f32 %v772, %v981
  %983 = vmatmul.f32.gmra.mxu0 %v807
  %v984 = vpop.f32.mrf.mxu0
  %v985 = vadd.f32 %v772, %v984
  %986 = vdwg.mxu0
  %987 = vmatpush.msra.mxu0 0.0
  %988 = vmatpush.msra.mxu0 0.0
  %989 = vmatpush.msra.mxu0 0.0
  %990 = vmatpush.msra.mxu0 0.0
  %991 = vmatpush.msra.mxu0 0.0
  %992 = vmatpush.msra.mxu0 0.0
  %993 = vmatpush.msra.mxu0 0.0
  %994 = vmatpush.msra.mxu0 0.0
  %995 = vmatpush.msra.mxu0 0.0
  %996 = vmatpush.msra.mxu0 0.0
  %997 = vmatpush.msra.mxu0 0.0
  %998 = vmatpush.msra.mxu0 0.0
  %999 = vmatpush.msra.mxu0 0.0
  %1000 = vmatpush.msra.mxu0 0.0
  %1001 = vmatpush.msra.mxu0 %v825
  %1002 = vmatpush.msra.mxu0 %v737
  %1003 = vmatmul.f32.gmra.mxu0 %v801
  %v1004 = vpop.f32.mrf.mxu0
  %v1005 = vadd.f32 %v773, %v1004
  %1006 = vmatmul.f32.gmra.mxu0 %v804
  %v1007 = vpop.f32.mrf.mxu0
  %v1008 = vadd.f32 %v773, %v1007
  %1009 = vmatmul.f32.gmra.mxu0 %v807
  %v1010 = vpop.f32.mrf.mxu0
  %v1011 = vadd.f32 %v773, %v1010
  %1012 = vdwg.mxu0
  %1013 = vmatpush.msra.mxu0 0.0
  %1014 = vmatpush.msra.mxu0 0.0
  %1015 = vmatpush.msra.mxu0 0.0
  %1016 = vmatpush.msra.mxu0 0.0
  %1017 = vmatpush.msra.mxu0 0.0
  %1018 = vmatpush.msra.mxu0 0.0
  %1019 = vmatpush.msra.mxu0 0.0
  %1020 = vmatpush.msra.mxu0 0.0
  %1021 = vmatpush.msra.mxu0 0.0
  %1022 = vmatpush.msra.mxu0 0.0
  %1023 = vmatpush.msra.mxu0 0.0
  %1024 = vmatpush.msra.mxu0 0.0
  %1025 = vmatpush.msra.mxu0 0.0
  %1026 = vmatpush.msra.mxu0 0.0
  %1027 = vmatpush.msra.mxu0 %v828
  %1028 = vmatpush.msra.mxu0 %v738
  %1029 = vmatmul.f32.gmra.mxu0 %v801
  %v1030 = vpop.f32.mrf.mxu0
  %v1031 = vadd.f32 %v774, %v1030
  %1032 = vmatmul.f32.gmra.mxu0 %v804
  %v1033 = vpop.f32.mrf.mxu0
  %v1034 = vadd.f32 %v774, %v1033
  %1035 = vmatmul.f32.gmra.mxu0 %v807
  %v1036 = vpop.f32.mrf.mxu0
  %v1037 = vadd.f32 %v774, %v1036
  %1038 = vdwg.mxu0
  %1039 = vmatpush.msra.mxu0 0.0
  %1040 = vmatpush.msra.mxu0 0.0
  %1041 = vmatpush.msra.mxu0 0.0
  %1042 = vmatpush.msra.mxu0 0.0
  %1043 = vmatpush.msra.mxu0 0.0
  %1044 = vmatpush.msra.mxu0 0.0
  %1045 = vmatpush.msra.mxu0 0.0
  %1046 = vmatpush.msra.mxu0 0.0
  %1047 = vmatpush.msra.mxu0 0.0
  %1048 = vmatpush.msra.mxu0 0.0
  %1049 = vmatpush.msra.mxu0 0.0
  %1050 = vmatpush.msra.mxu0 0.0
  %1051 = vmatpush.msra.mxu0 0.0
  %1052 = vmatpush.msra.mxu0 0.0
  %1053 = vmatpush.msra.mxu0 %v831
  %1054 = vmatpush.msra.mxu0 %v739
  %1055 = vmatmul.f32.gmra.mxu0 %v801
  %v1056 = vpop.f32.mrf.mxu0
  %v1057 = vadd.f32 %v775, %v1056
  %1058 = vmatmul.f32.gmra.mxu0 %v804
  %v1059 = vpop.f32.mrf.mxu0
  %v1060 = vadd.f32 %v775, %v1059
  %1061 = vmatmul.f32.gmra.mxu0 %v807
  %v1062 = vpop.f32.mrf.mxu0
  %v1063 = vadd.f32 %v775, %v1062
  %1064 = vdwg.mxu0
  %1065 = vmatpush.msra.mxu0 0.0
  %1066 = vmatpush.msra.mxu0 0.0
  %1067 = vmatpush.msra.mxu0 0.0
  %1068 = vmatpush.msra.mxu0 0.0
  %1069 = vmatpush.msra.mxu0 0.0
  %1070 = vmatpush.msra.mxu0 0.0
  %1071 = vmatpush.msra.mxu0 0.0
  %1072 = vmatpush.msra.mxu0 0.0
  %1073 = vmatpush.msra.mxu0 0.0
  %1074 = vmatpush.msra.mxu0 0.0
  %1075 = vmatpush.msra.mxu0 0.0
  %1076 = vmatpush.msra.mxu0 0.0
  %1077 = vmatpush.msra.mxu0 0.0
  %1078 = vmatpush.msra.mxu0 0.0
  %1079 = vmatpush.msra.mxu0 %v834
  %1080 = vmatpush.msra.mxu0 %v740
  %1081 = vmatmul.f32.gmra.mxu0 %v801
  %v1082 = vpop.f32.mrf.mxu0
  %v1083 = vadd.f32 %v776, %v1082
  %1084 = vmatmul.f32.gmra.mxu0 %v804
  %v1085 = vpop.f32.mrf.mxu0
  %v1086 = vadd.f32 %v776, %v1085
  %1087 = vmatmul.f32.gmra.mxu0 %v807
  %v1088 = vpop.f32.mrf.mxu0
  %v1089 = vadd.f32 %v776, %v1088
  %1090 = vdwg.mxu0
  %1091 = vmatpush.msra.mxu0 0.0
  %1092 = vmatpush.msra.mxu0 0.0
  %1093 = vmatpush.msra.mxu0 0.0
  %1094 = vmatpush.msra.mxu0 0.0
  %1095 = vmatpush.msra.mxu0 0.0
  %1096 = vmatpush.msra.mxu0 0.0
  %1097 = vmatpush.msra.mxu0 0.0
  %1098 = vmatpush.msra.mxu0 0.0
  %1099 = vmatpush.msra.mxu0 0.0
  %1100 = vmatpush.msra.mxu0 0.0
  %1101 = vmatpush.msra.mxu0 0.0
  %1102 = vmatpush.msra.mxu0 0.0
  %1103 = vmatpush.msra.mxu0 0.0
  %1104 = vmatpush.msra.mxu0 0.0
  %1105 = vmatpush.msra.mxu0 %v837
  %1106 = vmatpush.msra.mxu0 %v741
  %1107 = vmatmul.f32.gmra.mxu0 %v801
  %v1108 = vpop.f32.mrf.mxu0
  %v1109 = vadd.f32 %v777, %v1108
  %1110 = vmatmul.f32.gmra.mxu0 %v804
  %v1111 = vpop.f32.mrf.mxu0
  %v1112 = vadd.f32 %v777, %v1111
  %1113 = vmatmul.f32.gmra.mxu0 %v807
  %v1114 = vpop.f32.mrf.mxu0
  %v1115 = vadd.f32 %v777, %v1114
  %1116 = vdwg.mxu0
  %1117 = vmatpush.msra.mxu0 0.0
  %1118 = vmatpush.msra.mxu0 0.0
  %1119 = vmatpush.msra.mxu0 0.0
  %1120 = vmatpush.msra.mxu0 0.0
  %1121 = vmatpush.msra.mxu0 0.0
  %1122 = vmatpush.msra.mxu0 0.0
  %1123 = vmatpush.msra.mxu0 0.0
  %1124 = vmatpush.msra.mxu0 0.0
  %1125 = vmatpush.msra.mxu0 0.0
  %1126 = vmatpush.msra.mxu0 0.0
  %1127 = vmatpush.msra.mxu0 0.0
  %1128 = vmatpush.msra.mxu0 0.0
  %1129 = vmatpush.msra.mxu0 0.0
  %1130 = vmatpush.msra.mxu0 0.0
  %1131 = vmatpush.msra.mxu0 %v840
  %1132 = vmatpush.msra.mxu0 %v742
  %1133 = vmatmul.f32.gmra.mxu0 %v801
  %v1134 = vpop.f32.mrf.mxu0
  %v1135 = vadd.f32 %v778, %v1134
  %1136 = vmatmul.f32.gmra.mxu0 %v804
  %v1137 = vpop.f32.mrf.mxu0
  %v1138 = vadd.f32 %v778, %v1137
  %1139 = vmatmul.f32.gmra.mxu0 %v807
  %v1140 = vpop.f32.mrf.mxu0
  %v1141 = vadd.f32 %v778, %v1140
  %1142 = vdwg.mxu0
  %1143 = vmatpush.msra.mxu0 0.0
  %1144 = vmatpush.msra.mxu0 0.0
  %1145 = vmatpush.msra.mxu0 0.0
  %1146 = vmatpush.msra.mxu0 0.0
  %1147 = vmatpush.msra.mxu0 0.0
  %1148 = vmatpush.msra.mxu0 0.0
  %1149 = vmatpush.msra.mxu0 0.0
  %1150 = vmatpush.msra.mxu0 0.0
  %1151 = vmatpush.msra.mxu0 0.0
  %1152 = vmatpush.msra.mxu0 0.0
  %1153 = vmatpush.msra.mxu0 0.0
  %1154 = vmatpush.msra.mxu0 0.0
  %1155 = vmatpush.msra.mxu0 0.0
  %1156 = vmatpush.msra.mxu0 0.0
  %1157 = vmatpush.msra.mxu0 %v843
  %1158 = vmatpush.msra.mxu0 %v743
  %1159 = vmatmul.f32.gmra.mxu0 %v801
  %v1160 = vpop.f32.mrf.mxu0
  %v1161 = vadd.f32 %v779, %v1160
  %1162 = vmatmul.f32.gmra.mxu0 %v804
  %v1163 = vpop.f32.mrf.mxu0
  %v1164 = vadd.f32 %v779, %v1163
  %1165 = vmatmul.f32.gmra.mxu0 %v807
  %v1166 = vpop.f32.mrf.mxu0
  %v1167 = vadd.f32 %v779, %v1166
  %1168 = vdwg.mxu0
  %1169 = vmatpush.msra.mxu0 0.0
  %1170 = vmatpush.msra.mxu0 0.0
  %1171 = vmatpush.msra.mxu0 0.0
  %1172 = vmatpush.msra.mxu0 0.0
  %1173 = vmatpush.msra.mxu0 0.0
  %1174 = vmatpush.msra.mxu0 0.0
  %1175 = vmatpush.msra.mxu0 0.0
  %1176 = vmatpush.msra.mxu0 0.0
  %1177 = vmatpush.msra.mxu0 0.0
  %1178 = vmatpush.msra.mxu0 0.0
  %1179 = vmatpush.msra.mxu0 0.0
  %1180 = vmatpush.msra.mxu0 0.0
  %1181 = vmatpush.msra.mxu0 0.0
  %1182 = vmatpush.msra.mxu0 0.0
  %1183 = vmatpush.msra.mxu0 %v846
  %1184 = vmatpush.msra.mxu0 %v744
  %1185 = vmatmul.f32.gmra.mxu0 %v801
  %v1186 = vpop.f32.mrf.mxu0
  %v1187 = vadd.f32 %v780, %v1186
  %1188 = vmatmul.f32.gmra.mxu0 %v804
  %v1189 = vpop.f32.mrf.mxu0
  %v1190 = vadd.f32 %v780, %v1189
  %1191 = vmatmul.f32.gmra.mxu0 %v807
  %v1192 = vpop.f32.mrf.mxu0
  %v1193 = vadd.f32 %v780, %v1192
  %1194 = vdwg.mxu0
  %1195 = vmatpush.msra.mxu0 0.0
  %1196 = vmatpush.msra.mxu0 0.0
  %1197 = vmatpush.msra.mxu0 0.0
  %1198 = vmatpush.msra.mxu0 0.0
  %1199 = vmatpush.msra.mxu0 0.0
  %1200 = vmatpush.msra.mxu0 0.0
  %1201 = vmatpush.msra.mxu0 0.0
  %1202 = vmatpush.msra.mxu0 0.0
  %1203 = vmatpush.msra.mxu0 0.0
  %1204 = vmatpush.msra.mxu0 0.0
  %1205 = vmatpush.msra.mxu0 0.0
  %1206 = vmatpush.msra.mxu0 0.0
  %1207 = vmatpush.msra.mxu0 0.0
  %1208 = vmatpush.msra.mxu0 0.0
  %1209 = vmatpush.msra.mxu0 %v849
  %1210 = vmatpush.msra.mxu0 %v745
  %1211 = vmatmul.f32.gmra.mxu0 %v801
  %v1212 = vpop.f32.mrf.mxu0
  %v1213 = vadd.f32 %v781, %v1212
  %1214 = vmatmul.f32.gmra.mxu0 %v804
  %v1215 = vpop.f32.mrf.mxu0
  %v1216 = vadd.f32 %v781, %v1215
  %1217 = vmatmul.f32.gmra.mxu0 %v807
  %v1218 = vpop.f32.mrf.mxu0
  %v1219 = vadd.f32 %v781, %v1218
  %1220 = vdwg.mxu0
  %1221 = vmatpush.msra.mxu0 0.0
  %1222 = vmatpush.msra.mxu0 0.0
  %1223 = vmatpush.msra.mxu0 0.0
  %1224 = vmatpush.msra.mxu0 0.0
  %1225 = vmatpush.msra.mxu0 0.0
  %1226 = vmatpush.msra.mxu0 0.0
  %1227 = vmatpush.msra.mxu0 0.0
  %1228 = vmatpush.msra.mxu0 0.0
  %1229 = vmatpush.msra.mxu0 0.0
  %1230 = vmatpush.msra.mxu0 0.0
  %1231 = vmatpush.msra.mxu0 0.0
  %1232 = vmatpush.msra.mxu0 0.0
  %1233 = vmatpush.msra.mxu0 0.0
  %1234 = vmatpush.msra.mxu0 0.0
  %1235 = vmatpush.msra.mxu0 %v852
  %1236 = vmatpush.msra.mxu0 %v746
  %1237 = vmatmul.f32.gmra.mxu0 %v801
  %v1238 = vpop.f32.mrf.mxu0
  %v1239 = vadd.f32 %v782, %v1238
  %1240 = vmatmul.f32.gmra.mxu0 %v804
  %v1241 = vpop.f32.mrf.mxu0
  %v1242 = vadd.f32 %v782, %v1241
  %1243 = vmatmul.f32.gmra.mxu0 %v807
  %v1244 = vpop.f32.mrf.mxu0
  %v1245 = vadd.f32 %v782, %v1244
  %1246 = vdwg.mxu0
  %1247 = vmatpush.msra.mxu0 0.0
  %1248 = vmatpush.msra.mxu0 0.0
  %1249 = vmatpush.msra.mxu0 0.0
  %1250 = vmatpush.msra.mxu0 0.0
  %1251 = vmatpush.msra.mxu0 0.0
  %1252 = vmatpush.msra.mxu0 0.0
  %1253 = vmatpush.msra.mxu0 0.0
  %1254 = vmatpush.msra.mxu0 0.0
  %1255 = vmatpush.msra.mxu0 0.0
  %1256 = vmatpush.msra.mxu0 0.0
  %1257 = vmatpush.msra.mxu0 0.0
  %1258 = vmatpush.msra.mxu0 0.0
  %1259 = vmatpush.msra.mxu0 0.0
  %1260 = vmatpush.msra.mxu0 0.0
  %1261 = vmatpush.msra.mxu0 %v855
  %1262 = vmatpush.msra.mxu0 %v747
  %1263 = vmatmul.f32.gmra.mxu0 %v801
  %v1264 = vpop.f32.mrf.mxu0
  %v1265 = vadd.f32 %v783, %v1264
  %1266 = vmatmul.f32.gmra.mxu0 %v804
  %v1267 = vpop.f32.mrf.mxu0
  %v1268 = vadd.f32 %v783, %v1267
  %1269 = vmatmul.f32.gmra.mxu0 %v807
  %v1270 = vpop.f32.mrf.mxu0
  %v1271 = vadd.f32 %v783, %v1270
  %1272 = vdwg.mxu0
  %v1273 = vmax.f32 %v875, 0.0
  %v1274 = vmax.f32 %v901, 0.0
  %v1275 = vmax.f32 %v927, 0.0
  %v1276 = vmax.f32 %v953, 0.0
  %v1277 = vmax.f32 %v979, 0.0
  %v1278 = vmax.f32 %v1005, 0.0
  %v1279 = vmax.f32 %v1031, 0.0
  %v1280 = vmax.f32 %v1057, 0.0
  %v1281 = vmax.f32 %v1083, 0.0
  %v1282 = vmax.f32 %v1109, 0.0
  %v1283 = vmax.f32 %v1135, 0.0
  %v1284 = vmax.f32 %v1161, 0.0
  %v1285 = vmax.f32 %v1187, 0.0
  %v1286 = vmax.f32 %v1213, 0.0
  %v1287 = vmax.f32 %v1239, 0.0
  %v1288 = vmax.f32 %v1265, 0.0
  %v1289 = vmax.f32 %v878, 0.0
  %v1290 = vmax.f32 %v904, 0.0
  %v1291 = vmax.f32 %v930, 0.0
  %v1292 = vmax.f32 %v956, 0.0
  %v1293 = vmax.f32 %v982, 0.0
  %v1294 = vmax.f32 %v1008, 0.0
  %v1295 = vmax.f32 %v1034, 0.0
  %v1296 = vmax.f32 %v1060, 0.0
  %v1297 = vmax.f32 %v1086, 0.0
  %v1298 = vmax.f32 %v1112, 0.0
  %v1299 = vmax.f32 %v1138, 0.0
  %v1300 = vmax.f32 %v1164, 0.0
  %v1301 = vmax.f32 %v1190, 0.0
  %v1302 = vmax.f32 %v1216, 0.0
  %v1303 = vmax.f32 %v1242, 0.0
  %v1304 = vmax.f32 %v1268, 0.0
  %v1305 = vmax.f32 %v881, 0.0
  %v1306 = vmax.f32 %v907, 0.0
  %v1307 = vmax.f32 %v933, 0.0
  %v1308 = vmax.f32 %v959, 0.0
  %v1309 = vmax.f32 %v985, 0.0
  %v1310 = vmax.f32 %v1011, 0.0
  %v1311 = vmax.f32 %v1037, 0.0
  %v1312 = vmax.f32 %v1063, 0.0
  %v1313 = vmax.f32 %v1089, 0.0
  %v1314 = vmax.f32 %v1115, 0.0
  %v1315 = vmax.f32 %v1141, 0.0
  %v1316 = vmax.f32 %v1167, 0.0
  %v1317 = vmax.f32 %v1193, 0.0
  %v1318 = vmax.f32 %v1219, 0.0
  %v1319 = vmax.f32 %v1245, 0.0
  %v1320 = vmax.f32 %v1271, 0.0
  %v1321 = vld [vmem:[%s11] sm:$0xff]
  %v1322 = vld [vmem:[%s11 + $0x8] sm:$0xff]
  %v1323 = vld [vmem:[%s11 + $0x10] sm:$0xff]
  %v1324 = vld [vmem:[%s11 + $0x18] sm:$0xff]
  %v1325 = vld [vmem:[%s11 + $0x20] sm:$0xff]
  %v1326 = vld [vmem:[%s11 + $0x28] sm:$0xff]
  %v1327 = vld [vmem:[%s11 + $0x30] sm:$0xff]
  %v1328 = vld [vmem:[%s11 + $0x38] sm:$0xff]
  %v1329 = vld [vmem:[%s11 + $0x40] sm:$0xff]
  %v1330 = vld [vmem:[%s11 + $0x48] sm:$0xff]
  %v1331 = vld [vmem:[%s11 + $0x50] sm:$0xff]
  %v1332 = vld [vmem:[%s11 + $0x58] sm:$0xff]
  %v1333 = vld [vmem:[%s11 + $0x60] sm:$0xff]
  %v1334 = vld [vmem:[%s11 + $0x68] sm:$0xff]
  %v1335 = vld [vmem:[%s11 + $0x70] sm:$0xff]
  %v1336 = vld [vmem:[%s11 + $0x78] sm:$0xff]
  %v1337 = vld [vmem:[%s11 + $0x80] sm:$0xff]
  %v1338 = vld [vmem:[%s11 + $0x88] sm:$0xff]
  %v1339 = vld [vmem:[%s11 + $0x90] sm:$0xff]
  %v1340 = vld [vmem:[%s11 + $0x98] sm:$0xff]
  %v1341 = vld [vmem:[%s11 + $0xa0] sm:$0xff]
  %v1342 = vld [vmem:[%s11 + $0xa8] sm:$0xff]
  %v1343 = vld [vmem:[%s11 + $0xb0] sm:$0xff]
  %v1344 = vld [vmem:[%s11 + $0xb8] sm:$0xff]
  %v1345 = vld [vmem:[%s11 + $0xc0] sm:$0xff]
  %v1346 = vld [vmem:[%s11 + $0xc8] sm:$0xff]
  %v1347 = vld [vmem:[%s11 + $0xd0] sm:$0xff]
  %v1348 = vld [vmem:[%s11 + $0xd8] sm:$0xff]
  %v1349 = vld [vmem:[%s11 + $0xe0] sm:$0xff]
  %v1350 = vld [vmem:[%s11 + $0xe8] sm:$0xff]
  %v1351 = vld [vmem:[%s11 + $0xf0] sm:$0xff]
  %v1352 = vld [vmem:[%s11 + $0xf8] sm:$0xff]
  %v1353 = vld [vmem:[%s11 + $0x100] sm:$0xff]
  %v1354 = vld [vmem:[%s11 + $0x108] sm:$0xff]
  %v1355 = vld [vmem:[%s11 + $0x110] sm:$0xff]
  %v1356 = vld [vmem:[%s11 + $0x118] sm:$0xff]
  %v1357 = vld [vmem:[%s11 + $0x120] sm:$0xff]
  %v1358 = vld [vmem:[%s11 + $0x128] sm:$0xff]
  %v1359 = vld [vmem:[%s11 + $0x130] sm:$0xff]
  %v1360 = vld [vmem:[%s11 + $0x138] sm:$0xff]
  %v1361 = vld [vmem:[%s11 + $0x140] sm:$0xff]
  %v1362 = vld [vmem:[%s11 + $0x148] sm:$0xff]
  %v1363 = vld [vmem:[%s11 + $0x150] sm:$0xff]
  %v1364 = vld [vmem:[%s11 + $0x158] sm:$0xff]
  %v1365 = vld [vmem:[%s11 + $0x160] sm:$0xff]
  %v1366 = vld [vmem:[%s11 + $0x168] sm:$0xff]
  %v1367 = vld [vmem:[%s11 + $0x170] sm:$0xff]
  %v1368 = vld [vmem:[%s11 + $0x178] sm:$0xff]
  %v1369 = vld [vmem:[%s11 + $0x180] sm:$0xff]
  %v1370 = vld [vmem:[%s11 + $0x188] sm:$0xff]
  %v1371 = vld [vmem:[%s11 + $0x190] sm:$0xff]
  %v1372 = vld [vmem:[%s11 + $0x198] sm:$0xff]
  %v1373 = vld [vmem:[%s11 + $0x1a0] sm:$0xff]
  %v1374 = vld [vmem:[%s11 + $0x1a8] sm:$0xff]
  %v1375 = vld [vmem:[%s11 + $0x1b0] sm:$0xff]
  %v1376 = vld [vmem:[%s11 + $0x1b8] sm:$0xff]
  %v1377 = vld [vmem:[%s11 + $0x1c0] sm:$0xff]
  %v1378 = vld [vmem:[%s11 + $0x1c8] sm:$0xff]
  %v1379 = vld [vmem:[%s11 + $0x1d0] sm:$0xff]
  %v1380 = vld [vmem:[%s11 + $0x1d8] sm:$0xff]
  %v1381 = vld [vmem:[%s11 + $0x1e0] sm:$0xff]
  %v1382 = vld [vmem:[%s11 + $0x1e8] sm:$0xff]
  %v1383 = vld [vmem:[%s11 + $0x1f0] sm:$0xff]
  %v1384 = vld [vmem:[%s11 + $0x1f8] sm:$0xff]
  %v1385 = vld [vmem:[%s11 + $0x200] sm:$0xff]
  %v1386 = vld [vmem:[%s11 + $0x208] sm:$0xff]
  %v1387 = vld [vmem:[%s11 + $0x210] sm:$0xff]
  %v1388 = vld [vmem:[%s11 + $0x218] sm:$0xff]
  %v1389 = vld [vmem:[%s11 + $0x220] sm:$0xff]
  %v1390 = vld [vmem:[%s11 + $0x228] sm:$0xff]
  %v1391 = vld [vmem:[%s11 + $0x230] sm:$0xff]
  %v1392 = vld [vmem:[%s11 + $0x238] sm:$0xff]
  %v1393 = vld [vmem:[%s11 + $0x240] sm:$0xff]
  %v1394 = vld [vmem:[%s11 + $0x248] sm:$0xff]
  %v1395 = vld [vmem:[%s11 + $0x250] sm:$0xff]
  %v1396 = vld [vmem:[%s11 + $0x258] sm:$0xff]
  %v1397 = vld [vmem:[%s11 + $0x260] sm:$0xff]
  %v1398 = vld [vmem:[%s11 + $0x268] sm:$0xff]
  %v1399 = vld [vmem:[%s11 + $0x270] sm:$0xff]
  %v1400 = vld [vmem:[%s11 + $0x278] sm:$0xff]
  %v1401 = vld [vmem:[%s11 + $0x280] sm:$0xff]
  %v1402 = vld [vmem:[%s11 + $0x288] sm:$0xff]
  %v1403 = vld [vmem:[%s11 + $0x290] sm:$0xff]
  %v1404 = vld [vmem:[%s11 + $0x298] sm:$0xff]
  %v1405 = vld [vmem:[%s11 + $0x2a0] sm:$0xff]
  %v1406 = vld [vmem:[%s11 + $0x2a8] sm:$0xff]
  %v1407 = vld [vmem:[%s11 + $0x2b0] sm:$0xff]
  %v1408 = vld [vmem:[%s11 + $0x2b8] sm:$0xff]
  %v1409 = vld [vmem:[%s11 + $0x2c0] sm:$0xff]
  %v1410 = vld [vmem:[%s11 + $0x2c8] sm:$0xff]
  %v1411 = vld [vmem:[%s11 + $0x2d0] sm:$0xff]
  %v1412 = vld [vmem:[%s11 + $0x2d8] sm:$0xff]
  %v1413 = vld [vmem:[%s11 + $0x2e0] sm:$0xff]
  %v1414 = vld [vmem:[%s11 + $0x2e8] sm:$0xff]
  %v1415 = vld [vmem:[%s11 + $0x2f0] sm:$0xff]
  %v1416 = vld [vmem:[%s11 + $0x2f8] sm:$0xff]
  %v1417 = vld [vmem:[%s11 + $0x300] sm:$0xff]
  %v1418 = vld [vmem:[%s11 + $0x308] sm:$0xff]
  %v1419 = vld [vmem:[%s11 + $0x310] sm:$0xff]
  %v1420 = vld [vmem:[%s11 + $0x318] sm:$0xff]
  %v1421 = vld [vmem:[%s11 + $0x320] sm:$0xff]
  %v1422 = vld [vmem:[%s11 + $0x328] sm:$0xff]
  %v1423 = vld [vmem:[%s11 + $0x330] sm:$0xff]
  %v1424 = vld [vmem:[%s11 + $0x338] sm:$0xff]
  %v1425 = vld [vmem:[%s11 + $0x340] sm:$0xff]
  %v1426 = vld [vmem:[%s11 + $0x348] sm:$0xff]
  %v1427 = vld [vmem:[%s11 + $0x350] sm:$0xff]
  %v1428 = vld [vmem:[%s11 + $0x358] sm:$0xff]
  %v1429 = vld [vmem:[%s11 + $0x360] sm:$0xff]
  %v1430 = vld [vmem:[%s11 + $0x368] sm:$0xff]
  %v1431 = vld [vmem:[%s11 + $0x370] sm:$0xff]
  %v1432 = vld [vmem:[%s11 + $0x378] sm:$0xff]
  %v1433 = vld [vmem:[%s11 + $0x380] sm:$0xff]
  %v1434 = vld [vmem:[%s11 + $0x388] sm:$0xff]
  %v1435 = vld [vmem:[%s11 + $0x390] sm:$0xff]
  %v1436 = vld [vmem:[%s11 + $0x398] sm:$0xff]
  %v1437 = vld [vmem:[%s11 + $0x3a0] sm:$0xff]
  %v1438 = vld [vmem:[%s11 + $0x3a8] sm:$0xff]
  %v1439 = vld [vmem:[%s11 + $0x3b0] sm:$0xff]
  %v1440 = vld [vmem:[%s11 + $0x3b8] sm:$0xff]
  %v1441 = vld [vmem:[%s11 + $0x3c0] sm:$0xff]
  %v1442 = vld [vmem:[%s11 + $0x3c8] sm:$0xff]
  %v1443 = vld [vmem:[%s11 + $0x3d0] sm:$0xff]
  %v1444 = vld [vmem:[%s11 + $0x3d8] sm:$0xff]
  %v1445 = vld [vmem:[%s11 + $0x3e0] sm:$0xff]
  %v1446 = vld [vmem:[%s11 + $0x3e8] sm:$0xff]
  %v1447 = vld [vmem:[%s11 + $0x3f0] sm:$0xff]
  %v1448 = vld [vmem:[%s11 + $0x3f8] sm:$0xff]
  %v1449 = vld [vmem:[%s11 + $0x400] sm:$0xff]
  %v1450 = vld [vmem:[%s11 + $0x408] sm:$0xff]
  %v1451 = vld [vmem:[%s11 + $0x410] sm:$0xff]
  %v1452 = vld [vmem:[%s11 + $0x418] sm:$0xff]
  %v1453 = vld [vmem:[%s11 + $0x420] sm:$0xff]
  %v1454 = vld [vmem:[%s11 + $0x428] sm:$0xff]
  %v1455 = vld [vmem:[%s11 + $0x430] sm:$0xff]
  %v1456 = vld [vmem:[%s11 + $0x438] sm:$0xff]
  %v1457 = vld [vmem:[%s11 + $0x440] sm:$0xff]
  %v1458 = vld [vmem:[%s11 + $0x448] sm:$0xff]
  %v1459 = vld [vmem:[%s11 + $0x450] sm:$0xff]
  %v1460 = vld [vmem:[%s11 + $0x458] sm:$0xff]
  %v1461 = vld [vmem:[%s11 + $0x460] sm:$0xff]
  %v1462 = vld [vmem:[%s11 + $0x468] sm:$0xff]
  %v1463 = vld [vmem:[%s11 + $0x470] sm:$0xff]
  %v1464 = vld [vmem:[%s11 + $0x478] sm:$0xff]
  %v1465 = vld [vmem:[%s11 + $0x480] sm:$0xff]
  %v1466 = vld [vmem:[%s11 + $0x488] sm:$0xff]
  %v1467 = vld [vmem:[%s11 + $0x490] sm:$0xff]
  %v1468 = vld [vmem:[%s11 + $0x498] sm:$0xff]
  %v1469 = vld [vmem:[%s11 + $0x4a0] sm:$0xff]
  %v1470 = vld [vmem:[%s11 + $0x4a8] sm:$0xff]
  %v1471 = vld [vmem:[%s11 + $0x4b0] sm:$0xff]
  %v1472 = vld [vmem:[%s11 + $0x4b8] sm:$0xff]
  %v1473 = vld [vmem:[%s11 + $0x4c0] sm:$0xff]
  %v1474 = vld [vmem:[%s11 + $0x4c8] sm:$0xff]
  %v1475 = vld [vmem:[%s11 + $0x4d0] sm:$0xff]
  %v1476 = vld [vmem:[%s11 + $0x4d8] sm:$0xff]
  %v1477 = vld [vmem:[%s11 + $0x4e0] sm:$0xff]
  %v1478 = vld [vmem:[%s11 + $0x4e8] sm:$0xff]
  %v1479 = vld [vmem:[%s11 + $0x4f0] sm:$0xff]
  %v1480 = vld [vmem:[%s11 + $0x4f8] sm:$0xff]
  %v1481 = vld [vmem:[%s11 + $0x500] sm:$0xff]
  %v1482 = vld [vmem:[%s11 + $0x508] sm:$0xff]
  %v1483 = vld [vmem:[%s11 + $0x510] sm:$0xff]
  %v1484 = vld [vmem:[%s11 + $0x518] sm:$0xff]
  %v1485 = vld [vmem:[%s11 + $0x520] sm:$0xff]
  %v1486 = vld [vmem:[%s11 + $0x528] sm:$0xff]
  %v1487 = vld [vmem:[%s11 + $0x530] sm:$0xff]
  %v1488 = vld [vmem:[%s11 + $0x538] sm:$0xff]
  %v1489 = vld [vmem:[%s11 + $0x540] sm:$0xff]
  %v1490 = vld [vmem:[%s11 + $0x548] sm:$0xff]
  %v1491 = vld [vmem:[%s11 + $0x550] sm:$0xff]
  %v1492 = vld [vmem:[%s11 + $0x558] sm:$0xff]
  %v1493 = vld [vmem:[%s11 + $0x560] sm:$0xff]
  %v1494 = vld [vmem:[%s11 + $0x568] sm:$0xff]
  %v1495 = vld [vmem:[%s11 + $0x570] sm:$0xff]
  %v1496 = vld [vmem:[%s11 + $0x578] sm:$0xff]
  %v1497 = vld [vmem:[%s11 + $0x580] sm:$0xff]
  %v1498 = vld [vmem:[%s11 + $0x588] sm:$0xff]
  %v1499 = vld [vmem:[%s11 + $0x590] sm:$0xff]
  %v1500 = vld [vmem:[%s11 + $0x598] sm:$0xff]
  %v1501 = vld [vmem:[%s11 + $0x5a0] sm:$0xff]
  %v1502 = vld [vmem:[%s11 + $0x5a8] sm:$0xff]
  %v1503 = vld [vmem:[%s11 + $0x5b0] sm:$0xff]
  %v1504 = vld [vmem:[%s11 + $0x5b8] sm:$0xff]
  %v1505 = vld [vmem:[%s11 + $0x5c0] sm:$0xff]
  %v1506 = vld [vmem:[%s11 + $0x5c8] sm:$0xff]
  %v1507 = vld [vmem:[%s11 + $0x5d0] sm:$0xff]
  %v1508 = vld [vmem:[%s11 + $0x5d8] sm:$0xff]
  %v1509 = vld [vmem:[%s11 + $0x5e0] sm:$0xff]
  %v1510 = vld [vmem:[%s11 + $0x5e8] sm:$0xff]
  %v1511 = vld [vmem:[%s11 + $0x5f0] sm:$0xff]
  %v1512 = vld [vmem:[%s11 + $0x5f8] sm:$0xff]
  %v1513 = vld [vmem:[%s11 + $0x600] sm:$0xff]
  %v1514 = vld [vmem:[%s11 + $0x608] sm:$0xff]
  %v1515 = vld [vmem:[%s11 + $0x610] sm:$0xff]
  %v1516 = vld [vmem:[%s11 + $0x618] sm:$0xff]
  %v1517 = vld [vmem:[%s11 + $0x620] sm:$0xff]
  %v1518 = vld [vmem:[%s11 + $0x628] sm:$0xff]
  %v1519 = vld [vmem:[%s11 + $0x630] sm:$0xff]
  %v1520 = vld [vmem:[%s11 + $0x638] sm:$0xff]
  %v1521 = vld [vmem:[%s11 + $0x640] sm:$0xff]
  %v1522 = vld [vmem:[%s11 + $0x648] sm:$0xff]
  %v1523 = vld [vmem:[%s11 + $0x650] sm:$0xff]
  %v1524 = vld [vmem:[%s11 + $0x658] sm:$0xff]
  %v1525 = vld [vmem:[%s11 + $0x660] sm:$0xff]
  %v1526 = vld [vmem:[%s11 + $0x668] sm:$0xff]
  %v1527 = vld [vmem:[%s11 + $0x670] sm:$0xff]
  %v1528 = vld [vmem:[%s11 + $0x678] sm:$0xff]
  %v1529 = vld [vmem:[%s11 + $0x680] sm:$0xff]
  %v1530 = vld [vmem:[%s11 + $0x688] sm:$0xff]
  %v1531 = vld [vmem:[%s11 + $0x690] sm:$0xff]
  %v1532 = vld [vmem:[%s11 + $0x698] sm:$0xff]
  %v1533 = vld [vmem:[%s11 + $0x6a0] sm:$0xff]
  %v1534 = vld [vmem:[%s11 + $0x6a8] sm:$0xff]
  %v1535 = vld [vmem:[%s11 + $0x6b0] sm:$0xff]
  %v1536 = vld [vmem:[%s11 + $0x6b8] sm:$0xff]
  %v1537 = vld [vmem:[%s11 + $0x6c0] sm:$0xff]
  %v1538 = vld [vmem:[%s11 + $0x6c8] sm:$0xff]
  %v1539 = vld [vmem:[%s11 + $0x6d0] sm:$0xff]
  %v1540 = vld [vmem:[%s11 + $0x6d8] sm:$0xff]
  %v1541 = vld [vmem:[%s11 + $0x6e0] sm:$0xff]
  %v1542 = vld [vmem:[%s11 + $0x6e8] sm:$0xff]
  %v1543 = vld [vmem:[%s11 + $0x6f0] sm:$0xff]
  %v1544 = vld [vmem:[%s11 + $0x6f8] sm:$0xff]
  %v1545 = vld [vmem:[%s11 + $0x700] sm:$0xff]
  %v1546 = vld [vmem:[%s11 + $0x708] sm:$0xff]
  %v1547 = vld [vmem:[%s11 + $0x710] sm:$0xff]
  %v1548 = vld [vmem:[%s11 + $0x718] sm:$0xff]
  %v1549 = vld [vmem:[%s11 + $0x720] sm:$0xff]
  %v1550 = vld [vmem:[%s11 + $0x728] sm:$0xff]
  %v1551 = vld [vmem:[%s11 + $0x730] sm:$0xff]
  %v1552 = vld [vmem:[%s11 + $0x738] sm:$0xff]
  %v1553 = vld [vmem:[%s11 + $0x740] sm:$0xff]
  %v1554 = vld [vmem:[%s11 + $0x748] sm:$0xff]
  %v1555 = vld [vmem:[%s11 + $0x750] sm:$0xff]
  %v1556 = vld [vmem:[%s11 + $0x758] sm:$0xff]
  %v1557 = vld [vmem:[%s11 + $0x760] sm:$0xff]
  %v1558 = vld [vmem:[%s11 + $0x768] sm:$0xff]
  %v1559 = vld [vmem:[%s11 + $0x770] sm:$0xff]
  %v1560 = vld [vmem:[%s11 + $0x778] sm:$0xff]
  %v1561 = vld [vmem:[%s11 + $0x780] sm:$0xff]
  %v1562 = vld [vmem:[%s11 + $0x788] sm:$0xff]
  %v1563 = vld [vmem:[%s11 + $0x790] sm:$0xff]
  %v1564 = vld [vmem:[%s11 + $0x798] sm:$0xff]
  %v1565 = vld [vmem:[%s11 + $0x7a0] sm:$0xff]
  %v1566 = vld [vmem:[%s11 + $0x7a8] sm:$0xff]
  %v1567 = vld [vmem:[%s11 + $0x7b0] sm:$0xff]
  %v1568 = vld [vmem:[%s11 + $0x7b8] sm:$0xff]
  %v1569 = vld [vmem:[%s11 + $0x7c0] sm:$0xff]
  %v1570 = vld [vmem:[%s11 + $0x7c8] sm:$0xff]
  %v1571 = vld [vmem:[%s11 + $0x7d0] sm:$0xff]
  %v1572 = vld [vmem:[%s11 + $0x7d8] sm:$0xff]
  %v1573 = vld [vmem:[%s11 + $0x7e0] sm:$0xff]
  %v1574 = vld [vmem:[%s11 + $0x7e8] sm:$0xff]
  %v1575 = vld [vmem:[%s11 + $0x7f0] sm:$0xff]
  %v1576 = vld [vmem:[%s11 + $0x7f8] sm:$0xff]
  %v1577 = vld [vmem:[%s12] sm:$0x1]
  %v1579 = vperm.slane %v1577, 0
  %1581 = vmatpush.msra.mxu0 %v1336
  %1582 = vmatpush.msra.mxu0 %v1335
  %1583 = vmatpush.msra.mxu0 %v1334
  %1584 = vmatpush.msra.mxu0 %v1333
  %1585 = vmatpush.msra.mxu0 %v1332
  %1586 = vmatpush.msra.mxu0 %v1331
  %1587 = vmatpush.msra.mxu0 %v1330
  %1588 = vmatpush.msra.mxu0 %v1329
  %1589 = vmatpush.msra.mxu0 %v1328
  %1590 = vmatpush.msra.mxu0 %v1327
  %1591 = vmatpush.msra.mxu0 %v1326
  %1592 = vmatpush.msra.mxu0 %v1325
  %1593 = vmatpush.msra.mxu0 %v1324
  %1594 = vmatpush.msra.mxu0 %v1323
  %1595 = vmatpush.msra.mxu0 %v1322
  %1596 = vmatpush.msra.mxu0 %v1321
  %1597 = vmatmul.f32.gmra.mxu0 %v1273
  %v1598 = vpop.f32.mrf.mxu0
  %v1599 = vadd.f32 %v1579, %v1598
  %1600 = vmatmul.f32.gmra.mxu0 %v1289
  %v1601 = vpop.f32.mrf.mxu0
  %v1602 = vadd.f32 %v1579, %v1601
  %1603 = vmatmul.f32.gmra.mxu0 %v1305
  %v1604 = vpop.f32.mrf.mxu0
  %v1605 = vadd.f32 %v1579, %v1604
  %1606 = vdwg.mxu0
  %1607 = vmatpush.msra.mxu0 %v1352
  %1608 = vmatpush.msra.mxu0 %v1351
  %1609 = vmatpush.msra.mxu0 %v1350
  %1610 = vmatpush.msra.mxu0 %v1349
  %1611 = vmatpush.msra.mxu0 %v1348
  %1612 = vmatpush.msra.mxu0 %v1347
  %1613 = vmatpush.msra.mxu0 %v1346
  %1614 = vmatpush.msra.mxu0 %v1345
  %1615 = vmatpush.msra.mxu0 %v1344
  %1616 = vmatpush.msra.mxu0 %v1343
  %1617 = vmatpush.msra.mxu0 %v1342
  %1618 = vmatpush.msra.mxu0 %v1341
  %1619 = vmatpush.msra.mxu0 %v1340
  %1620 = vmatpush.msra.mxu0 %v1339
  %1621 = vmatpush.msra.mxu0 %v1338
  %1622 = vmatpush.msra.mxu0 %v1337
  %1623 = vmatmul.f32.gmra.mxu0 %v1274
  %v1624 = vpop.f32.mrf.mxu0
  %v1625 = vadd.f32 %v1599, %v1624
  %1626 = vmatmul.f32.gmra.mxu0 %v1290
  %v1627 = vpop.f32.mrf.mxu0
  %v1628 = vadd.f32 %v1602, %v1627
  %1629 = vmatmul.f32.gmra.mxu0 %v1306
  %v1630 = vpop.f32.mrf.mxu0
  %v1631 = vadd.f32 %v1605, %v1630
  %1632 = vdwg.mxu0
  %1633 = vmatpush.msra.mxu0 %v1368
  %1634 = vmatpush.msra.mxu0 %v1367
  %1635 = vmatpush.msra.mxu0 %v1366
  %1636 = vmatpush.msra.mxu0 %v1365
  %1637 = vmatpush.msra.mxu0 %v1364
  %1638 = vmatpush.msra.mxu0 %v1363
  %1639 = vmatpush.msra.mxu0 %v1362
  %1640 = vmatpush.msra.mxu0 %v1361
  %1641 = vmatpush.msra.mxu0 %v1360
  %1642 = vmatpush.msra.mxu0 %v1359
  %1643 = vmatpush.msra.mxu0 %v1358
  %1644 = vmatpush.msra.mxu0 %v1357
  %1645 = vmatpush.msra.mxu0 %v1356
  %1646 = vmatpush.msra.mxu0 %v1355
  %1647 = vmatpush.msra.mxu0 %v1354
  %1648 = vmatpush.msra.mxu0 %v1353
  %1649 = vmatmul.f32.gmra.mxu0 %v1275
  %v1650 = vpop.f32.mrf.mxu0
  %v1651 = vadd.f32 %v1625, %v1650
  %1652 = vmatmul.f32.gmra.mxu0 %v1291
  %v1653 = vpop.f32.mrf.mxu0
  %v1654 = vadd.f32 %v1628, %v1653
  %1655 = vmatmul.f32.gmra.mxu0 %v1307
  %v1656 = vpop.f32.mrf.mxu0
  %v1657 = vadd.f32 %v1631, %v1656
  %1658 = vdwg.mxu0
  %1659 = vmatpush.msra.mxu0 %v1384
  %1660 = vmatpush.msra.mxu0 %v1383
  %1661 = vmatpush.msra.mxu0 %v1382
  %1662 = vmatpush.msra.mxu0 %v1381
  %1663 = vmatpush.msra.mxu0 %v1380
  %1664 = vmatpush.msra.mxu0 %v1379
  %1665 = vmatpush.msra.mxu0 %v1378
  %1666 = vmatpush.msra.mxu0 %v1377
  %1667 = vmatpush.msra.mxu0 %v1376
  %1668 = vmatpush.msra.mxu0 %v1375
  %1669 = vmatpush.msra.mxu0 %v1374
  %1670 = vmatpush.msra.mxu0 %v1373
  %1671 = vmatpush.msra.mxu0 %v1372
  %1672 = vmatpush.msra.mxu0 %v1371
  %1673 = vmatpush.msra.mxu0 %v1370
  %1674 = vmatpush.msra.mxu0 %v1369
  %1675 = vmatmul.f32.gmra.mxu0 %v1276
  %v1676 = vpop.f32.mrf.mxu0
  %v1677 = vadd.f32 %v1651, %v1676
  %1678 = vmatmul.f32.gmra.mxu0 %v1292
  %v1679 = vpop.f32.mrf.mxu0
  %v1680 = vadd.f32 %v1654, %v1679
  %1681 = vmatmul.f32.gmra.mxu0 %v1308
  %v1682 = vpop.f32.mrf.mxu0
  %v1683 = vadd.f32 %v1657, %v1682
  %1684 = vdwg.mxu0
  %1685 = vmatpush.msra.mxu0 %v1400
  %1686 = vmatpush.msra.mxu0 %v1399
  %1687 = vmatpush.msra.mxu0 %v1398
  %1688 = vmatpush.msra.mxu0 %v1397
  %1689 = vmatpush.msra.mxu0 %v1396
  %1690 = vmatpush.msra.mxu0 %v1395
  %1691 = vmatpush.msra.mxu0 %v1394
  %1692 = vmatpush.msra.mxu0 %v1393
  %1693 = vmatpush.msra.mxu0 %v1392
  %1694 = vmatpush.msra.mxu0 %v1391
  %1695 = vmatpush.msra.mxu0 %v1390
  %1696 = vmatpush.msra.mxu0 %v1389
  %1697 = vmatpush.msra.mxu0 %v1388
  %1698 = vmatpush.msra.mxu0 %v1387
  %1699 = vmatpush.msra.mxu0 %v1386
  %1700 = vmatpush.msra.mxu0 %v1385
  %1701 = vmatmul.f32.gmra.mxu0 %v1277
  %v1702 = vpop.f32.mrf.mxu0
  %v1703 = vadd.f32 %v1677, %v1702
  %1704 = vmatmul.f32.gmra.mxu0 %v1293
  %v1705 = vpop.f32.mrf.mxu0
  %v1706 = vadd.f32 %v1680, %v1705
  %1707 = vmatmul.f32.gmra.mxu0 %v1309
  %v1708 = vpop.f32.mrf.mxu0
  %v1709 = vadd.f32 %v1683, %v1708
  %1710 = vdwg.mxu0
  %1711 = vmatpush.msra.mxu0 %v1416
  %1712 = vmatpush.msra.mxu0 %v1415
  %1713 = vmatpush.msra.mxu0 %v1414
  %1714 = vmatpush.msra.mxu0 %v1413
  %1715 = vmatpush.msra.mxu0 %v1412
  %1716 = vmatpush.msra.mxu0 %v1411
  %1717 = vmatpush.msra.mxu0 %v1410
  %1718 = vmatpush.msra.mxu0 %v1409
  %1719 = vmatpush.msra.mxu0 %v1408
  %1720 = vmatpush.msra.mxu0 %v1407
  %1721 = vmatpush.msra.mxu0 %v1406
  %1722 = vmatpush.msra.mxu0 %v1405
  %1723 = vmatpush.msra.mxu0 %v1404
  %1724 = vmatpush.msra.mxu0 %v1403
  %1725 = vmatpush.msra.mxu0 %v1402
  %1726 = vmatpush.msra.mxu0 %v1401
  %1727 = vmatmul.f32.gmra.mxu0 %v1278
  %v1728 = vpop.f32.mrf.mxu0
  %v1729 = vadd.f32 %v1703, %v1728
  %1730 = vmatmul.f32.gmra.mxu0 %v1294
  %v1731 = vpop.f32.mrf.mxu0
  %v1732 = vadd.f32 %v1706, %v1731
  %1733 = vmatmul.f32.gmra.mxu0 %v1310
  %v1734 = vpop.f32.mrf.mxu0
  %v1735 = vadd.f32 %v1709, %v1734
  %1736 = vdwg.mxu0
  %1737 = vmatpush.msra.mxu0 %v1432
  %1738 = vmatpush.msra.mxu0 %v1431
  %1739 = vmatpush.msra.mxu0 %v1430
  %1740 = vmatpush.msra.mxu0 %v1429
  %1741 = vmatpush.msra.mxu0 %v1428
  %1742 = vmatpush.msra.mxu0 %v1427
  %1743 = vmatpush.msra.mxu0 %v1426
  %1744 = vmatpush.msra.mxu0 %v1425
  %1745 = vmatpush.msra.mxu0 %v1424
  %1746 = vmatpush.msra.mxu0 %v1423
  %1747 = vmatpush.msra.mxu0 %v1422
  %1748 = vmatpush.msra.mxu0 %v1421
  %1749 = vmatpush.msra.mxu0 %v1420
  %1750 = vmatpush.msra.mxu0 %v1419
  %1751 = vmatpush.msra.mxu0 %v1418
  %1752 = vmatpush.msra.mxu0 %v1417
  %1753 = vmatmul.f32.gmra.mxu0 %v1279
  %v1754 = vpop.f32.mrf.mxu0
  %v1755 = vadd.f32 %v1729, %v1754
  %1756 = vmatmul.f32.gmra.mxu0 %v1295
  %v1757 = vpop.f32.mrf.mxu0
  %v1758 = vadd.f32 %v1732, %v1757
  %1759 = vmatmul.f32.gmra.mxu0 %v1311
  %v1760 = vpop.f32.mrf.mxu0
  %v1761 = vadd.f32 %v1735, %v1760
  %1762 = vdwg.mxu0
  %1763 = vmatpush.msra.mxu0 %v1448
  %1764 = vmatpush.msra.mxu0 %v1447
  %1765 = vmatpush.msra.mxu0 %v1446
  %1766 = vmatpush.msra.mxu0 %v1445
  %1767 = vmatpush.msra.mxu0 %v1444
  %1768 = vmatpush.msra.mxu0 %v1443
  %1769 = vmatpush.msra.mxu0 %v1442
  %1770 = vmatpush.msra.mxu0 %v1441
  %1771 = vmatpush.msra.mxu0 %v1440
  %1772 = vmatpush.msra.mxu0 %v1439
  %1773 = vmatpush.msra.mxu0 %v1438
  %1774 = vmatpush.msra.mxu0 %v1437
  %1775 = vmatpush.msra.mxu0 %v1436
  %1776 = vmatpush.msra.mxu0 %v1435
  %1777 = vmatpush.msra.mxu0 %v1434
  %1778 = vmatpush.msra.mxu0 %v1433
  %1779 = vmatmul.f32.gmra.mxu0 %v1280
  %v1780 = vpop.f32.mrf.mxu0
  %v1781 = vadd.f32 %v1755, %v1780
  %1782 = vmatmul.f32.gmra.mxu0 %v1296
  %v1783 = vpop.f32.mrf.mxu0
  %v1784 = vadd.f32 %v1758, %v1783
  %1785 = vmatmul.f32.gmra.mxu0 %v1312
  %v1786 = vpop.f32.mrf.mxu0
  %v1787 = vadd.f32 %v1761, %v1786
  %1788 = vdwg.mxu0
  %1789 = vmatpush.msra.mxu0 %v1464
  %1790 = vmatpush.msra.mxu0 %v1463
  %1791 = vmatpush.msra.mxu0 %v1462
  %1792 = vmatpush.msra.mxu0 %v1461
  %1793 = vmatpush.msra.mxu0 %v1460
  %1794 = vmatpush.msra.mxu0 %v1459
  %1795 = vmatpush.msra.mxu0 %v1458
  %1796 = vmatpush.msra.mxu0 %v1457
  %1797 = vmatpush.msra.mxu0 %v1456
  %1798 = vmatpush.msra.mxu0 %v1455
  %1799 = vmatpush.msra.mxu0 %v1454
  %1800 = vmatpush.msra.mxu0 %v1453
  %1801 = vmatpush.msra.mxu0 %v1452
  %1802 = vmatpush.msra.mxu0 %v1451
  %1803 = vmatpush.msra.mxu0 %v1450
  %1804 = vmatpush.msra.mxu0 %v1449
  %1805 = vmatmul.f32.gmra.mxu0 %v1281
  %v1806 = vpop.f32.mrf.mxu0
  %v1807 = vadd.f32 %v1781, %v1806
  %1808 = vmatmul.f32.gmra.mxu0 %v1297
  %v1809 = vpop.f32.mrf.mxu0
  %v1810 = vadd.f32 %v1784, %v1809
  %1811 = vmatmul.f32.gmra.mxu0 %v1313
  %v1812 = vpop.f32.mrf.mxu0
  %v1813 = vadd.f32 %v1787, %v1812
  %1814 = vdwg.mxu0
  %1815 = vmatpush.msra.mxu0 %v1480
  %1816 = vmatpush.msra.mxu0 %v1479
  %1817 = vmatpush.msra.mxu0 %v1478
  %1818 = vmatpush.msra.mxu0 %v1477
  %1819 = vmatpush.msra.mxu0 %v1476
  %1820 = vmatpush.msra.mxu0 %v1475
  %1821 = vmatpush.msra.mxu0 %v1474
  %1822 = vmatpush.msra.mxu0 %v1473
  %1823 = vmatpush.msra.mxu0 %v1472
  %1824 = vmatpush.msra.mxu0 %v1471
  %1825 = vmatpush.msra.mxu0 %v1470
  %1826 = vmatpush.msra.mxu0 %v1469
  %1827 = vmatpush.msra.mxu0 %v1468
  %1828 = vmatpush.msra.mxu0 %v1467
  %1829 = vmatpush.msra.mxu0 %v1466
  %1830 = vmatpush.msra.mxu0 %v1465
  %1831 = vmatmul.f32.gmra.mxu0 %v1282
  %v1832 = vpop.f32.mrf.mxu0
  %v1833 = vadd.f32 %v1807, %v1832
  %1834 = vmatmul.f32.gmra.mxu0 %v1298
  %v1835 = vpop.f32.mrf.mxu0
  %v1836 = vadd.f32 %v1810, %v1835
  %1837 = vmatmul.f32.gmra.mxu0 %v1314
  %v1838 = vpop.f32.mrf.mxu0
  %v1839 = vadd.f32 %v1813, %v1838
  %1840 = vdwg.mxu0
  %1841 = vmatpush.msra.mxu0 %v1496
  %1842 = vmatpush.msra.mxu0 %v1495
  %1843 = vmatpush.msra.mxu0 %v1494
  %1844 = vmatpush.msra.mxu0 %v1493
  %1845 = vmatpush.msra.mxu0 %v1492
  %1846 = vmatpush.msra.mxu0 %v1491
  %1847 = vmatpush.msra.mxu0 %v1490
  %1848 = vmatpush.msra.mxu0 %v1489
  %1849 = vmatpush.msra.mxu0 %v1488
  %1850 = vmatpush.msra.mxu0 %v1487
  %1851 = vmatpush.msra.mxu0 %v1486
  %1852 = vmatpush.msra.mxu0 %v1485
  %1853 = vmatpush.msra.mxu0 %v1484
  %1854 = vmatpush.msra.mxu0 %v1483
  %1855 = vmatpush.msra.mxu0 %v1482
  %1856 = vmatpush.msra.mxu0 %v1481
  %1857 = vmatmul.f32.gmra.mxu0 %v1283
  %v1858 = vpop.f32.mrf.mxu0
  %v1859 = vadd.f32 %v1833, %v1858
  %1860 = vmatmul.f32.gmra.mxu0 %v1299
  %v1861 = vpop.f32.mrf.mxu0
  %v1862 = vadd.f32 %v1836, %v1861
  %1863 = vmatmul.f32.gmra.mxu0 %v1315
  %v1864 = vpop.f32.mrf.mxu0
  %v1865 = vadd.f32 %v1839, %v1864
  %1866 = vdwg.mxu0
  %1867 = vmatpush.msra.mxu0 %v1512
  %1868 = vmatpush.msra.mxu0 %v1511
  %1869 = vmatpush.msra.mxu0 %v1510
  %1870 = vmatpush.msra.mxu0 %v1509
  %1871 = vmatpush.msra.mxu0 %v1508
  %1872 = vmatpush.msra.mxu0 %v1507
  %1873 = vmatpush.msra.mxu0 %v1506
  %1874 = vmatpush.msra.mxu0 %v1505
  %1875 = vmatpush.msra.mxu0 %v1504
  %1876 = vmatpush.msra.mxu0 %v1503
  %1877 = vmatpush.msra.mxu0 %v1502
  %1878 = vmatpush.msra.mxu0 %v1501
  %1879 = vmatpush.msra.mxu0 %v1500
  %1880 = vmatpush.msra.mxu0 %v1499
  %1881 = vmatpush.msra.mxu0 %v1498
  %1882 = vmatpush.msra.mxu0 %v1497
  %1883 = vmatmul.f32.gmra.mxu0 %v1284
  %v1884 = vpop.f32.mrf.mxu0
  %v1885 = vadd.f32 %v1859, %v1884
  %1886 = vmatmul.f32.gmra.mxu0 %v1300
  %v1887 = vpop.f32.mrf.mxu0
  %v1888 = vadd.f32 %v1862, %v1887
  %1889 = vmatmul.f32.gmra.mxu0 %v1316
  %v1890 = vpop.f32.mrf.mxu0
  %v1891 = vadd.f32 %v1865, %v1890
  %1892 = vdwg.mxu0
  %1893 = vmatpush.msra.mxu0 %v1528
  %1894 = vmatpush.msra.mxu0 %v1527
  %1895 = vmatpush.msra.mxu0 %v1526
  %1896 = vmatpush.msra.mxu0 %v1525
  %1897 = vmatpush.msra.mxu0 %v1524
  %1898 = vmatpush.msra.mxu0 %v1523
  %1899 = vmatpush.msra.mxu0 %v1522
  %1900 = vmatpush.msra.mxu0 %v1521
  %1901 = vmatpush.msra.mxu0 %v1520
  %1902 = vmatpush.msra.mxu0 %v1519
  %1903 = vmatpush.msra.mxu0 %v1518
  %1904 = vmatpush.msra.mxu0 %v1517
  %1905 = vmatpush.msra.mxu0 %v1516
  %1906 = vmatpush.msra.mxu0 %v1515
  %1907 = vmatpush.msra.mxu0 %v1514
  %1908 = vmatpush.msra.mxu0 %v1513
  %1909 = vmatmul.f32.gmra.mxu0 %v1285
  %v1910 = vpop.f32.mrf.mxu0
  %v1911 = vadd.f32 %v1885, %v1910
  %1912 = vmatmul.f32.gmra.mxu0 %v1301
  %v1913 = vpop.f32.mrf.mxu0
  %v1914 = vadd.f32 %v1888, %v1913
  %1915 = vmatmul.f32.gmra.mxu0 %v1317
  %v1916 = vpop.f32.mrf.mxu0
  %v1917 = vadd.f32 %v1891, %v1916
  %1918 = vdwg.mxu0
  %1919 = vmatpush.msra.mxu0 %v1544
  %1920 = vmatpush.msra.mxu0 %v1543
  %1921 = vmatpush.msra.mxu0 %v1542
  %1922 = vmatpush.msra.mxu0 %v1541
  %1923 = vmatpush.msra.mxu0 %v1540
  %1924 = vmatpush.msra.mxu0 %v1539
  %1925 = vmatpush.msra.mxu0 %v1538
  %1926 = vmatpush.msra.mxu0 %v1537
  %1927 = vmatpush.msra.mxu0 %v1536
  %1928 = vmatpush.msra.mxu0 %v1535
  %1929 = vmatpush.msra.mxu0 %v1534
  %1930 = vmatpush.msra.mxu0 %v1533
  %1931 = vmatpush.msra.mxu0 %v1532
  %1932 = vmatpush.msra.mxu0 %v1531
  %1933 = vmatpush.msra.mxu0 %v1530
  %1934 = vmatpush.msra.mxu0 %v1529
  %1935 = vmatmul.f32.gmra.mxu0 %v1286
  %v1936 = vpop.f32.mrf.mxu0
  %v1937 = vadd.f32 %v1911, %v1936
  %1938 = vmatmul.f32.gmra.mxu0 %v1302
  %v1939 = vpop.f32.mrf.mxu0
  %v1940 = vadd.f32 %v1914, %v1939
  %1941 = vmatmul.f32.gmra.mxu0 %v1318
  %v1942 = vpop.f32.mrf.mxu0
  %v1943 = vadd.f32 %v1917, %v1942
  %1944 = vdwg.mxu0
  %1945 = vmatpush.msra.mxu0 %v1560
  %1946 = vmatpush.msra.mxu0 %v1559
  %1947 = vmatpush.msra.mxu0 %v1558
  %1948 = vmatpush.msra.mxu0 %v1557
  %1949 = vmatpush.msra.mxu0 %v1556
  %1950 = vmatpush.msra.mxu0 %v1555
  %1951 = vmatpush.msra.mxu0 %v1554
  %1952 = vmatpush.msra.mxu0 %v1553
  %1953 = vmatpush.msra.mxu0 %v1552
  %1954 = vmatpush.msra.mxu0 %v1551
  %1955 = vmatpush.msra.mxu0 %v1550
  %1956 = vmatpush.msra.mxu0 %v1549
  %1957 = vmatpush.msra.mxu0 %v1548
  %1958 = vmatpush.msra.mxu0 %v1547
  %1959 = vmatpush.msra.mxu0 %v1546
  %1960 = vmatpush.msra.mxu0 %v1545
  %1961 = vmatmul.f32.gmra.mxu0 %v1287
  %v1962 = vpop.f32.mrf.mxu0
  %v1963 = vadd.f32 %v1937, %v1962
  %1964 = vmatmul.f32.gmra.mxu0 %v1303
  %v1965 = vpop.f32.mrf.mxu0
  %v1966 = vadd.f32 %v1940, %v1965
  %1967 = vmatmul.f32.gmra.mxu0 %v1319
  %v1968 = vpop.f32.mrf.mxu0
  %v1969 = vadd.f32 %v1943, %v1968
  %1970 = vdwg.mxu0
  %1971 = vmatpush.msra.mxu0 %v1576
  %1972 = vmatpush.msra.mxu0 %v1575
  %1973 = vmatpush.msra.mxu0 %v1574
  %1974 = vmatpush.msra.mxu0 %v1573
  %1975 = vmatpush.msra.mxu0 %v1572
  %1976 = vmatpush.msra.mxu0 %v1571
  %1977 = vmatpush.msra.mxu0 %v1570
  %1978 = vmatpush.msra.mxu0 %v1569
  %1979 = vmatpush.msra.mxu0 %v1568
  %1980 = vmatpush.msra.mxu0 %v1567
  %1981 = vmatpush.msra.mxu0 %v1566
  %1982 = vmatpush.msra.mxu0 %v1565
  %1983 = vmatpush.msra.mxu0 %v1564
  %1984 = vmatpush.msra.mxu0 %v1563
  %1985 = vmatpush.msra.mxu0 %v1562
  %1986 = vmatpush.msra.mxu0 %v1561
  %1987 = vmatmul.f32.gmra.mxu0 %v1288
  %v1988 = vpop.f32.mrf.mxu0
  %v1989 = vadd.f32 %v1963, %v1988
  %1990 = vmatmul.f32.gmra.mxu0 %v1304
  %v1991 = vpop.f32.mrf.mxu0
  %v1992 = vadd.f32 %v1966, %v1991
  %1993 = vmatmul.f32.gmra.mxu0 %v1320
  %v1994 = vpop.f32.mrf.mxu0
  %v1995 = vadd.f32 %v1969, %v1994
  %1996 = vdwg.mxu0
  %v1997 = vadd.f32 %v729, %v1989
  %v1998 = vadd.f32 %v730, %v1992
  %v1999 = vadd.f32 %v731, %v1995
  %v2000 = vld [vmem:[%s7] sm:$0x1]
  %v2001 = vld [vmem:[%s8] sm:$0x1]
  %v2002 = vsel %vm53, %v1997, 0.0
  %2003 = vadd.xlane.f32.xlu0 %v2002
  %v2004 = vpop.xlane.xlu0 %2003
  %v2005 = vsel %vm53, %v1998, 0.0
  %2006 = vadd.xlane.f32.xlu0 %v2005
  %v2007 = vpop.xlane.xlu0 %2006
  %v2008 = vsel %vm652, %v1999, 0.0
  %2009 = vadd.xlane.f32.xlu0 %v2008
  %v2010 = vpop.xlane.xlu0 %2009
  %v2011 = vmul.f32 %v2004, %v662
  %v2012 = vmul.f32 %v2007, %v662
  %v2013 = vmul.f32 %v2010, %v662
  %v2014 = vsub.f32 %v1997, %v2011
  %v2015 = vsub.f32 %v1998, %v2012
  %v2016 = vsub.f32 %v1999, %v2013
  %v2017 = vmul.f32 %v2014, %v2014
  %v2018 = vmul.f32 %v2015, %v2015
  %v2019 = vmul.f32 %v2016, %v2016
  %v2020 = vsel %vm53, %v2017, 0.0
  %2021 = vadd.xlane.f32.xlu0 %v2020
  %v2022 = vpop.xlane.xlu0 %2021
  %v2023 = vsel %vm53, %v2018, 0.0
  %2024 = vadd.xlane.f32.xlu0 %v2023
  %v2025 = vpop.xlane.xlu0 %2024
  %v2026 = vsel %vm652, %v2019, 0.0
  %2027 = vadd.xlane.f32.xlu0 %v2026
  %v2028 = vpop.xlane.xlu0 %2027
  %v2029 = vmul.f32 %v2022, %v662
  %v2030 = vmul.f32 %v2025, %v662
  %v2031 = vmul.f32 %v2028, %v662
  %v2032 = vadd.f32 %v2029, 1e-08
  %v2033 = vadd.f32 %v2030, 1e-08
  %v2034 = vadd.f32 %v2031, 1e-08
  %v2035 = vrsqrt.pop %v2032
  %v2036 = vmul.f32 %v2035, %v2032
  %v2037 = vmul.f32 %v2036, %v2035
  %v2038 = vmul.f32 0.5, %v2037
  %v2039 = vsub.f32 1.5, %v2038
  %v2040 = vmul.f32 %v2035, %v2039
  %vm2041 = vweird.f32 %v2032
  %vm2042 = vweird.f32 %v2035
  %vm2043 = vmor %vm2041, %vm2042
  %v2044 = vsel %vm2043, %v2035, %v2040
  %v2045 = vrsqrt.pop %v2033
  %v2046 = vmul.f32 %v2045, %v2033
  %v2047 = vmul.f32 %v2046, %v2045
  %v2048 = vmul.f32 0.5, %v2047
  %v2049 = vsub.f32 1.5, %v2048
  %v2050 = vmul.f32 %v2045, %v2049
  %vm2051 = vweird.f32 %v2033
  %vm2052 = vweird.f32 %v2045
  %vm2053 = vmor %vm2051, %vm2052
  %v2054 = vsel %vm2053, %v2045, %v2050
  %v2055 = vrsqrt.pop %v2034
  %v2056 = vmul.f32 %v2055, %v2034
  %v2057 = vmul.f32 %v2056, %v2055
  %v2058 = vmul.f32 0.5, %v2057
  %v2059 = vsub.f32 1.5, %v2058
  %v2060 = vmul.f32 %v2055, %v2059
  %vm2061 = vweird.f32 %v2034
  %vm2062 = vweird.f32 %v2055
  %vm2063 = vmor %vm2061, %vm2062
  %v2064 = vsel %vm2063, %v2055, %v2060
  %v2065 = vmul.f32 %v2014, %v2044
  %v2066 = vmul.f32 %v2015, %v2054
  %v2067 = vmul.f32 %v2016, %v2064
  %v2069 = vperm.slane %v2000, 0
  %v2071 = vmul.f32 %v2065, %v2069
  %v2072 = vmul.f32 %v2066, %v2069
  %v2073 = vmul.f32 %v2067, %v2069
  %v2075 = vperm.slane %v2001, 0
  %v2077 = vadd.f32 %v2071, %v2075
  %v2078 = vadd.f32 %v2072, %v2075
  %v2079 = vadd.f32 %v2073, %v2075
  %s2080 = scalar_lea.vmem %s1, 16
  %v2081 = vld [vmem:[%s2080] sm:$0xff]
  %v2082 = vld [vmem:[%s2080 + $0x8] sm:$0x3]
  %s2083 = scalar_lea.vmem %s2, 1
  %v2084 = vld [vmem:[%s2083] sm:$0x1]
  %v2086 = vperm.slane %v2084, 0
  %v2089 = vsel %vm53, %v2077, 0
  %v2092 = vsel %vm53, %v2078, 0
  %v2095 = vsel %vm53, %v2079, 0
  %v2098 = vsel %vm63, %v2082, 0
  %2100 = vmatpush.msra.mxu0 0.0
  %2101 = vmatpush.msra.mxu0 0.0
  %2102 = vmatpush.msra.mxu0 0.0
  %2103 = vmatpush.msra.mxu0 0.0
  %2104 = vmatpush.msra.mxu0 0.0
  %2105 = vmatpush.msra.mxu0 0.0
  %2106 = vmatpush.msra.mxu0 0.0
  %2107 = vmatpush.msra.mxu0 0.0
  %2108 = vmatpush.msra.mxu0 0.0
  %2109 = vmatpush.msra.mxu0 0.0
  %2110 = vmatpush.msra.mxu0 0.0
  %2111 = vmatpush.msra.mxu0 0.0
  %2112 = vmatpush.msra.mxu0 0.0
  %2113 = vmatpush.msra.mxu0 0.0
  %2114 = vmatpush.msra.mxu0 %v2098
  %2115 = vmatpush.msra.mxu0 %v2081
  %2116 = vmatmul.f32.gmra.mxu0 %v2089
  %v2117 = vpop.f32.mrf.mxu0
  %v2118 = vadd.f32 %v2086, %v2117
  %2119 = vmatmul.f32.gmra.mxu0 %v2092
  %v2120 = vpop.f32.mrf.mxu0
  %v2121 = vadd.f32 %v2086, %v2120
  %2122 = vmatmul.f32.gmra.mxu0 %v2095
  %v2123 = vpop.f32.mrf.mxu0
  %v2124 = vadd.f32 %v2086, %v2123
  %2125 = vdwg.mxu0
  %2127 = vrot.lane.b32.xlu0 %v2118, 118
  %v2128 = vpop.permute.xlu0 %2127
  %v2129 = vsel %vm96, %v2118, 0
  %v2131 = vsel %vm96, %v2128, 0
  %2133 = vmatpush.xpose.msra.mxu0 0.0
  %2134 = vmatpush.xpose.msra.mxu0 0.0
  %2135 = vmatpush.xpose.msra.mxu0 0.0
  %2136 = vmatpush.xpose.msra.mxu0 0.0
  %2137 = vmatpush.xpose.msra.mxu0 0.0
  %2138 = vmatpush.xpose.msra.mxu0 0.0
  %2139 = vmatpush.xpose.msra.mxu0 0.0
  %2140 = vmatpush.xpose.msra.mxu0 0.0
  %2141 = vmatpush.xpose.msra.mxu0 0.0
  %2142 = vmatpush.xpose.msra.mxu0 0.0
  %2143 = vmatpush.xpose.msra.mxu0 0.0
  %2144 = vmatpush.xpose.msra.mxu0 0.0
  %2145 = vmatpush.xpose.msra.mxu0 0.0
  %2146 = vmatpush.xpose.msra.mxu0 0.0
  %2147 = vmatpush.xpose.msra.mxu0 0.0
  %2148 = vmatpush.xpose.msra.mxu0 %v2131
  %2149 = vmatmul.f32.gmra.mxu0 %v2129
  %v2150 = vpop.f32.mrf.mxu0
  %v2151 = vadd.f32 0.0, %v2150
  %2152 = vdwg.mxu0
  %v2153 = vsel %vm121, %v2151, -inf
  %2154 = vmax.xlane.f32.xlu0 %v2153
  %v2155 = vpop.xlane.xlu0 %2154
  %v2156 = vsub.f32 %v2151, %v2155
  %v2157 = vmul.f32 %v2156, 1.442695
  %v2158 = vpow.pop %v2157
  %v2159 = vsel %vm121, %v2158, 0.0
  %2160 = vadd.xlane.f32.xlu0 %v2159
  %v2161 = vpop.xlane.xlu0 %2160
  %v2162 = vrcp.pop %v2161
  %v2163 = vmul.f32 %v2161, %v2162
  %v2164 = vsub.f32 1.0, %v2163
  %v2165 = vmul.f32 %v2162, %v2164
  %v2166 = vadd.f32 %v2162, %v2165
  %vm2167 = vweird.f32 %v2161
  %vm2168 = vweird.f32 %v2162
  %vm2169 = vmor %vm2167, %vm2168
  %v2170 = vsel %vm2169, %v2162, %v2166
  %v2171 = vand.u32 2147483647, %v2161
  %vm2172 = vcmp.eq.f32.partialorder %v2171, 8.507059e+37
  %v2173 = vand.u32 %v2161, 2147483648
  %v2174 = vor.u32 1.1754944e-38, %v2173
  %v2175 = vsel %vm2172, %v2174, %v2170
  %v2176 = vmul.f32 %v2158, %v2175
  %2177 = vrot.lane.b32.xlu0 %v2118, 108
  %v2178 = vpop.permute.xlu0 %2177
  %v2180 = vsel %vm148, %v2176, 0
  %v2182 = vsel %vm152, %v2178, 0
  %2184 = vmatpush.msra.mxu0 0.0
  %2185 = vmatpush.msra.mxu0 0.0
  %2186 = vmatpush.msra.mxu0 0.0
  %2187 = vmatpush.msra.mxu0 0.0
  %2188 = vmatpush.msra.mxu0 0.0
  %2189 = vmatpush.msra.mxu0 0.0
  %2190 = vmatpush.msra.mxu0 0.0
  %2191 = vmatpush.msra.mxu0 0.0
  %2192 = vmatpush.msra.mxu0 0.0
  %2193 = vmatpush.msra.mxu0 0.0
  %2194 = vmatpush.msra.mxu0 0.0
  %2195 = vmatpush.msra.mxu0 0.0
  %2196 = vmatpush.msra.mxu0 0.0
  %2197 = vmatpush.msra.mxu0 0.0
  %2198 = vmatpush.msra.mxu0 0.0
  %2199 = vmatpush.msra.mxu0 %v2182
  %2200 = vmatmul.f32.gmra.mxu0 %v2180
  %v2201 = vpop.f32.mrf.mxu0
  %v2202 = vadd.f32 0.0, %v2201
  %2203 = vdwg.mxu0
  %2204 = vrot.lane.b32.xlu0 %v2118, 123
  %v2205 = vpop.permute.xlu0 %2204
  %2206 = vrot.lane.b32.xlu0 %v2118, 113
  %v2207 = vpop.permute.xlu0 %2206
  %v2208 = vsel %vm96, %v2205, 0
  %v2210 = vsel %vm96, %v2207, 0
  %2212 = vmatpush.xpose.msra.mxu0 0.0
  %2213 = vmatpush.xpose.msra.mxu0 0.0
  %2214 = vmatpush.xpose.msra.mxu0 0.0
  %2215 = vmatpush.xpose.msra.mxu0 0.0
  %2216 = vmatpush.xpose.msra.mxu0 0.0
  %2217 = vmatpush.xpose.msra.mxu0 0.0
  %2218 = vmatpush.xpose.msra.mxu0 0.0
  %2219 = vmatpush.xpose.msra.mxu0 0.0
  %2220 = vmatpush.xpose.msra.mxu0 0.0
  %2221 = vmatpush.xpose.msra.mxu0 0.0
  %2222 = vmatpush.xpose.msra.mxu0 0.0
  %2223 = vmatpush.xpose.msra.mxu0 0.0
  %2224 = vmatpush.xpose.msra.mxu0 0.0
  %2225 = vmatpush.xpose.msra.mxu0 0.0
  %2226 = vmatpush.xpose.msra.mxu0 0.0
  %2227 = vmatpush.xpose.msra.mxu0 %v2210
  %2228 = vmatmul.f32.gmra.mxu0 %v2208
  %v2229 = vpop.f32.mrf.mxu0
  %v2230 = vadd.f32 0.0, %v2229
  %2231 = vdwg.mxu0
  %v2232 = vsel %vm121, %v2230, -inf
  %2233 = vmax.xlane.f32.xlu0 %v2232
  %v2234 = vpop.xlane.xlu0 %2233
  %v2235 = vsub.f32 %v2230, %v2234
  %v2236 = vmul.f32 %v2235, 1.442695
  %v2237 = vpow.pop %v2236
  %v2238 = vsel %vm121, %v2237, 0.0
  %2239 = vadd.xlane.f32.xlu0 %v2238
  %v2240 = vpop.xlane.xlu0 %2239
  %v2241 = vrcp.pop %v2240
  %v2242 = vmul.f32 %v2240, %v2241
  %v2243 = vsub.f32 1.0, %v2242
  %v2244 = vmul.f32 %v2241, %v2243
  %v2245 = vadd.f32 %v2241, %v2244
  %vm2246 = vweird.f32 %v2240
  %vm2247 = vweird.f32 %v2241
  %vm2248 = vmor %vm2246, %vm2247
  %v2249 = vsel %vm2248, %v2241, %v2245
  %v2250 = vand.u32 2147483647, %v2240
  %vm2251 = vcmp.eq.f32.partialorder %v2250, 8.507059e+37
  %v2252 = vand.u32 %v2240, 2147483648
  %v2253 = vor.u32 1.1754944e-38, %v2252
  %v2254 = vsel %vm2251, %v2253, %v2249
  %v2255 = vmul.f32 %v2237, %v2254
  %2256 = vrot.lane.b32.xlu0 %v2118, 103
  %v2257 = vpop.permute.xlu0 %2256
  %v2259 = vsel %vm148, %v2255, 0
  %v2261 = vsel %vm152, %v2257, 0
  %2263 = vmatpush.msra.mxu0 0.0
  %2264 = vmatpush.msra.mxu0 0.0
  %2265 = vmatpush.msra.mxu0 0.0
  %2266 = vmatpush.msra.mxu0 0.0
  %2267 = vmatpush.msra.mxu0 0.0
  %2268 = vmatpush.msra.mxu0 0.0
  %2269 = vmatpush.msra.mxu0 0.0
  %2270 = vmatpush.msra.mxu0 0.0
  %2271 = vmatpush.msra.mxu0 0.0
  %2272 = vmatpush.msra.mxu0 0.0
  %2273 = vmatpush.msra.mxu0 0.0
  %2274 = vmatpush.msra.mxu0 0.0
  %2275 = vmatpush.msra.mxu0 0.0
  %2276 = vmatpush.msra.mxu0 0.0
  %2277 = vmatpush.msra.mxu0 0.0
  %2278 = vmatpush.msra.mxu0 %v2261
  %2279 = vmatmul.f32.gmra.mxu0 %v2259
  %v2280 = vpop.f32.mrf.mxu0
  %v2281 = vadd.f32 0.0, %v2280
  %2282 = vdwg.mxu0
  %2284 = vrot.lane.b32.xlu0 %v2281, 5
  %v2285 = vpop.permute.xlu0 %2284
  %v2287 = vsel %vm96, %v2202, %v2285
  %v2289 = vrot.slane %v2118, 6
  %v2290 = vrot.slane %v2121, 6
  %v2291 = vsel %vm63, %v2289, %v2290
  %2292 = vrot.lane.b32.xlu0 %v2291, 118
  %v2293 = vpop.permute.xlu0 %2292
  %v2294 = vsel %vm96, %v2291, 0
  %v2296 = vsel %vm96, %v2293, 0
  %2298 = vmatpush.xpose.msra.mxu0 0.0
  %2299 = vmatpush.xpose.msra.mxu0 0.0
  %2300 = vmatpush.xpose.msra.mxu0 0.0
  %2301 = vmatpush.xpose.msra.mxu0 0.0
  %2302 = vmatpush.xpose.msra.mxu0 0.0
  %2303 = vmatpush.xpose.msra.mxu0 0.0
  %2304 = vmatpush.xpose.msra.mxu0 0.0
  %2305 = vmatpush.xpose.msra.mxu0 0.0
  %2306 = vmatpush.xpose.msra.mxu0 0.0
  %2307 = vmatpush.xpose.msra.mxu0 0.0
  %2308 = vmatpush.xpose.msra.mxu0 0.0
  %2309 = vmatpush.xpose.msra.mxu0 0.0
  %2310 = vmatpush.xpose.msra.mxu0 0.0
  %2311 = vmatpush.xpose.msra.mxu0 0.0
  %2312 = vmatpush.xpose.msra.mxu0 0.0
  %2313 = vmatpush.xpose.msra.mxu0 %v2296
  %2314 = vmatmul.f32.gmra.mxu0 %v2294
  %v2315 = vpop.f32.mrf.mxu0
  %v2316 = vadd.f32 0.0, %v2315
  %2317 = vdwg.mxu0
  %v2318 = vsel %vm121, %v2316, -inf
  %2319 = vmax.xlane.f32.xlu0 %v2318
  %v2320 = vpop.xlane.xlu0 %2319
  %v2321 = vsub.f32 %v2316, %v2320
  %v2322 = vmul.f32 %v2321, 1.442695
  %v2323 = vpow.pop %v2322
  %v2324 = vsel %vm121, %v2323, 0.0
  %2325 = vadd.xlane.f32.xlu0 %v2324
  %v2326 = vpop.xlane.xlu0 %2325
  %v2327 = vrcp.pop %v2326
  %v2328 = vmul.f32 %v2326, %v2327
  %v2329 = vsub.f32 1.0, %v2328
  %v2330 = vmul.f32 %v2327, %v2329
  %v2331 = vadd.f32 %v2327, %v2330
  %vm2332 = vweird.f32 %v2326
  %vm2333 = vweird.f32 %v2327
  %vm2334 = vmor %vm2332, %vm2333
  %v2335 = vsel %vm2334, %v2327, %v2331
  %v2336 = vand.u32 2147483647, %v2326
  %vm2337 = vcmp.eq.f32.partialorder %v2336, 8.507059e+37
  %v2338 = vand.u32 %v2326, 2147483648
  %v2339 = vor.u32 1.1754944e-38, %v2338
  %v2340 = vsel %vm2337, %v2339, %v2335
  %v2341 = vmul.f32 %v2323, %v2340
  %2342 = vrot.lane.b32.xlu0 %v2291, 108
  %v2343 = vpop.permute.xlu0 %2342
  %v2345 = vsel %vm148, %v2341, 0
  %v2347 = vsel %vm152, %v2343, 0
  %2349 = vmatpush.msra.mxu0 0.0
  %2350 = vmatpush.msra.mxu0 0.0
  %2351 = vmatpush.msra.mxu0 0.0
  %2352 = vmatpush.msra.mxu0 0.0
  %2353 = vmatpush.msra.mxu0 0.0
  %2354 = vmatpush.msra.mxu0 0.0
  %2355 = vmatpush.msra.mxu0 0.0
  %2356 = vmatpush.msra.mxu0 0.0
  %2357 = vmatpush.msra.mxu0 0.0
  %2358 = vmatpush.msra.mxu0 0.0
  %2359 = vmatpush.msra.mxu0 0.0
  %2360 = vmatpush.msra.mxu0 0.0
  %2361 = vmatpush.msra.mxu0 0.0
  %2362 = vmatpush.msra.mxu0 0.0
  %2363 = vmatpush.msra.mxu0 0.0
  %2364 = vmatpush.msra.mxu0 %v2347
  %2365 = vmatmul.f32.gmra.mxu0 %v2345
  %v2366 = vpop.f32.mrf.mxu0
  %v2367 = vadd.f32 0.0, %v2366
  %2368 = vdwg.mxu0
  %2369 = vrot.lane.b32.xlu0 %v2291, 123
  %v2370 = vpop.permute.xlu0 %2369
  %2371 = vrot.lane.b32.xlu0 %v2291, 113
  %v2372 = vpop.permute.xlu0 %2371
  %v2373 = vsel %vm96, %v2370, 0
  %v2375 = vsel %vm96, %v2372, 0
  %2377 = vmatpush.xpose.msra.mxu0 0.0
  %2378 = vmatpush.xpose.msra.mxu0 0.0
  %2379 = vmatpush.xpose.msra.mxu0 0.0
  %2380 = vmatpush.xpose.msra.mxu0 0.0
  %2381 = vmatpush.xpose.msra.mxu0 0.0
  %2382 = vmatpush.xpose.msra.mxu0 0.0
  %2383 = vmatpush.xpose.msra.mxu0 0.0
  %2384 = vmatpush.xpose.msra.mxu0 0.0
  %2385 = vmatpush.xpose.msra.mxu0 0.0
  %2386 = vmatpush.xpose.msra.mxu0 0.0
  %2387 = vmatpush.xpose.msra.mxu0 0.0
  %2388 = vmatpush.xpose.msra.mxu0 0.0
  %2389 = vmatpush.xpose.msra.mxu0 0.0
  %2390 = vmatpush.xpose.msra.mxu0 0.0
  %2391 = vmatpush.xpose.msra.mxu0 0.0
  %2392 = vmatpush.xpose.msra.mxu0 %v2375
  %2393 = vmatmul.f32.gmra.mxu0 %v2373
  %v2394 = vpop.f32.mrf.mxu0
  %v2395 = vadd.f32 0.0, %v2394
  %2396 = vdwg.mxu0
  %v2397 = vsel %vm121, %v2395, -inf
  %2398 = vmax.xlane.f32.xlu0 %v2397
  %v2399 = vpop.xlane.xlu0 %2398
  %v2400 = vsub.f32 %v2395, %v2399
  %v2401 = vmul.f32 %v2400, 1.442695
  %v2402 = vpow.pop %v2401
  %v2403 = vsel %vm121, %v2402, 0.0
  %2404 = vadd.xlane.f32.xlu0 %v2403
  %v2405 = vpop.xlane.xlu0 %2404
  %v2406 = vrcp.pop %v2405
  %v2407 = vmul.f32 %v2405, %v2406
  %v2408 = vsub.f32 1.0, %v2407
  %v2409 = vmul.f32 %v2406, %v2408
  %v2410 = vadd.f32 %v2406, %v2409
  %vm2411 = vweird.f32 %v2405
  %vm2412 = vweird.f32 %v2406
  %vm2413 = vmor %vm2411, %vm2412
  %v2414 = vsel %vm2413, %v2406, %v2410
  %v2415 = vand.u32 2147483647, %v2405
  %vm2416 = vcmp.eq.f32.partialorder %v2415, 8.507059e+37
  %v2417 = vand.u32 %v2405, 2147483648
  %v2418 = vor.u32 1.1754944e-38, %v2417
  %v2419 = vsel %vm2416, %v2418, %v2414
  %v2420 = vmul.f32 %v2402, %v2419
  %2421 = vrot.lane.b32.xlu0 %v2291, 103
  %v2422 = vpop.permute.xlu0 %2421
  %v2424 = vsel %vm148, %v2420, 0
  %v2426 = vsel %vm152, %v2422, 0
  %2428 = vmatpush.msra.mxu0 0.0
  %2429 = vmatpush.msra.mxu0 0.0
  %2430 = vmatpush.msra.mxu0 0.0
  %2431 = vmatpush.msra.mxu0 0.0
  %2432 = vmatpush.msra.mxu0 0.0
  %2433 = vmatpush.msra.mxu0 0.0
  %2434 = vmatpush.msra.mxu0 0.0
  %2435 = vmatpush.msra.mxu0 0.0
  %2436 = vmatpush.msra.mxu0 0.0
  %2437 = vmatpush.msra.mxu0 0.0
  %2438 = vmatpush.msra.mxu0 0.0
  %2439 = vmatpush.msra.mxu0 0.0
  %2440 = vmatpush.msra.mxu0 0.0
  %2441 = vmatpush.msra.mxu0 0.0
  %2442 = vmatpush.msra.mxu0 0.0
  %2443 = vmatpush.msra.mxu0 %v2426
  %2444 = vmatmul.f32.gmra.mxu0 %v2424
  %v2445 = vpop.f32.mrf.mxu0
  %v2446 = vadd.f32 0.0, %v2445
  %2447 = vdwg.mxu0
  %2449 = vrot.lane.b32.xlu0 %v2446, 5
  %v2450 = vpop.permute.xlu0 %2449
  %v2452 = vsel %vm96, %v2367, %v2450
  %v2454 = vrot.slane %v2121, 4
  %v2455 = vrot.slane %v2124, 4
  %v2456 = vsel %vm425, %v2454, %v2455
  %2457 = vrot.lane.b32.xlu0 %v2456, 118
  %v2458 = vpop.permute.xlu0 %2457
  %v2459 = vsel %vm96, %v2456, 0
  %v2461 = vsel %vm96, %v2458, 0
  %2463 = vmatpush.xpose.msra.mxu0 0.0
  %2464 = vmatpush.xpose.msra.mxu0 0.0
  %2465 = vmatpush.xpose.msra.mxu0 0.0
  %2466 = vmatpush.xpose.msra.mxu0 0.0
  %2467 = vmatpush.xpose.msra.mxu0 0.0
  %2468 = vmatpush.xpose.msra.mxu0 0.0
  %2469 = vmatpush.xpose.msra.mxu0 0.0
  %2470 = vmatpush.xpose.msra.mxu0 0.0
  %2471 = vmatpush.xpose.msra.mxu0 0.0
  %2472 = vmatpush.xpose.msra.mxu0 0.0
  %2473 = vmatpush.xpose.msra.mxu0 0.0
  %2474 = vmatpush.xpose.msra.mxu0 0.0
  %2475 = vmatpush.xpose.msra.mxu0 0.0
  %2476 = vmatpush.xpose.msra.mxu0 0.0
  %2477 = vmatpush.xpose.msra.mxu0 0.0
  %2478 = vmatpush.xpose.msra.mxu0 %v2461
  %2479 = vmatmul.f32.gmra.mxu0 %v2459
  %v2480 = vpop.f32.mrf.mxu0
  %v2481 = vadd.f32 0.0, %v2480
  %2482 = vdwg.mxu0
  %v2483 = vsel %vm121, %v2481, -inf
  %2484 = vmax.xlane.f32.xlu0 %v2483
  %v2485 = vpop.xlane.xlu0 %2484
  %v2486 = vsub.f32 %v2481, %v2485
  %v2487 = vmul.f32 %v2486, 1.442695
  %v2488 = vpow.pop %v2487
  %v2489 = vsel %vm121, %v2488, 0.0
  %2490 = vadd.xlane.f32.xlu0 %v2489
  %v2491 = vpop.xlane.xlu0 %2490
  %v2492 = vrcp.pop %v2491
  %v2493 = vmul.f32 %v2491, %v2492
  %v2494 = vsub.f32 1.0, %v2493
  %v2495 = vmul.f32 %v2492, %v2494
  %v2496 = vadd.f32 %v2492, %v2495
  %vm2497 = vweird.f32 %v2491
  %vm2498 = vweird.f32 %v2492
  %vm2499 = vmor %vm2497, %vm2498
  %v2500 = vsel %vm2499, %v2492, %v2496
  %v2501 = vand.u32 2147483647, %v2491
  %vm2502 = vcmp.eq.f32.partialorder %v2501, 8.507059e+37
  %v2503 = vand.u32 %v2491, 2147483648
  %v2504 = vor.u32 1.1754944e-38, %v2503
  %v2505 = vsel %vm2502, %v2504, %v2500
  %v2506 = vmul.f32 %v2488, %v2505
  %2507 = vrot.lane.b32.xlu0 %v2456, 108
  %v2508 = vpop.permute.xlu0 %2507
  %v2510 = vsel %vm148, %v2506, 0
  %v2512 = vsel %vm152, %v2508, 0
  %2514 = vmatpush.msra.mxu0 0.0
  %2515 = vmatpush.msra.mxu0 0.0
  %2516 = vmatpush.msra.mxu0 0.0
  %2517 = vmatpush.msra.mxu0 0.0
  %2518 = vmatpush.msra.mxu0 0.0
  %2519 = vmatpush.msra.mxu0 0.0
  %2520 = vmatpush.msra.mxu0 0.0
  %2521 = vmatpush.msra.mxu0 0.0
  %2522 = vmatpush.msra.mxu0 0.0
  %2523 = vmatpush.msra.mxu0 0.0
  %2524 = vmatpush.msra.mxu0 0.0
  %2525 = vmatpush.msra.mxu0 0.0
  %2526 = vmatpush.msra.mxu0 0.0
  %2527 = vmatpush.msra.mxu0 0.0
  %2528 = vmatpush.msra.mxu0 0.0
  %2529 = vmatpush.msra.mxu0 %v2512
  %2530 = vmatmul.f32.gmra.mxu0 %v2510
  %v2531 = vpop.f32.mrf.mxu0
  %v2532 = vadd.f32 0.0, %v2531
  %2533 = vdwg.mxu0
  %2534 = vrot.lane.b32.xlu0 %v2456, 123
  %v2535 = vpop.permute.xlu0 %2534
  %2536 = vrot.lane.b32.xlu0 %v2456, 113
  %v2537 = vpop.permute.xlu0 %2536
  %v2538 = vsel %vm96, %v2535, 0
  %v2540 = vsel %vm96, %v2537, 0
  %2542 = vmatpush.xpose.msra.mxu0 0.0
  %2543 = vmatpush.xpose.msra.mxu0 0.0
  %2544 = vmatpush.xpose.msra.mxu0 0.0
  %2545 = vmatpush.xpose.msra.mxu0 0.0
  %2546 = vmatpush.xpose.msra.mxu0 0.0
  %2547 = vmatpush.xpose.msra.mxu0 0.0
  %2548 = vmatpush.xpose.msra.mxu0 0.0
  %2549 = vmatpush.xpose.msra.mxu0 0.0
  %2550 = vmatpush.xpose.msra.mxu0 0.0
  %2551 = vmatpush.xpose.msra.mxu0 0.0
  %2552 = vmatpush.xpose.msra.mxu0 0.0
  %2553 = vmatpush.xpose.msra.mxu0 0.0
  %2554 = vmatpush.xpose.msra.mxu0 0.0
  %2555 = vmatpush.xpose.msra.mxu0 0.0
  %2556 = vmatpush.xpose.msra.mxu0 0.0
  %2557 = vmatpush.xpose.msra.mxu0 %v2540
  %2558 = vmatmul.f32.gmra.mxu0 %v2538
  %v2559 = vpop.f32.mrf.mxu0
  %v2560 = vadd.f32 0.0, %v2559
  %2561 = vdwg.mxu0
  %v2562 = vsel %vm121, %v2560, -inf
  %2563 = vmax.xlane.f32.xlu0 %v2562
  %v2564 = vpop.xlane.xlu0 %2563
  %v2565 = vsub.f32 %v2560, %v2564
  %v2566 = vmul.f32 %v2565, 1.442695
  %v2567 = vpow.pop %v2566
  %v2568 = vsel %vm121, %v2567, 0.0
  %2569 = vadd.xlane.f32.xlu0 %v2568
  %v2570 = vpop.xlane.xlu0 %2569
  %v2571 = vrcp.pop %v2570
  %v2572 = vmul.f32 %v2570, %v2571
  %v2573 = vsub.f32 1.0, %v2572
  %v2574 = vmul.f32 %v2571, %v2573
  %v2575 = vadd.f32 %v2571, %v2574
  %vm2576 = vweird.f32 %v2570
  %vm2577 = vweird.f32 %v2571
  %vm2578 = vmor %vm2576, %vm2577
  %v2579 = vsel %vm2578, %v2571, %v2575
  %v2580 = vand.u32 2147483647, %v2570
  %vm2581 = vcmp.eq.f32.partialorder %v2580, 8.507059e+37
  %v2582 = vand.u32 %v2570, 2147483648
  %v2583 = vor.u32 1.1754944e-38, %v2582
  %v2584 = vsel %vm2581, %v2583, %v2579
  %v2585 = vmul.f32 %v2567, %v2584
  %2586 = vrot.lane.b32.xlu0 %v2456, 103
  %v2587 = vpop.permute.xlu0 %2586
  %v2589 = vsel %vm148, %v2585, 0
  %v2591 = vsel %vm152, %v2587, 0
  %2593 = vmatpush.msra.mxu0 0.0
  %2594 = vmatpush.msra.mxu0 0.0
  %2595 = vmatpush.msra.mxu0 0.0
  %2596 = vmatpush.msra.mxu0 0.0
  %2597 = vmatpush.msra.mxu0 0.0
  %2598 = vmatpush.msra.mxu0 0.0
  %2599 = vmatpush.msra.mxu0 0.0
  %2600 = vmatpush.msra.mxu0 0.0
  %2601 = vmatpush.msra.mxu0 0.0
  %2602 = vmatpush.msra.mxu0 0.0
  %2603 = vmatpush.msra.mxu0 0.0
  %2604 = vmatpush.msra.mxu0 0.0
  %2605 = vmatpush.msra.mxu0 0.0
  %2606 = vmatpush.msra.mxu0 0.0
  %2607 = vmatpush.msra.mxu0 0.0
  %2608 = vmatpush.msra.mxu0 %v2591
  %2609 = vmatmul.f32.gmra.mxu0 %v2589
  %v2610 = vpop.f32.mrf.mxu0
  %v2611 = vadd.f32 0.0, %v2610
  %2612 = vdwg.mxu0
  %2614 = vrot.lane.b32.xlu0 %v2611, 5
  %v2615 = vpop.permute.xlu0 %2614
  %v2617 = vsel %vm96, %v2532, %v2615
  %v2619 = vrot.slane %v2452, 2
  %v2622 = vrot.slane %v2617, 4
  %v2624 = vsel %vm152, %v2287, %v2619
  %v2625 = vsel %vm425, %v2619, %v2622
  %s2626 = scalar_lea.vmem %s3, 16
  %v2627 = vld [vmem:[%s2626] sm:$0xff]
  %v2628 = vld [vmem:[%s2626 + $0x8] sm:$0x3]
  %s2629 = scalar_lea.vmem %s4, 1
  %v2630 = vld [vmem:[%s2629] sm:$0x1]
  %v2632 = vperm.slane %v2630, 0
  %v2635 = vsel %vm53, %v2624, 0
  %v2638 = vsel %vm53, %v2625, 0
  %v2640 = vsel %vm53, %v2622, 0
  %v2643 = vsel %vm63, %v2628, 0
  %2645 = vmatpush.msra.mxu0 0.0
  %2646 = vmatpush.msra.mxu0 0.0
  %2647 = vmatpush.msra.mxu0 0.0
  %2648 = vmatpush.msra.mxu0 0.0
  %2649 = vmatpush.msra.mxu0 0.0
  %2650 = vmatpush.msra.mxu0 0.0
  %2651 = vmatpush.msra.mxu0 0.0
  %2652 = vmatpush.msra.mxu0 0.0
  %2653 = vmatpush.msra.mxu0 0.0
  %2654 = vmatpush.msra.mxu0 0.0
  %2655 = vmatpush.msra.mxu0 0.0
  %2656 = vmatpush.msra.mxu0 0.0
  %2657 = vmatpush.msra.mxu0 0.0
  %2658 = vmatpush.msra.mxu0 0.0
  %2659 = vmatpush.msra.mxu0 %v2643
  %2660 = vmatpush.msra.mxu0 %v2627
  %2661 = vmatmul.f32.gmra.mxu0 %v2635
  %v2662 = vpop.f32.mrf.mxu0
  %v2663 = vadd.f32 %v2632, %v2662
  %2664 = vmatmul.f32.gmra.mxu0 %v2638
  %v2665 = vpop.f32.mrf.mxu0
  %v2666 = vadd.f32 %v2632, %v2665
  %2667 = vmatmul.f32.gmra.mxu0 %v2640
  %v2668 = vpop.f32.mrf.mxu0
  %v2669 = vadd.f32 %v2632, %v2668
  %2670 = vdwg.mxu0
  %v2671 = vadd.f32 %v2077, %v2663
  %v2672 = vadd.f32 %v2078, %v2666
  %v2673 = vadd.f32 %v2079, %v2669
  %s2674 = scalar_lea.vmem %s5, 1
  %v2675 = vld [vmem:[%s2674] sm:$0x1]
  %s2676 = scalar_lea.vmem %s6, 1
  %v2677 = vld [vmem:[%s2676] sm:$0x1]
  %v2678 = vsel %vm53, %v2671, 0.0
  %2679 = vadd.xlane.f32.xlu0 %v2678
  %v2680 = vpop.xlane.xlu0 %2679
  %v2681 = vsel %vm53, %v2672, 0.0
  %2682 = vadd.xlane.f32.xlu0 %v2681
  %v2683 = vpop.xlane.xlu0 %2682
  %v2684 = vsel %vm652, %v2673, 0.0
  %2685 = vadd.xlane.f32.xlu0 %v2684
  %v2686 = vpop.xlane.xlu0 %2685
  %v2687 = vmul.f32 %v2680, %v662
  %v2688 = vmul.f32 %v2683, %v662
  %v2689 = vmul.f32 %v2686, %v662
  %v2690 = vsub.f32 %v2671, %v2687
  %v2691 = vsub.f32 %v2672, %v2688
  %v2692 = vsub.f32 %v2673, %v2689
  %v2693 = vmul.f32 %v2690, %v2690
  %v2694 = vmul.f32 %v2691, %v2691
  %v2695 = vmul.f32 %v2692, %v2692
  %v2696 = vsel %vm53, %v2693, 0.0
  %2697 = vadd.xlane.f32.xlu0 %v2696
  %v2698 = vpop.xlane.xlu0 %2697
  %v2699 = vsel %vm53, %v2694, 0.0
  %2700 = vadd.xlane.f32.xlu0 %v2699
  %v2701 = vpop.xlane.xlu0 %2700
  %v2702 = vsel %vm652, %v2695, 0.0
  %2703 = vadd.xlane.f32.xlu0 %v2702
  %v2704 = vpop.xlane.xlu0 %2703
  %v2705 = vmul.f32 %v2698, %v662
  %v2706 = vmul.f32 %v2701, %v662
  %v2707 = vmul.f32 %v2704, %v662
  %v2708 = vadd.f32 %v2705, 1e-08
  %v2709 = vadd.f32 %v2706, 1e-08
  %v2710 = vadd.f32 %v2707, 1e-08
  %v2711 = vrsqrt.pop %v2708
  %v2712 = vmul.f32 %v2711, %v2708
  %v2713 = vmul.f32 %v2712, %v2711
  %v2714 = vmul.f32 0.5, %v2713
  %v2715 = vsub.f32 1.5, %v2714
  %v2716 = vmul.f32 %v2711, %v2715
  %vm2717 = vweird.f32 %v2708
  %vm2718 = vweird.f32 %v2711
  %vm2719 = vmor %vm2717, %vm2718
  %v2720 = vsel %vm2719, %v2711, %v2716
  %v2721 = vrsqrt.pop %v2709
  %v2722 = vmul.f32 %v2721, %v2709
  %v2723 = vmul.f32 %v2722, %v2721
  %v2724 = vmul.f32 0.5, %v2723
  %v2725 = vsub.f32 1.5, %v2724
  %v2726 = vmul.f32 %v2721, %v2725
  %vm2727 = vweird.f32 %v2709
  %vm2728 = vweird.f32 %v2721
  %vm2729 = vmor %vm2727, %vm2728
  %v2730 = vsel %vm2729, %v2721, %v2726
  %v2731 = vrsqrt.pop %v2710
  %v2732 = vmul.f32 %v2731, %v2710
  %v2733 = vmul.f32 %v2732, %v2731
  %v2734 = vmul.f32 0.5, %v2733
  %v2735 = vsub.f32 1.5, %v2734
  %v2736 = vmul.f32 %v2731, %v2735
  %vm2737 = vweird.f32 %v2710
  %vm2738 = vweird.f32 %v2731
  %vm2739 = vmor %vm2737, %vm2738
  %v2740 = vsel %vm2739, %v2731, %v2736
  %v2741 = vmul.f32 %v2690, %v2720
  %v2742 = vmul.f32 %v2691, %v2730
  %v2743 = vmul.f32 %v2692, %v2740
  %v2745 = vperm.slane %v2675, 0
  %v2747 = vmul.f32 %v2741, %v2745
  %v2748 = vmul.f32 %v2742, %v2745
  %v2749 = vmul.f32 %v2743, %v2745
  %v2751 = vperm.slane %v2677, 0
  %v2753 = vadd.f32 %v2747, %v2751
  %v2754 = vadd.f32 %v2748, %v2751
  %v2755 = vadd.f32 %v2749, %v2751
  %s2756 = scalar_lea.vmem %s9, 256
  %v2757 = vld [vmem:[%s2756] sm:$0xff]
  %v2758 = vld [vmem:[%s2756 + $0x8] sm:$0xff]
  %v2759 = vld [vmem:[%s2756 + $0x10] sm:$0xff]
  %v2760 = vld [vmem:[%s2756 + $0x18] sm:$0xff]
  %v2761 = vld [vmem:[%s2756 + $0x20] sm:$0xff]
  %v2762 = vld [vmem:[%s2756 + $0x28] sm:$0xff]
  %v2763 = vld [vmem:[%s2756 + $0x30] sm:$0xff]
  %v2764 = vld [vmem:[%s2756 + $0x38] sm:$0xff]
  %v2765 = vld [vmem:[%s2756 + $0x40] sm:$0xff]
  %v2766 = vld [vmem:[%s2756 + $0x48] sm:$0xff]
  %v2767 = vld [vmem:[%s2756 + $0x50] sm:$0xff]
  %v2768 = vld [vmem:[%s2756 + $0x58] sm:$0xff]
  %v2769 = vld [vmem:[%s2756 + $0x60] sm:$0xff]
  %v2770 = vld [vmem:[%s2756 + $0x68] sm:$0xff]
  %v2771 = vld [vmem:[%s2756 + $0x70] sm:$0xff]
  %v2772 = vld [vmem:[%s2756 + $0x78] sm:$0xff]
  %v2773 = vld [vmem:[%s2756 + $0x80] sm:$0x3]
  %v2774 = vld [vmem:[%s2756 + $0x88] sm:$0x3]
  %v2775 = vld [vmem:[%s2756 + $0x90] sm:$0x3]
  %v2776 = vld [vmem:[%s2756 + $0x98] sm:$0x3]
  %v2777 = vld [vmem:[%s2756 + $0xa0] sm:$0x3]
  %v2778 = vld [vmem:[%s2756 + $0xa8] sm:$0x3]
  %v2779 = vld [vmem:[%s2756 + $0xb0] sm:$0x3]
  %v2780 = vld [vmem:[%s2756 + $0xb8] sm:$0x3]
  %v2781 = vld [vmem:[%s2756 + $0xc0] sm:$0x3]
  %v2782 = vld [vmem:[%s2756 + $0xc8] sm:$0x3]
  %v2783 = vld [vmem:[%s2756 + $0xd0] sm:$0x3]
  %v2784 = vld [vmem:[%s2756 + $0xd8] sm:$0x3]
  %v2785 = vld [vmem:[%s2756 + $0xe0] sm:$0x3]
  %v2786 = vld [vmem:[%s2756 + $0xe8] sm:$0x3]
  %v2787 = vld [vmem:[%s2756 + $0xf0] sm:$0x3]
  %v2788 = vld [vmem:[%s2756 + $0xf8] sm:$0x3]
  %s2789 = scalar_lea.vmem %s10, 16
  %v2790 = vld [vmem:[%s2789] sm:$0xff]
  %v2791 = vld [vmem:[%s2789 + $0x8] sm:$0xff]
  %v2794 = vperm.slane %v2790, 0
  %v2795 = vperm.slane %v2790, 1
  %v2796 = vperm.slane %v2790, 2
  %v2797 = vperm.slane %v2790, 3
  %v2798 = vperm.slane %v2790, 4
  %v2799 = vperm.slane %v2790, 5
  %v2800 = vperm.slane %v2790, 6
  %v2801 = vperm.slane %v2790, 7
  %v2802 = vperm.slane %v2791, 0
  %v2803 = vperm.slane %v2791, 1
  %v2804 = vperm.slane %v2791, 2
  %v2805 = vperm.slane %v2791, 3
  %v2806 = vperm.slane %v2791, 4
  %v2807 = vperm.slane %v2791, 5
  %v2808 = vperm.slane %v2791, 6
  %v2809 = vperm.slane %v2791, 7
  %v2827 = vsel %vm53, %v2753, 0
  %v2830 = vsel %vm53, %v2754, 0
  %v2833 = vsel %vm53, %v2755, 0
  %v2836 = vsel %vm63, %v2773, 0
  %v2839 = vsel %vm63, %v2774, 0
  %v2842 = vsel %vm63, %v2775, 0
  %v2845 = vsel %vm63, %v2776, 0
  %v2848 = vsel %vm63, %v2777, 0
  %v2851 = vsel %vm63, %v2778, 0
  %v2854 = vsel %vm63, %v2779, 0
  %v2857 = vsel %vm63, %v2780, 0
  %v2860 = vsel %vm63, %v2781, 0
  %v2863 = vsel %vm63, %v2782, 0
  %v2866 = vsel %vm63, %v2783, 0
  %v2869 = vsel %vm63, %v2784, 0
  %v2872 = vsel %vm63, %v2785, 0
  %v2875 = vsel %vm63, %v2786, 0
  %v2878 = vsel %vm63, %v2787, 0
  %v2881 = vsel %vm63, %v2788, 0
  %2883 = vmatpush.msra.mxu0 0.0
  %2884 = vmatpush.msra.mxu0 0.0
  %2885 = vmatpush.msra.mxu0 0.0
  %2886 = vmatpush.msra.mxu0 0.0
  %2887 = vmatpush.msra.mxu0 0.0
  %2888 = vmatpush.msra.mxu0 0.0
  %2889 = vmatpush.msra.mxu0 0.0
  %2890 = vmatpush.msra.mxu0 0.0
  %2891 = vmatpush.msra.mxu0 0.0
  %2892 = vmatpush.msra.mxu0 0.0
  %2893 = vmatpush.msra.mxu0 0.0
  %2894 = vmatpush.msra.mxu0 0.0
  %2895 = vmatpush.msra.mxu0 0.0
  %2896 = vmatpush.msra.mxu0 0.0
  %2897 = vmatpush.msra.mxu0 %v2836
  %2898 = vmatpush.msra.mxu0 %v2757
  %2899 = vmatmul.f32.gmra.mxu0 %v2827
  %v2900 = vpop.f32.mrf.mxu0
  %v2901 = vadd.f32 %v2794, %v2900
  %2902 = vmatmul.f32.gmra.mxu0 %v2830
  %v2903 = vpop.f32.mrf.mxu0
  %v2904 = vadd.f32 %v2794, %v2903
  %2905 = vmatmul.f32.gmra.mxu0 %v2833
  %v2906 = vpop.f32.mrf.mxu0
  %v2907 = vadd.f32 %v2794, %v2906
  %2908 = vdwg.mxu0
  %2909 = vmatpush.msra.mxu0 0.0
  %2910 = vmatpush.msra.mxu0 0.0
  %2911 = vmatpush.msra.mxu0 0.0
  %2912 = vmatpush.msra.mxu0 0.0
  %2913 = vmatpush.msra.mxu0 0.0
  %2914 = vmatpush.msra.mxu0 0.0
  %2915 = vmatpush.msra.mxu0 0.0
  %2916 = vmatpush.msra.mxu0 0.0
  %2917 = vmatpush.msra.mxu0 0.0
  %2918 = vmatpush.msra.mxu0 0.0
  %2919 = vmatpush.msra.mxu0 0.0
  %2920 = vmatpush.msra.mxu0 0.0
  %2921 = vmatpush.msra.mxu0 0.0
  %2922 = vmatpush.msra.mxu0 0.0
  %2923 = vmatpush.msra.mxu0 %v2839
  %2924 = vmatpush.msra.mxu0 %v2758
  %2925 = vmatmul.f32.gmra.mxu0 %v2827
  %v2926 = vpop.f32.mrf.mxu0
  %v2927 = vadd.f32 %v2795, %v2926
  %2928 = vmatmul.f32.gmra.mxu0 %v2830
  %v2929 = vpop.f32.mrf.mxu0
  %v2930 = vadd.f32 %v2795, %v2929
  %2931 = vmatmul.f32.gmra.mxu0 %v2833
  %v2932 = vpop.f32.mrf.mxu0
  %v2933 = vadd.f32 %v2795, %v2932
  %2934 = vdwg.mxu0
  %2935 = vmatpush.msra.mxu0 0.0
  %2936 = vmatpush.msra.mxu0 0.0
  %2937 = vmatpush.msra.mxu0 0.0
  %2938 = vmatpush.msra.mxu0 0.0
  %2939 = vmatpush.msra.mxu0 0.0
  %2940 = vmatpush.msra.mxu0 0.0
  %2941 = vmatpush.msra.mxu0 0.0
  %2942 = vmatpush.msra.mxu0 0.0
  %2943 = vmatpush.msra.mxu0 0.0
  %2944 = vmatpush.msra.mxu0 0.0
  %2945 = vmatpush.msra.mxu0 0.0
  %2946 = vmatpush.msra.mxu0 0.0
  %2947 = vmatpush.msra.mxu0 0.0
  %2948 = vmatpush.msra.mxu0 0.0
  %2949 = vmatpush.msra.mxu0 %v2842
  %2950 = vmatpush.msra.mxu0 %v2759
  %2951 = vmatmul.f32.gmra.mxu0 %v2827
  %v2952 = vpop.f32.mrf.mxu0
  %v2953 = vadd.f32 %v2796, %v2952
  %2954 = vmatmul.f32.gmra.mxu0 %v2830
  %v2955 = vpop.f32.mrf.mxu0
  %v2956 = vadd.f32 %v2796, %v2955
  %2957 = vmatmul.f32.gmra.mxu0 %v2833
  %v2958 = vpop.f32.mrf.mxu0
  %v2959 = vadd.f32 %v2796, %v2958
  %2960 = vdwg.mxu0
  %2961 = vmatpush.msra.mxu0 0.0
  %2962 = vmatpush.msra.mxu0 0.0
  %2963 = vmatpush.msra.mxu0 0.0
  %2964 = vmatpush.msra.mxu0 0.0
  %2965 = vmatpush.msra.mxu0 0.0
  %2966 = vmatpush.msra.mxu0 0.0
  %2967 = vmatpush.msra.mxu0 0.0
  %2968 = vmatpush.msra.mxu0 0.0
  %2969 = vmatpush.msra.mxu0 0.0
  %2970 = vmatpush.msra.mxu0 0.0
  %2971 = vmatpush.msra.mxu0 0.0
  %2972 = vmatpush.msra.mxu0 0.0
  %2973 = vmatpush.msra.mxu0 0.0
  %2974 = vmatpush.msra.mxu0 0.0
  %2975 = vmatpush.msra.mxu0 %v2845
  %2976 = vmatpush.msra.mxu0 %v2760
  %2977 = vmatmul.f32.gmra.mxu0 %v2827
  %v2978 = vpop.f32.mrf.mxu0
  %v2979 = vadd.f32 %v2797, %v2978
  %2980 = vmatmul.f32.gmra.mxu0 %v2830
  %v2981 = vpop.f32.mrf.mxu0
  %v2982 = vadd.f32 %v2797, %v2981
  %2983 = vmatmul.f32.gmra.mxu0 %v2833
  %v2984 = vpop.f32.mrf.mxu0
  %v2985 = vadd.f32 %v2797, %v2984
  %2986 = vdwg.mxu0
  %2987 = vmatpush.msra.mxu0 0.0
  %2988 = vmatpush.msra.mxu0 0.0
  %2989 = vmatpush.msra.mxu0 0.0
  %2990 = vmatpush.msra.mxu0 0.0
  %2991 = vmatpush.msra.mxu0 0.0
  %2992 = vmatpush.msra.mxu0 0.0
  %2993 = vmatpush.msra.mxu0 0.0
  %2994 = vmatpush.msra.mxu0 0.0
  %2995 = vmatpush.msra.mxu0 0.0
  %2996 = vmatpush.msra.mxu0 0.0
  %2997 = vmatpush.msra.mxu0 0.0
  %2998 = vmatpush.msra.mxu0 0.0
  %2999 = vmatpush.msra.mxu0 0.0
  %3000 = vmatpush.msra.mxu0 0.0
  %3001 = vmatpush.msra.mxu0 %v2848
  %3002 = vmatpush.msra.mxu0 %v2761
  %3003 = vmatmul.f32.gmra.mxu0 %v2827
  %v3004 = vpop.f32.mrf.mxu0
  %v3005 = vadd.f32 %v2798, %v3004
  %3006 = vmatmul.f32.gmra.mxu0 %v2830
  %v3007 = vpop.f32.mrf.mxu0
  %v3008 = vadd.f32 %v2798, %v3007
  %3009 = vmatmul.f32.gmra.mxu0 %v2833
  %v3010 = vpop.f32.mrf.mxu0
  %v3011 = vadd.f32 %v2798, %v3010
  %3012 = vdwg.mxu0
  %3013 = vmatpush.msra.mxu0 0.0
  %3014 = vmatpush.msra.mxu0 0.0
  %3015 = vmatpush.msra.mxu0 0.0
  %3016 = vmatpush.msra.mxu0 0.0
  %3017 = vmatpush.msra.mxu0 0.0
  %3018 = vmatpush.msra.mxu0 0.0
  %3019 = vmatpush.msra.mxu0 0.0
  %3020 = vmatpush.msra.mxu0 0.0
  %3021 = vmatpush.msra.mxu0 0.0
  %3022 = vmatpush.msra.mxu0 0.0
  %3023 = vmatpush.msra.mxu0 0.0
  %3024 = vmatpush.msra.mxu0 0.0
  %3025 = vmatpush.msra.mxu0 0.0
  %3026 = vmatpush.msra.mxu0 0.0
  %3027 = vmatpush.msra.mxu0 %v2851
  %3028 = vmatpush.msra.mxu0 %v2762
  %3029 = vmatmul.f32.gmra.mxu0 %v2827
  %v3030 = vpop.f32.mrf.mxu0
  %v3031 = vadd.f32 %v2799, %v3030
  %3032 = vmatmul.f32.gmra.mxu0 %v2830
  %v3033 = vpop.f32.mrf.mxu0
  %v3034 = vadd.f32 %v2799, %v3033
  %3035 = vmatmul.f32.gmra.mxu0 %v2833
  %v3036 = vpop.f32.mrf.mxu0
  %v3037 = vadd.f32 %v2799, %v3036
  %3038 = vdwg.mxu0
  %3039 = vmatpush.msra.mxu0 0.0
  %3040 = vmatpush.msra.mxu0 0.0
  %3041 = vmatpush.msra.mxu0 0.0
  %3042 = vmatpush.msra.mxu0 0.0
  %3043 = vmatpush.msra.mxu0 0.0
  %3044 = vmatpush.msra.mxu0 0.0
  %3045 = vmatpush.msra.mxu0 0.0
  %3046 = vmatpush.msra.mxu0 0.0
  %3047 = vmatpush.msra.mxu0 0.0
  %3048 = vmatpush.msra.mxu0 0.0
  %3049 = vmatpush.msra.mxu0 0.0
  %3050 = vmatpush.msra.mxu0 0.0
  %3051 = vmatpush.msra.mxu0 0.0
  %3052 = vmatpush.msra.mxu0 0.0
  %3053 = vmatpush.msra.mxu0 %v2854
  %3054 = vmatpush.msra.mxu0 %v2763
  %3055 = vmatmul.f32.gmra.mxu0 %v2827
  %v3056 = vpop.f32.mrf.mxu0
  %v3057 = vadd.f32 %v2800, %v3056
  %3058 = vmatmul.f32.gmra.mxu0 %v2830
  %v3059 = vpop.f32.mrf.mxu0
  %v3060 = vadd.f32 %v2800, %v3059
  %3061 = vmatmul.f32.gmra.mxu0 %v2833
  %v3062 = vpop.f32.mrf.mxu0
  %v3063 = vadd.f32 %v2800, %v3062
  %3064 = vdwg.mxu0
  %3065 = vmatpush.msra.mxu0 0.0
  %3066 = vmatpush.msra.mxu0 0.0
  %3067 = vmatpush.msra.mxu0 0.0
  %3068 = vmatpush.msra.mxu0 0.0
  %3069 = vmatpush.msra.mxu0 0.0
  %3070 = vmatpush.msra.mxu0 0.0
  %3071 = vmatpush.msra.mxu0 0.0
  %3072 = vmatpush.msra.mxu0 0.0
  %3073 = vmatpush.msra.mxu0 0.0
  %3074 = vmatpush.msra.mxu0 0.0
  %3075 = vmatpush.msra.mxu0 0.0
  %3076 = vmatpush.msra.mxu0 0.0
  %3077 = vmatpush.msra.mxu0 0.0
  %3078 = vmatpush.msra.mxu0 0.0
  %3079 = vmatpush.msra.mxu0 %v2857
  %3080 = vmatpush.msra.mxu0 %v2764
  %3081 = vmatmul.f32.gmra.mxu0 %v2827
  %v3082 = vpop.f32.mrf.mxu0
  %v3083 = vadd.f32 %v2801, %v3082
  %3084 = vmatmul.f32.gmra.mxu0 %v2830
  %v3085 = vpop.f32.mrf.mxu0
  %v3086 = vadd.f32 %v2801, %v3085
  %3087 = vmatmul.f32.gmra.mxu0 %v2833
  %v3088 = vpop.f32.mrf.mxu0
  %v3089 = vadd.f32 %v2801, %v3088
  %3090 = vdwg.mxu0
  %3091 = vmatpush.msra.mxu0 0.0
  %3092 = vmatpush.msra.mxu0 0.0
  %3093 = vmatpush.msra.mxu0 0.0
  %3094 = vmatpush.msra.mxu0 0.0
  %3095 = vmatpush.msra.mxu0 0.0
  %3096 = vmatpush.msra.mxu0 0.0
  %3097 = vmatpush.msra.mxu0 0.0
  %3098 = vmatpush.msra.mxu0 0.0
  %3099 = vmatpush.msra.mxu0 0.0
  %3100 = vmatpush.msra.mxu0 0.0
  %3101 = vmatpush.msra.mxu0 0.0
  %3102 = vmatpush.msra.mxu0 0.0
  %3103 = vmatpush.msra.mxu0 0.0
  %3104 = vmatpush.msra.mxu0 0.0
  %3105 = vmatpush.msra.mxu0 %v2860
  %3106 = vmatpush.msra.mxu0 %v2765
  %3107 = vmatmul.f32.gmra.mxu0 %v2827
  %v3108 = vpop.f32.mrf.mxu0
  %v3109 = vadd.f32 %v2802, %v3108
  %3110 = vmatmul.f32.gmra.mxu0 %v2830
  %v3111 = vpop.f32.mrf.mxu0
  %v3112 = vadd.f32 %v2802, %v3111
  %3113 = vmatmul.f32.gmra.mxu0 %v2833
  %v3114 = vpop.f32.mrf.mxu0
  %v3115 = vadd.f32 %v2802, %v3114
  %3116 = vdwg.mxu0
  %3117 = vmatpush.msra.mxu0 0.0
  %3118 = vmatpush.msra.mxu0 0.0
  %3119 = vmatpush.msra.mxu0 0.0
  %3120 = vmatpush.msra.mxu0 0.0
  %3121 = vmatpush.msra.mxu0 0.0
  %3122 = vmatpush.msra.mxu0 0.0
  %3123 = vmatpush.msra.mxu0 0.0
  %3124 = vmatpush.msra.mxu0 0.0
  %3125 = vmatpush.msra.mxu0 0.0
  %3126 = vmatpush.msra.mxu0 0.0
  %3127 = vmatpush.msra.mxu0 0.0
  %3128 = vmatpush.msra.mxu0 0.0
  %3129 = vmatpush.msra.mxu0 0.0
  %3130 = vmatpush.msra.mxu0 0.0
  %3131 = vmatpush.msra.mxu0 %v2863
  %3132 = vmatpush.msra.mxu0 %v2766
  %3133 = vmatmul.f32.gmra.mxu0 %v2827
  %v3134 = vpop.f32.mrf.mxu0
  %v3135 = vadd.f32 %v2803, %v3134
  %3136 = vmatmul.f32.gmra.mxu0 %v2830
  %v3137 = vpop.f32.mrf.mxu0
  %v3138 = vadd.f32 %v2803, %v3137
  %3139 = vmatmul.f32.gmra.mxu0 %v2833
  %v3140 = vpop.f32.mrf.mxu0
  %v3141 = vadd.f32 %v2803, %v3140
  %3142 = vdwg.mxu0
  %3143 = vmatpush.msra.mxu0 0.0
  %3144 = vmatpush.msra.mxu0 0.0
  %3145 = vmatpush.msra.mxu0 0.0
  %3146 = vmatpush.msra.mxu0 0.0
  %3147 = vmatpush.msra.mxu0 0.0
  %3148 = vmatpush.msra.mxu0 0.0
  %3149 = vmatpush.msra.mxu0 0.0
  %3150 = vmatpush.msra.mxu0 0.0
  %3151 = vmatpush.msra.mxu0 0.0
  %3152 = vmatpush.msra.mxu0 0.0
  %3153 = vmatpush.msra.mxu0 0.0
  %3154 = vmatpush.msra.mxu0 0.0
  %3155 = vmatpush.msra.mxu0 0.0
  %3156 = vmatpush.msra.mxu0 0.0
  %3157 = vmatpush.msra.mxu0 %v2866
  %3158 = vmatpush.msra.mxu0 %v2767
  %3159 = vmatmul.f32.gmra.mxu0 %v2827
  %v3160 = vpop.f32.mrf.mxu0
  %v3161 = vadd.f32 %v2804, %v3160
  %3162 = vmatmul.f32.gmra.mxu0 %v2830
  %v3163 = vpop.f32.mrf.mxu0
  %v3164 = vadd.f32 %v2804, %v3163
  %3165 = vmatmul.f32.gmra.mxu0 %v2833
  %v3166 = vpop.f32.mrf.mxu0
  %v3167 = vadd.f32 %v2804, %v3166
  %3168 = vdwg.mxu0
  %3169 = vmatpush.msra.mxu0 0.0
  %3170 = vmatpush.msra.mxu0 0.0
  %3171 = vmatpush.msra.mxu0 0.0
  %3172 = vmatpush.msra.mxu0 0.0
  %3173 = vmatpush.msra.mxu0 0.0
  %3174 = vmatpush.msra.mxu0 0.0
  %3175 = vmatpush.msra.mxu0 0.0
  %3176 = vmatpush.msra.mxu0 0.0
  %3177 = vmatpush.msra.mxu0 0.0
  %3178 = vmatpush.msra.mxu0 0.0
  %3179 = vmatpush.msra.mxu0 0.0
  %3180 = vmatpush.msra.mxu0 0.0
  %3181 = vmatpush.msra.mxu0 0.0
  %3182 = vmatpush.msra.mxu0 0.0
  %3183 = vmatpush.msra.mxu0 %v2869
  %3184 = vmatpush.msra.mxu0 %v2768
  %3185 = vmatmul.f32.gmra.mxu0 %v2827
  %v3186 = vpop.f32.mrf.mxu0
  %v3187 = vadd.f32 %v2805, %v3186
  %3188 = vmatmul.f32.gmra.mxu0 %v2830
  %v3189 = vpop.f32.mrf.mxu0
  %v3190 = vadd.f32 %v2805, %v3189
  %3191 = vmatmul.f32.gmra.mxu0 %v2833
  %v3192 = vpop.f32.mrf.mxu0
  %v3193 = vadd.f32 %v2805, %v3192
  %3194 = vdwg.mxu0
  %3195 = vmatpush.msra.mxu0 0.0
  %3196 = vmatpush.msra.mxu0 0.0
  %3197 = vmatpush.msra.mxu0 0.0
  %3198 = vmatpush.msra.mxu0 0.0
  %3199 = vmatpush.msra.mxu0 0.0
  %3200 = vmatpush.msra.mxu0 0.0
  %3201 = vmatpush.msra.mxu0 0.0
  %3202 = vmatpush.msra.mxu0 0.0
  %3203 = vmatpush.msra.mxu0 0.0
  %3204 = vmatpush.msra.mxu0 0.0
  %3205 = vmatpush.msra.mxu0 0.0
  %3206 = vmatpush.msra.mxu0 0.0
  %3207 = vmatpush.msra.mxu0 0.0
  %3208 = vmatpush.msra.mxu0 0.0
  %3209 = vmatpush.msra.mxu0 %v2872
  %3210 = vmatpush.msra.mxu0 %v2769
  %3211 = vmatmul.f32.gmra.mxu0 %v2827
  %v3212 = vpop.f32.mrf.mxu0
  %v3213 = vadd.f32 %v2806, %v3212
  %3214 = vmatmul.f32.gmra.mxu0 %v2830
  %v3215 = vpop.f32.mrf.mxu0
  %v3216 = vadd.f32 %v2806, %v3215
  %3217 = vmatmul.f32.gmra.mxu0 %v2833
  %v3218 = vpop.f32.mrf.mxu0
  %v3219 = vadd.f32 %v2806, %v3218
  %3220 = vdwg.mxu0
  %3221 = vmatpush.msra.mxu0 0.0
  %3222 = vmatpush.msra.mxu0 0.0
  %3223 = vmatpush.msra.mxu0 0.0
  %3224 = vmatpush.msra.mxu0 0.0
  %3225 = vmatpush.msra.mxu0 0.0
  %3226 = vmatpush.msra.mxu0 0.0
  %3227 = vmatpush.msra.mxu0 0.0
  %3228 = vmatpush.msra.mxu0 0.0
  %3229 = vmatpush.msra.mxu0 0.0
  %3230 = vmatpush.msra.mxu0 0.0
  %3231 = vmatpush.msra.mxu0 0.0
  %3232 = vmatpush.msra.mxu0 0.0
  %3233 = vmatpush.msra.mxu0 0.0
  %3234 = vmatpush.msra.mxu0 0.0
  %3235 = vmatpush.msra.mxu0 %v2875
  %3236 = vmatpush.msra.mxu0 %v2770
  %3237 = vmatmul.f32.gmra.mxu0 %v2827
  %v3238 = vpop.f32.mrf.mxu0
  %v3239 = vadd.f32 %v2807, %v3238
  %3240 = vmatmul.f32.gmra.mxu0 %v2830
  %v3241 = vpop.f32.mrf.mxu0
  %v3242 = vadd.f32 %v2807, %v3241
  %3243 = vmatmul.f32.gmra.mxu0 %v2833
  %v3244 = vpop.f32.mrf.mxu0
  %v3245 = vadd.f32 %v2807, %v3244
  %3246 = vdwg.mxu0
  %3247 = vmatpush.msra.mxu0 0.0
  %3248 = vmatpush.msra.mxu0 0.0
  %3249 = vmatpush.msra.mxu0 0.0
  %3250 = vmatpush.msra.mxu0 0.0
  %3251 = vmatpush.msra.mxu0 0.0
  %3252 = vmatpush.msra.mxu0 0.0
  %3253 = vmatpush.msra.mxu0 0.0
  %3254 = vmatpush.msra.mxu0 0.0
  %3255 = vmatpush.msra.mxu0 0.0
  %3256 = vmatpush.msra.mxu0 0.0
  %3257 = vmatpush.msra.mxu0 0.0
  %3258 = vmatpush.msra.mxu0 0.0
  %3259 = vmatpush.msra.mxu0 0.0
  %3260 = vmatpush.msra.mxu0 0.0
  %3261 = vmatpush.msra.mxu0 %v2878
  %3262 = vmatpush.msra.mxu0 %v2771
  %3263 = vmatmul.f32.gmra.mxu0 %v2827
  %v3264 = vpop.f32.mrf.mxu0
  %v3265 = vadd.f32 %v2808, %v3264
  %3266 = vmatmul.f32.gmra.mxu0 %v2830
  %v3267 = vpop.f32.mrf.mxu0
  %v3268 = vadd.f32 %v2808, %v3267
  %3269 = vmatmul.f32.gmra.mxu0 %v2833
  %v3270 = vpop.f32.mrf.mxu0
  %v3271 = vadd.f32 %v2808, %v3270
  %3272 = vdwg.mxu0
  %3273 = vmatpush.msra.mxu0 0.0
  %3274 = vmatpush.msra.mxu0 0.0
  %3275 = vmatpush.msra.mxu0 0.0
  %3276 = vmatpush.msra.mxu0 0.0
  %3277 = vmatpush.msra.mxu0 0.0
  %3278 = vmatpush.msra.mxu0 0.0
  %3279 = vmatpush.msra.mxu0 0.0
  %3280 = vmatpush.msra.mxu0 0.0
  %3281 = vmatpush.msra.mxu0 0.0
  %3282 = vmatpush.msra.mxu0 0.0
  %3283 = vmatpush.msra.mxu0 0.0
  %3284 = vmatpush.msra.mxu0 0.0
  %3285 = vmatpush.msra.mxu0 0.0
  %3286 = vmatpush.msra.mxu0 0.0
  %3287 = vmatpush.msra.mxu0 %v2881
  %3288 = vmatpush.msra.mxu0 %v2772
  %3289 = vmatmul.f32.gmra.mxu0 %v2827
  %v3290 = vpop.f32.mrf.mxu0
  %v3291 = vadd.f32 %v2809, %v3290
  %3292 = vmatmul.f32.gmra.mxu0 %v2830
  %v3293 = vpop.f32.mrf.mxu0
  %v3294 = vadd.f32 %v2809, %v3293
  %3295 = vmatmul.f32.gmra.mxu0 %v2833
  %v3296 = vpop.f32.mrf.mxu0
  %v3297 = vadd.f32 %v2809, %v3296
  %3298 = vdwg.mxu0
  %v3299 = vmax.f32 %v2901, 0.0
  %v3300 = vmax.f32 %v2927, 0.0
  %v3301 = vmax.f32 %v2953, 0.0
  %v3302 = vmax.f32 %v2979, 0.0
  %v3303 = vmax.f32 %v3005, 0.0
  %v3304 = vmax.f32 %v3031, 0.0
  %v3305 = vmax.f32 %v3057, 0.0
  %v3306 = vmax.f32 %v3083, 0.0
  %v3307 = vmax.f32 %v3109, 0.0
  %v3308 = vmax.f32 %v3135, 0.0
  %v3309 = vmax.f32 %v3161, 0.0
  %v3310 = vmax.f32 %v3187, 0.0
  %v3311 = vmax.f32 %v3213, 0.0
  %v3312 = vmax.f32 %v3239, 0.0
  %v3313 = vmax.f32 %v3265, 0.0
  %v3314 = vmax.f32 %v3291, 0.0
  %v3315 = vmax.f32 %v2904, 0.0
  %v3316 = vmax.f32 %v2930, 0.0
  %v3317 = vmax.f32 %v2956, 0.0
  %v3318 = vmax.f32 %v2982, 0.0
  %v3319 = vmax.f32 %v3008, 0.0
  %v3320 = vmax.f32 %v3034, 0.0
  %v3321 = vmax.f32 %v3060, 0.0
  %v3322 = vmax.f32 %v3086, 0.0
  %v3323 = vmax.f32 %v3112, 0.0
  %v3324 = vmax.f32 %v3138, 0.0
  %v3325 = vmax.f32 %v3164, 0.0
  %v3326 = vmax.f32 %v3190, 0.0
  %v3327 = vmax.f32 %v3216, 0.0
  %v3328 = vmax.f32 %v3242, 0.0
  %v3329 = vmax.f32 %v3268, 0.0
  %v3330 = vmax.f32 %v3294, 0.0
  %v3331 = vmax.f32 %v2907, 0.0
  %v3332 = vmax.f32 %v2933, 0.0
  %v3333 = vmax.f32 %v2959, 0.0
  %v3334 = vmax.f32 %v2985, 0.0
  %v3335 = vmax.f32 %v3011, 0.0
  %v3336 = vmax.f32 %v3037, 0.0
  %v3337 = vmax.f32 %v3063, 0.0
  %v3338 = vmax.f32 %v3089, 0.0
  %v3339 = vmax.f32 %v3115, 0.0
  %v3340 = vmax.f32 %v3141, 0.0
  %v3341 = vmax.f32 %v3167, 0.0
  %v3342 = vmax.f32 %v3193, 0.0
  %v3343 = vmax.f32 %v3219, 0.0
  %v3344 = vmax.f32 %v3245, 0.0
  %v3345 = vmax.f32 %v3271, 0.0
  %v3346 = vmax.f32 %v3297, 0.0
  %s3347 = scalar_lea.vmem %s11, 2048
  %v3348 = vld [vmem:[%s3347] sm:$0xff]
  %v3349 = vld [vmem:[%s3347 + $0x8] sm:$0xff]
  %v3350 = vld [vmem:[%s3347 + $0x10] sm:$0xff]
  %v3351 = vld [vmem:[%s3347 + $0x18] sm:$0xff]
  %v3352 = vld [vmem:[%s3347 + $0x20] sm:$0xff]
  %v3353 = vld [vmem:[%s3347 + $0x28] sm:$0xff]
  %v3354 = vld [vmem:[%s3347 + $0x30] sm:$0xff]
  %v3355 = vld [vmem:[%s3347 + $0x38] sm:$0xff]
  %v3356 = vld [vmem:[%s3347 + $0x40] sm:$0xff]
  %v3357 = vld [vmem:[%s3347 + $0x48] sm:$0xff]
  %v3358 = vld [vmem:[%s3347 + $0x50] sm:$0xff]
  %v3359 = vld [vmem:[%s3347 + $0x58] sm:$0xff]
  %v3360 = vld [vmem:[%s3347 + $0x60] sm:$0xff]
  %v3361 = vld [vmem:[%s3347 + $0x68] sm:$0xff]
  %v3362 = vld [vmem:[%s3347 + $0x70] sm:$0xff]
  %v3363 = vld [vmem:[%s3347 + $0x78] sm:$0xff]
  %v3364 = vld [vmem:[%s3347 + $0x80] sm:$0xff]
  %v3365 = vld [vmem:[%s3347 + $0x88] sm:$0xff]
  %v3366 = vld [vmem:[%s3347 + $0x90] sm:$0xff]
  %v3367 = vld [vmem:[%s3347 + $0x98] sm:$0xff]
  %v3368 = vld [vmem:[%s3347 + $0xa0] sm:$0xff]
  %v3369 = vld [vmem:[%s3347 + $0xa8] sm:$0xff]
  %v3370 = vld [vmem:[%s3347 + $0xb0] sm:$0xff]
  %v3371 = vld [vmem:[%s3347 + $0xb8] sm:$0xff]
  %v3372 = vld [vmem:[%s3347 + $0xc0] sm:$0xff]
  %v3373 = vld [vmem:[%s3347 + $0xc8] sm:$0xff]
  %v3374 = vld [vmem:[%s3347 + $0xd0] sm:$0xff]
  %v3375 = vld [vmem:[%s3347 + $0xd8] sm:$0xff]
  %v3376 = vld [vmem:[%s3347 + $0xe0] sm:$0xff]
  %v3377 = vld [vmem:[%s3347 + $0xe8] sm:$0xff]
  %v3378 = vld [vmem:[%s3347 + $0xf0] sm:$0xff]
  %v3379 = vld [vmem:[%s3347 + $0xf8] sm:$0xff]
  %v3380 = vld [vmem:[%s3347 + $0x100] sm:$0xff]
  %v3381 = vld [vmem:[%s3347 + $0x108] sm:$0xff]
  %v3382 = vld [vmem:[%s3347 + $0x110] sm:$0xff]
  %v3383 = vld [vmem:[%s3347 + $0x118] sm:$0xff]
  %v3384 = vld [vmem:[%s3347 + $0x120] sm:$0xff]
  %v3385 = vld [vmem:[%s3347 + $0x128] sm:$0xff]
  %v3386 = vld [vmem:[%s3347 + $0x130] sm:$0xff]
  %v3387 = vld [vmem:[%s3347 + $0x138] sm:$0xff]
  %v3388 = vld [vmem:[%s3347 + $0x140] sm:$0xff]
  %v3389 = vld [vmem:[%s3347 + $0x148] sm:$0xff]
  %v3390 = vld [vmem:[%s3347 + $0x150] sm:$0xff]
  %v3391 = vld [vmem:[%s3347 + $0x158] sm:$0xff]
  %v3392 = vld [vmem:[%s3347 + $0x160] sm:$0xff]
  %v3393 = vld [vmem:[%s3347 + $0x168] sm:$0xff]
  %v3394 = vld [vmem:[%s3347 + $0x170] sm:$0xff]
  %v3395 = vld [vmem:[%s3347 + $0x178] sm:$0xff]
  %v3396 = vld [vmem:[%s3347 + $0x180] sm:$0xff]
  %v3397 = vld [vmem:[%s3347 + $0x188] sm:$0xff]
  %v3398 = vld [vmem:[%s3347 + $0x190] sm:$0xff]
  %v3399 = vld [vmem:[%s3347 + $0x198] sm:$0xff]
  %v3400 = vld [vmem:[%s3347 + $0x1a0] sm:$0xff]
  %v3401 = vld [vmem:[%s3347 + $0x1a8] sm:$0xff]
  %v3402 = vld [vmem:[%s3347 + $0x1b0] sm:$0xff]
  %v3403 = vld [vmem:[%s3347 + $0x1b8] sm:$0xff]
  %v3404 = vld [vmem:[%s3347 + $0x1c0] sm:$0xff]
  %v3405 = vld [vmem:[%s3347 + $0x1c8] sm:$0xff]
  %v3406 = vld [vmem:[%s3347 + $0x1d0] sm:$0xff]
  %v3407 = vld [vmem:[%s3347 + $0x1d8] sm:$0xff]
  %v3408 = vld [vmem:[%s3347 + $0x1e0] sm:$0xff]
  %v3409 = vld [vmem:[%s3347 + $0x1e8] sm:$0xff]
  %v3410 = vld [vmem:[%s3347 + $0x1f0] sm:$0xff]
  %v3411 = vld [vmem:[%s3347 + $0x1f8] sm:$0xff]
  %v3412 = vld [vmem:[%s3347 + $0x200] sm:$0xff]
  %v3413 = vld [vmem:[%s3347 + $0x208] sm:$0xff]
  %v3414 = vld [vmem:[%s3347 + $0x210] sm:$0xff]
  %v3415 = vld [vmem:[%s3347 + $0x218] sm:$0xff]
  %v3416 = vld [vmem:[%s3347 + $0x220] sm:$0xff]
  %v3417 = vld [vmem:[%s3347 + $0x228] sm:$0xff]
  %v3418 = vld [vmem:[%s3347 + $0x230] sm:$0xff]
  %v3419 = vld [vmem:[%s3347 + $0x238] sm:$0xff]
  %v3420 = vld [vmem:[%s3347 + $0x240] sm:$0xff]
  %v3421 = vld [vmem:[%s3347 + $0x248] sm:$0xff]
  %v3422 = vld [vmem:[%s3347 + $0x250] sm:$0xff]
  %v3423 = vld [vmem:[%s3347 + $0x258] sm:$0xff]
  %v3424 = vld [vmem:[%s3347 + $0x260] sm:$0xff]
  %v3425 = vld [vmem:[%s3347 + $0x268] sm:$0xff]
  %v3426 = vld [vmem:[%s3347 + $0x270] sm:$0xff]
  %v3427 = vld [vmem:[%s3347 + $0x278] sm:$0xff]
  %v3428 = vld [vmem:[%s3347 + $0x280] sm:$0xff]
  %v3429 = vld [vmem:[%s3347 + $0x288] sm:$0xff]
  %v3430 = vld [vmem:[%s3347 + $0x290] sm:$0xff]
  %v3431 = vld [vmem:[%s3347 + $0x298] sm:$0xff]
  %v3432 = vld [vmem:[%s3347 + $0x2a0] sm:$0xff]
  %v3433 = vld [vmem:[%s3347 + $0x2a8] sm:$0xff]
  %v3434 = vld [vmem:[%s3347 + $0x2b0] sm:$0xff]
  %v3435 = vld [vmem:[%s3347 + $0x2b8] sm:$0xff]
  %v3436 = vld [vmem:[%s3347 + $0x2c0] sm:$0xff]
  %v3437 = vld [vmem:[%s3347 + $0x2c8] sm:$0xff]
  %v3438 = vld [vmem:[%s3347 + $0x2d0] sm:$0xff]
  %v3439 = vld [vmem:[%s3347 + $0x2d8] sm:$0xff]
  %v3440 = vld [vmem:[%s3347 + $0x2e0] sm:$0xff]
  %v3441 = vld [vmem:[%s3347 + $0x2e8] sm:$0xff]
  %v3442 = vld [vmem:[%s3347 + $0x2f0] sm:$0xff]
  %v3443 = vld [vmem:[%s3347 + $0x2f8] sm:$0xff]
  %v3444 = vld [vmem:[%s3347 + $0x300] sm:$0xff]
  %v3445 = vld [vmem:[%s3347 + $0x308] sm:$0xff]
  %v3446 = vld [vmem:[%s3347 + $0x310] sm:$0xff]
  %v3447 = vld [vmem:[%s3347 + $0x318] sm:$0xff]
  %v3448 = vld [vmem:[%s3347 + $0x320] sm:$0xff]
  %v3449 = vld [vmem:[%s3347 + $0x328] sm:$0xff]
  %v3450 = vld [vmem:[%s3347 + $0x330] sm:$0xff]
  %v3451 = vld [vmem:[%s3347 + $0x338] sm:$0xff]
  %v3452 = vld [vmem:[%s3347 + $0x340] sm:$0xff]
  %v3453 = vld [vmem:[%s3347 + $0x348] sm:$0xff]
  %v3454 = vld [vmem:[%s3347 + $0x350] sm:$0xff]
  %v3455 = vld [vmem:[%s3347 + $0x358] sm:$0xff]
  %v3456 = vld [vmem:[%s3347 + $0x360] sm:$0xff]
  %v3457 = vld [vmem:[%s3347 + $0x368] sm:$0xff]
  %v3458 = vld [vmem:[%s3347 + $0x370] sm:$0xff]
  %v3459 = vld [vmem:[%s3347 + $0x378] sm:$0xff]
  %v3460 = vld [vmem:[%s3347 + $0x380] sm:$0xff]
  %v3461 = vld [vmem:[%s3347 + $0x388] sm:$0xff]
  %v3462 = vld [vmem:[%s3347 + $0x390] sm:$0xff]
  %v3463 = vld [vmem:[%s3347 + $0x398] sm:$0xff]
  %v3464 = vld [vmem:[%s3347 + $0x3a0] sm:$0xff]
  %v3465 = vld [vmem:[%s3347 + $0x3a8] sm:$0xff]
  %v3466 = vld [vmem:[%s3347 + $0x3b0] sm:$0xff]
  %v3467 = vld [vmem:[%s3347 + $0x3b8] sm:$0xff]
  %v3468 = vld [vmem:[%s3347 + $0x3c0] sm:$0xff]
  %v3469 = vld [vmem:[%s3347 + $0x3c8] sm:$0xff]
  %v3470 = vld [vmem:[%s3347 + $0x3d0] sm:$0xff]
  %v3471 = vld [vmem:[%s3347 + $0x3d8] sm:$0xff]
  %v3472 = vld [vmem:[%s3347 + $0x3e0] sm:$0xff]
  %v3473 = vld [vmem:[%s3347 + $0x3e8] sm:$0xff]
  %v3474 = vld [vmem:[%s3347 + $0x3f0] sm:$0xff]
  %v3475 = vld [vmem:[%s3347 + $0x3f8] sm:$0xff]
  %v3476 = vld [vmem:[%s3347 + $0x400] sm:$0xff]
  %v3477 = vld [vmem:[%s3347 + $0x408] sm:$0xff]
  %v3478 = vld [vmem:[%s3347 + $0x410] sm:$0xff]
  %v3479 = vld [vmem:[%s3347 + $0x418] sm:$0xff]
  %v3480 = vld [vmem:[%s3347 + $0x420] sm:$0xff]
  %v3481 = vld [vmem:[%s3347 + $0x428] sm:$0xff]
  %v3482 = vld [vmem:[%s3347 + $0x430] sm:$0xff]
  %v3483 = vld [vmem:[%s3347 + $0x438] sm:$0xff]
  %v3484 = vld [vmem:[%s3347 + $0x440] sm:$0xff]
  %v3485 = vld [vmem:[%s3347 + $0x448] sm:$0xff]
  %v3486 = vld [vmem:[%s3347 + $0x450] sm:$0xff]
  %v3487 = vld [vmem:[%s3347 + $0x458] sm:$0xff]
  %v3488 = vld [vmem:[%s3347 + $0x460] sm:$0xff]
  %v3489 = vld [vmem:[%s3347 + $0x468] sm:$0xff]
  %v3490 = vld [vmem:[%s3347 + $0x470] sm:$0xff]
  %v3491 = vld [vmem:[%s3347 + $0x478] sm:$0xff]
  %v3492 = vld [vmem:[%s3347 + $0x480] sm:$0xff]
  %v3493 = vld [vmem:[%s3347 + $0x488] sm:$0xff]
  %v3494 = vld [vmem:[%s3347 + $0x490] sm:$0xff]
  %v3495 = vld [vmem:[%s3347 + $0x498] sm:$0xff]
  %v3496 = vld [vmem:[%s3347 + $0x4a0] sm:$0xff]
  %v3497 = vld [vmem:[%s3347 + $0x4a8] sm:$0xff]
  %v3498 = vld [vmem:[%s3347 + $0x4b0] sm:$0xff]
  %v3499 = vld [vmem:[%s3347 + $0x4b8] sm:$0xff]
  %v3500 = vld [vmem:[%s3347 + $0x4c0] sm:$0xff]
  %v3501 = vld [vmem:[%s3347 + $0x4c8] sm:$0xff]
  %v3502 = vld [vmem:[%s3347 + $0x4d0] sm:$0xff]
  %v3503 = vld [vmem:[%s3347 + $0x4d8] sm:$0xff]
  %v3504 = vld [vmem:[%s3347 + $0x4e0] sm:$0xff]
  %v3505 = vld [vmem:[%s3347 + $0x4e8] sm:$0xff]
  %v3506 = vld [vmem:[%s3347 + $0x4f0] sm:$0xff]
  %v3507 = vld [vmem:[%s3347 + $0x4f8] sm:$0xff]
  %v3508 = vld [vmem:[%s3347 + $0x500] sm:$0xff]
  %v3509 = vld [vmem:[%s3347 + $0x508] sm:$0xff]
  %v3510 = vld [vmem:[%s3347 + $0x510] sm:$0xff]
  %v3511 = vld [vmem:[%s3347 + $0x518] sm:$0xff]
  %v3512 = vld [vmem:[%s3347 + $0x520] sm:$0xff]
  %v3513 = vld [vmem:[%s3347 + $0x528] sm:$0xff]
  %v3514 = vld [vmem:[%s3347 + $0x530] sm:$0xff]
  %v3515 = vld [vmem:[%s3347 + $0x538] sm:$0xff]
  %v3516 = vld [vmem:[%s3347 + $0x540] sm:$0xff]
  %v3517 = vld [vmem:[%s3347 + $0x548] sm:$0xff]
  %v3518 = vld [vmem:[%s3347 + $0x550] sm:$0xff]
  %v3519 = vld [vmem:[%s3347 + $0x558] sm:$0xff]
  %v3520 = vld [vmem:[%s3347 + $0x560] sm:$0xff]
  %v3521 = vld [vmem:[%s3347 + $0x568] sm:$0xff]
  %v3522 = vld [vmem:[%s3347 + $0x570] sm:$0xff]
  %v3523 = vld [vmem:[%s3347 + $0x578] sm:$0xff]
  %v3524 = vld [vmem:[%s3347 + $0x580] sm:$0xff]
  %v3525 = vld [vmem:[%s3347 + $0x588] sm:$0xff]
  %v3526 = vld [vmem:[%s3347 + $0x590] sm:$0xff]
  %v3527 = vld [vmem:[%s3347 + $0x598] sm:$0xff]
  %v3528 = vld [vmem:[%s3347 + $0x5a0] sm:$0xff]
  %v3529 = vld [vmem:[%s3347 + $0x5a8] sm:$0xff]
  %v3530 = vld [vmem:[%s3347 + $0x5b0] sm:$0xff]
  %v3531 = vld [vmem:[%s3347 + $0x5b8] sm:$0xff]
  %v3532 = vld [vmem:[%s3347 + $0x5c0] sm:$0xff]
  %v3533 = vld [vmem:[%s3347 + $0x5c8] sm:$0xff]
  %v3534 = vld [vmem:[%s3347 + $0x5d0] sm:$0xff]
  %v3535 = vld [vmem:[%s3347 + $0x5d8] sm:$0xff]
  %v3536 = vld [vmem:[%s3347 + $0x5e0] sm:$0xff]
  %v3537 = vld [vmem:[%s3347 + $0x5e8] sm:$0xff]
  %v3538 = vld [vmem:[%s3347 + $0x5f0] sm:$0xff]
  %v3539 = vld [vmem:[%s3347 + $0x5f8] sm:$0xff]
  %v3540 = vld [vmem:[%s3347 + $0x600] sm:$0xff]
  %v3541 = vld [vmem:[%s3347 + $0x608] sm:$0xff]
  %v3542 = vld [vmem:[%s3347 + $0x610] sm:$0xff]
  %v3543 = vld [vmem:[%s3347 + $0x618] sm:$0xff]
  %v3544 = vld [vmem:[%s3347 + $0x620] sm:$0xff]
  %v3545 = vld [vmem:[%s3347 + $0x628] sm:$0xff]
  %v3546 = vld [vmem:[%s3347 + $0x630] sm:$0xff]
  %v3547 = vld [vmem:[%s3347 + $0x638] sm:$0xff]
  %v3548 = vld [vmem:[%s3347 + $0x640] sm:$0xff]
  %v3549 = vld [vmem:[%s3347 + $0x648] sm:$0xff]
  %v3550 = vld [vmem:[%s3347 + $0x650] sm:$0xff]
  %v3551 = vld [vmem:[%s3347 + $0x658] sm:$0xff]
  %v3552 = vld [vmem:[%s3347 + $0x660] sm:$0xff]
  %v3553 = vld [vmem:[%s3347 + $0x668] sm:$0xff]
  %v3554 = vld [vmem:[%s3347 + $0x670] sm:$0xff]
  %v3555 = vld [vmem:[%s3347 + $0x678] sm:$0xff]
  %v3556 = vld [vmem:[%s3347 + $0x680] sm:$0xff]
  %v3557 = vld [vmem:[%s3347 + $0x688] sm:$0xff]
  %v3558 = vld [vmem:[%s3347 + $0x690] sm:$0xff]
  %v3559 = vld [vmem:[%s3347 + $0x698] sm:$0xff]
  %v3560 = vld [vmem:[%s3347 + $0x6a0] sm:$0xff]
  %v3561 = vld [vmem:[%s3347 + $0x6a8] sm:$0xff]
  %v3562 = vld [vmem:[%s3347 + $0x6b0] sm:$0xff]
  %v3563 = vld [vmem:[%s3347 + $0x6b8] sm:$0xff]
  %v3564 = vld [vmem:[%s3347 + $0x6c0] sm:$0xff]
  %v3565 = vld [vmem:[%s3347 + $0x6c8] sm:$0xff]
  %v3566 = vld [vmem:[%s3347 + $0x6d0] sm:$0xff]
  %v3567 = vld [vmem:[%s3347 + $0x6d8] sm:$0xff]
  %v3568 = vld [vmem:[%s3347 + $0x6e0] sm:$0xff]
  %v3569 = vld [vmem:[%s3347 + $0x6e8] sm:$0xff]
  %v3570 = vld [vmem:[%s3347 + $0x6f0] sm:$0xff]
  %v3571 = vld [vmem:[%s3347 + $0x6f8] sm:$0xff]
  %v3572 = vld [vmem:[%s3347 + $0x700] sm:$0xff]
  %v3573 = vld [vmem:[%s3347 + $0x708] sm:$0xff]
  %v3574 = vld [vmem:[%s3347 + $0x710] sm:$0xff]
  %v3575 = vld [vmem:[%s3347 + $0x718] sm:$0xff]
  %v3576 = vld [vmem:[%s3347 + $0x720] sm:$0xff]
  %v3577 = vld [vmem:[%s3347 + $0x728] sm:$0xff]
  %v3578 = vld [vmem:[%s3347 + $0x730] sm:$0xff]
  %v3579 = vld [vmem:[%s3347 + $0x738] sm:$0xff]
  %v3580 = vld [vmem:[%s3347 + $0x740] sm:$0xff]
  %v3581 = vld [vmem:[%s3347 + $0x748] sm:$0xff]
  %v3582 = vld [vmem:[%s3347 + $0x750] sm:$0xff]
  %v3583 = vld [vmem:[%s3347 + $0x758] sm:$0xff]
  %v3584 = vld [vmem:[%s3347 + $0x760] sm:$0xff]
  %v3585 = vld [vmem:[%s3347 + $0x768] sm:$0xff]
  %v3586 = vld [vmem:[%s3347 + $0x770] sm:$0xff]
  %v3587 = vld [vmem:[%s3347 + $0x778] sm:$0xff]
  %v3588 = vld [vmem:[%s3347 + $0x780] sm:$0xff]
  %v3589 = vld [vmem:[%s3347 + $0x788] sm:$0xff]
  %v3590 = vld [vmem:[%s3347 + $0x790] sm:$0xff]
  %v3591 = vld [vmem:[%s3347 + $0x798] sm:$0xff]
  %v3592 = vld [vmem:[%s3347 + $0x7a0] sm:$0xff]
  %v3593 = vld [vmem:[%s3347 + $0x7a8] sm:$0xff]
  %v3594 = vld [vmem:[%s3347 + $0x7b0] sm:$0xff]
  %v3595 = vld [vmem:[%s3347 + $0x7b8] sm:$0xff]
  %v3596 = vld [vmem:[%s3347 + $0x7c0] sm:$0xff]
  %v3597 = vld [vmem:[%s3347 + $0x7c8] sm:$0xff]
  %v3598 = vld [vmem:[%s3347 + $0x7d0] sm:$0xff]
  %v3599 = vld [vmem:[%s3347 + $0x7d8] sm:$0xff]
  %v3600 = vld [vmem:[%s3347 + $0x7e0] sm:$0xff]
  %v3601 = vld [vmem:[%s3347 + $0x7e8] sm:$0xff]
  %v3602 = vld [vmem:[%s3347 + $0x7f0] sm:$0xff]
  %v3603 = vld [vmem:[%s3347 + $0x7f8] sm:$0xff]
  %s3604 = scalar_lea.vmem %s12, 1
  %v3605 = vld [vmem:[%s3604] sm:$0x1]
  %v3607 = vperm.slane %v3605, 0
  %3609 = vmatpush.msra.mxu0 %v3363
  %3610 = vmatpush.msra.mxu0 %v3362
  %3611 = vmatpush.msra.mxu0 %v3361
  %3612 = vmatpush.msra.mxu0 %v3360
  %3613 = vmatpush.msra.mxu0 %v3359
  %3614 = vmatpush.msra.mxu0 %v3358
  %3615 = vmatpush.msra.mxu0 %v3357
  %3616 = vmatpush.msra.mxu0 %v3356
  %3617 = vmatpush.msra.mxu0 %v3355
  %3618 = vmatpush.msra.mxu0 %v3354
  %3619 = vmatpush.msra.mxu0 %v3353
  %3620 = vmatpush.msra.mxu0 %v3352
  %3621 = vmatpush.msra.mxu0 %v3351
  %3622 = vmatpush.msra.mxu0 %v3350
  %3623 = vmatpush.msra.mxu0 %v3349
  %3624 = vmatpush.msra.mxu0 %v3348
  %3625 = vmatmul.f32.gmra.mxu0 %v3299
  %v3626 = vpop.f32.mrf.mxu0
  %v3627 = vadd.f32 %v3607, %v3626
  %3628 = vmatmul.f32.gmra.mxu0 %v3315
  %v3629 = vpop.f32.mrf.mxu0
  %v3630 = vadd.f32 %v3607, %v3629
  %3631 = vmatmul.f32.gmra.mxu0 %v3331
  %v3632 = vpop.f32.mrf.mxu0
  %v3633 = vadd.f32 %v3607, %v3632
  %3634 = vdwg.mxu0
  %3635 = vmatpush.msra.mxu0 %v3379
  %3636 = vmatpush.msra.mxu0 %v3378
  %3637 = vmatpush.msra.mxu0 %v3377
  %3638 = vmatpush.msra.mxu0 %v3376
  %3639 = vmatpush.msra.mxu0 %v3375
  %3640 = vmatpush.msra.mxu0 %v3374
  %3641 = vmatpush.msra.mxu0 %v3373
  %3642 = vmatpush.msra.mxu0 %v3372
  %3643 = vmatpush.msra.mxu0 %v3371
  %3644 = vmatpush.msra.mxu0 %v3370
  %3645 = vmatpush.msra.mxu0 %v3369
  %3646 = vmatpush.msra.mxu0 %v3368
  %3647 = vmatpush.msra.mxu0 %v3367
  %3648 = vmatpush.msra.mxu0 %v3366
  %3649 = vmatpush.msra.mxu0 %v3365
  %3650 = vmatpush.msra.mxu0 %v3364
  %3651 = vmatmul.f32.gmra.mxu0 %v3300
  %v3652 = vpop.f32.mrf.mxu0
  %v3653 = vadd.f32 %v3627, %v3652
  %3654 = vmatmul.f32.gmra.mxu0 %v3316
  %v3655 = vpop.f32.mrf.mxu0
  %v3656 = vadd.f32 %v3630, %v3655
  %3657 = vmatmul.f32.gmra.mxu0 %v3332
  %v3658 = vpop.f32.mrf.mxu0
  %v3659 = vadd.f32 %v3633, %v3658
  %3660 = vdwg.mxu0
  %3661 = vmatpush.msra.mxu0 %v3395
  %3662 = vmatpush.msra.mxu0 %v3394
  %3663 = vmatpush.msra.mxu0 %v3393
  %3664 = vmatpush.msra.mxu0 %v3392
  %3665 = vmatpush.msra.mxu0 %v3391
  %3666 = vmatpush.msra.mxu0 %v3390
  %3667 = vmatpush.msra.mxu0 %v3389
  %3668 = vmatpush.msra.mxu0 %v3388
  %3669 = vmatpush.msra.mxu0 %v3387
  %3670 = vmatpush.msra.mxu0 %v3386
  %3671 = vmatpush.msra.mxu0 %v3385
  %3672 = vmatpush.msra.mxu0 %v3384
  %3673 = vmatpush.msra.mxu0 %v3383
  %3674 = vmatpush.msra.mxu0 %v3382
  %3675 = vmatpush.msra.mxu0 %v3381
  %3676 = vmatpush.msra.mxu0 %v3380
  %3677 = vmatmul.f32.gmra.mxu0 %v3301
  %v3678 = vpop.f32.mrf.mxu0
  %v3679 = vadd.f32 %v3653, %v3678
  %3680 = vmatmul.f32.gmra.mxu0 %v3317
  %v3681 = vpop.f32.mrf.mxu0
  %v3682 = vadd.f32 %v3656, %v3681
  %3683 = vmatmul.f32.gmra.mxu0 %v3333
  %v3684 = vpop.f32.mrf.mxu0
  %v3685 = vadd.f32 %v3659, %v3684
  %3686 = vdwg.mxu0
  %3687 = vmatpush.msra.mxu0 %v3411
  %3688 = vmatpush.msra.mxu0 %v3410
  %3689 = vmatpush.msra.mxu0 %v3409
  %3690 = vmatpush.msra.mxu0 %v3408
  %3691 = vmatpush.msra.mxu0 %v3407
  %3692 = vmatpush.msra.mxu0 %v3406
  %3693 = vmatpush.msra.mxu0 %v3405
  %3694 = vmatpush.msra.mxu0 %v3404
  %3695 = vmatpush.msra.mxu0 %v3403
  %3696 = vmatpush.msra.mxu0 %v3402
  %3697 = vmatpush.msra.mxu0 %v3401
  %3698 = vmatpush.msra.mxu0 %v3400
  %3699 = vmatpush.msra.mxu0 %v3399
  %3700 = vmatpush.msra.mxu0 %v3398
  %3701 = vmatpush.msra.mxu0 %v3397
  %3702 = vmatpush.msra.mxu0 %v3396
  %3703 = vmatmul.f32.gmra.mxu0 %v3302
  %v3704 = vpop.f32.mrf.mxu0
  %v3705 = vadd.f32 %v3679, %v3704
  %3706 = vmatmul.f32.gmra.mxu0 %v3318
  %v3707 = vpop.f32.mrf.mxu0
  %v3708 = vadd.f32 %v3682, %v3707
  %3709 = vmatmul.f32.gmra.mxu0 %v3334
  %v3710 = vpop.f32.mrf.mxu0
  %v3711 = vadd.f32 %v3685, %v3710
  %3712 = vdwg.mxu0
  %3713 = vmatpush.msra.mxu0 %v3427
  %3714 = vmatpush.msra.mxu0 %v3426
  %3715 = vmatpush.msra.mxu0 %v3425
  %3716 = vmatpush.msra.mxu0 %v3424
  %3717 = vmatpush.msra.mxu0 %v3423
  %3718 = vmatpush.msra.mxu0 %v3422
  %3719 = vmatpush.msra.mxu0 %v3421
  %3720 = vmatpush.msra.mxu0 %v3420
  %3721 = vmatpush.msra.mxu0 %v3419
  %3722 = vmatpush.msra.mxu0 %v3418
  %3723 = vmatpush.msra.mxu0 %v3417
  %3724 = vmatpush.msra.mxu0 %v3416
  %3725 = vmatpush.msra.mxu0 %v3415
  %3726 = vmatpush.msra.mxu0 %v3414
  %3727 = vmatpush.msra.mxu0 %v3413
  %3728 = vmatpush.msra.mxu0 %v3412
  %3729 = vmatmul.f32.gmra.mxu0 %v3303
  %v3730 = vpop.f32.mrf.mxu0
  %v3731 = vadd.f32 %v3705, %v3730
  %3732 = vmatmul.f32.gmra.mxu0 %v3319
  %v3733 = vpop.f32.mrf.mxu0
  %v3734 = vadd.f32 %v3708, %v3733
  %3735 = vmatmul.f32.gmra.mxu0 %v3335
  %v3736 = vpop.f32.mrf.mxu0
  %v3737 = vadd.f32 %v3711, %v3736
  %3738 = vdwg.mxu0
  %3739 = vmatpush.msra.mxu0 %v3443
  %3740 = vmatpush.msra.mxu0 %v3442
  %3741 = vmatpush.msra.mxu0 %v3441
  %3742 = vmatpush.msra.mxu0 %v3440
  %3743 = vmatpush.msra.mxu0 %v3439
  %3744 = vmatpush.msra.mxu0 %v3438
  %3745 = vmatpush.msra.mxu0 %v3437
  %3746 = vmatpush.msra.mxu0 %v3436
  %3747 = vmatpush.msra.mxu0 %v3435
  %3748 = vmatpush.msra.mxu0 %v3434
  %3749 = vmatpush.msra.mxu0 %v3433
  %3750 = vmatpush.msra.mxu0 %v3432
  %3751 = vmatpush.msra.mxu0 %v3431
  %3752 = vmatpush.msra.mxu0 %v3430
  %3753 = vmatpush.msra.mxu0 %v3429
  %3754 = vmatpush.msra.mxu0 %v3428
  %3755 = vmatmul.f32.gmra.mxu0 %v3304
  %v3756 = vpop.f32.mrf.mxu0
  %v3757 = vadd.f32 %v3731, %v3756
  %3758 = vmatmul.f32.gmra.mxu0 %v3320
  %v3759 = vpop.f32.mrf.mxu0
  %v3760 = vadd.f32 %v3734, %v3759
  %3761 = vmatmul.f32.gmra.mxu0 %v3336
  %v3762 = vpop.f32.mrf.mxu0
  %v3763 = vadd.f32 %v3737, %v3762
  %3764 = vdwg.mxu0
  %3765 = vmatpush.msra.mxu0 %v3459
  %3766 = vmatpush.msra.mxu0 %v3458
  %3767 = vmatpush.msra.mxu0 %v3457
  %3768 = vmatpush.msra.mxu0 %v3456
  %3769 = vmatpush.msra.mxu0 %v3455
  %3770 = vmatpush.msra.mxu0 %v3454
  %3771 = vmatpush.msra.mxu0 %v3453
  %3772 = vmatpush.msra.mxu0 %v3452
  %3773 = vmatpush.msra.mxu0 %v3451
  %3774 = vmatpush.msra.mxu0 %v3450
  %3775 = vmatpush.msra.mxu0 %v3449
  %3776 = vmatpush.msra.mxu0 %v3448
  %3777 = vmatpush.msra.mxu0 %v3447
  %3778 = vmatpush.msra.mxu0 %v3446
  %3779 = vmatpush.msra.mxu0 %v3445
  %3780 = vmatpush.msra.mxu0 %v3444
  %3781 = vmatmul.f32.gmra.mxu0 %v3305
  %v3782 = vpop.f32.mrf.mxu0
  %v3783 = vadd.f32 %v3757, %v3782
  %3784 = vmatmul.f32.gmra.mxu0 %v3321
  %v3785 = vpop.f32.mrf.mxu0
  %v3786 = vadd.f32 %v3760, %v3785
  %3787 = vmatmul.f32.gmra.mxu0 %v3337
  %v3788 = vpop.f32.mrf.mxu0
  %v3789 = vadd.f32 %v3763, %v3788
  %3790 = vdwg.mxu0
  %3791 = vmatpush.msra.mxu0 %v3475
  %3792 = vmatpush.msra.mxu0 %v3474
  %3793 = vmatpush.msra.mxu0 %v3473
  %3794 = vmatpush.msra.mxu0 %v3472
  %3795 = vmatpush.msra.mxu0 %v3471
  %3796 = vmatpush.msra.mxu0 %v3470
  %3797 = vmatpush.msra.mxu0 %v3469
  %3798 = vmatpush.msra.mxu0 %v3468
  %3799 = vmatpush.msra.mxu0 %v3467
  %3800 = vmatpush.msra.mxu0 %v3466
  %3801 = vmatpush.msra.mxu0 %v3465
  %3802 = vmatpush.msra.mxu0 %v3464
  %3803 = vmatpush.msra.mxu0 %v3463
  %3804 = vmatpush.msra.mxu0 %v3462
  %3805 = vmatpush.msra.mxu0 %v3461
  %3806 = vmatpush.msra.mxu0 %v3460
  %3807 = vmatmul.f32.gmra.mxu0 %v3306
  %v3808 = vpop.f32.mrf.mxu0
  %v3809 = vadd.f32 %v3783, %v3808
  %3810 = vmatmul.f32.gmra.mxu0 %v3322
  %v3811 = vpop.f32.mrf.mxu0
  %v3812 = vadd.f32 %v3786, %v3811
  %3813 = vmatmul.f32.gmra.mxu0 %v3338
  %v3814 = vpop.f32.mrf.mxu0
  %v3815 = vadd.f32 %v3789, %v3814
  %3816 = vdwg.mxu0
  %3817 = vmatpush.msra.mxu0 %v3491
  %3818 = vmatpush.msra.mxu0 %v3490
  %3819 = vmatpush.msra.mxu0 %v3489
  %3820 = vmatpush.msra.mxu0 %v3488
  %3821 = vmatpush.msra.mxu0 %v3487
  %3822 = vmatpush.msra.mxu0 %v3486
  %3823 = vmatpush.msra.mxu0 %v3485
  %3824 = vmatpush.msra.mxu0 %v3484
  %3825 = vmatpush.msra.mxu0 %v3483
  %3826 = vmatpush.msra.mxu0 %v3482
  %3827 = vmatpush.msra.mxu0 %v3481
  %3828 = vmatpush.msra.mxu0 %v3480
  %3829 = vmatpush.msra.mxu0 %v3479
  %3830 = vmatpush.msra.mxu0 %v3478
  %3831 = vmatpush.msra.mxu0 %v3477
  %3832 = vmatpush.msra.mxu0 %v3476
  %3833 = vmatmul.f32.gmra.mxu0 %v3307
  %v3834 = vpop.f32.mrf.mxu0
  %v3835 = vadd.f32 %v3809, %v3834
  %3836 = vmatmul.f32.gmra.mxu0 %v3323
  %v3837 = vpop.f32.mrf.mxu0
  %v3838 = vadd.f32 %v3812, %v3837
  %3839 = vmatmul.f32.gmra.mxu0 %v3339
  %v3840 = vpop.f32.mrf.mxu0
  %v3841 = vadd.f32 %v3815, %v3840
  %3842 = vdwg.mxu0
  %3843 = vmatpush.msra.mxu0 %v3507
  %3844 = vmatpush.msra.mxu0 %v3506
  %3845 = vmatpush.msra.mxu0 %v3505
  %3846 = vmatpush.msra.mxu0 %v3504
  %3847 = vmatpush.msra.mxu0 %v3503
  %3848 = vmatpush.msra.mxu0 %v3502
  %3849 = vmatpush.msra.mxu0 %v3501
  %3850 = vmatpush.msra.mxu0 %v3500
  %3851 = vmatpush.msra.mxu0 %v3499
  %3852 = vmatpush.msra.mxu0 %v3498
  %3853 = vmatpush.msra.mxu0 %v3497
  %3854 = vmatpush.msra.mxu0 %v3496
  %3855 = vmatpush.msra.mxu0 %v3495
  %3856 = vmatpush.msra.mxu0 %v3494
  %3857 = vmatpush.msra.mxu0 %v3493
  %3858 = vmatpush.msra.mxu0 %v3492
  %3859 = vmatmul.f32.gmra.mxu0 %v3308
  %v3860 = vpop.f32.mrf.mxu0
  %v3861 = vadd.f32 %v3835, %v3860
  %3862 = vmatmul.f32.gmra.mxu0 %v3324
  %v3863 = vpop.f32.mrf.mxu0
  %v3864 = vadd.f32 %v3838, %v3863
  %3865 = vmatmul.f32.gmra.mxu0 %v3340
  %v3866 = vpop.f32.mrf.mxu0
  %v3867 = vadd.f32 %v3841, %v3866
  %3868 = vdwg.mxu0
  %3869 = vmatpush.msra.mxu0 %v3523
  %3870 = vmatpush.msra.mxu0 %v3522
  %3871 = vmatpush.msra.mxu0 %v3521
  %3872 = vmatpush.msra.mxu0 %v3520
  %3873 = vmatpush.msra.mxu0 %v3519
  %3874 = vmatpush.msra.mxu0 %v3518
  %3875 = vmatpush.msra.mxu0 %v3517
  %3876 = vmatpush.msra.mxu0 %v3516
  %3877 = vmatpush.msra.mxu0 %v3515
  %3878 = vmatpush.msra.mxu0 %v3514
  %3879 = vmatpush.msra.mxu0 %v3513
  %3880 = vmatpush.msra.mxu0 %v3512
  %3881 = vmatpush.msra.mxu0 %v3511
  %3882 = vmatpush.msra.mxu0 %v3510
  %3883 = vmatpush.msra.mxu0 %v3509
  %3884 = vmatpush.msra.mxu0 %v3508
  %3885 = vmatmul.f32.gmra.mxu0 %v3309
  %v3886 = vpop.f32.mrf.mxu0
  %v3887 = vadd.f32 %v3861, %v3886
  %3888 = vmatmul.f32.gmra.mxu0 %v3325
  %v3889 = vpop.f32.mrf.mxu0
  %v3890 = vadd.f32 %v3864, %v3889
  %3891 = vmatmul.f32.gmra.mxu0 %v3341
  %v3892 = vpop.f32.mrf.mxu0
  %v3893 = vadd.f32 %v3867, %v3892
  %3894 = vdwg.mxu0
  %3895 = vmatpush.msra.mxu0 %v3539
  %3896 = vmatpush.msra.mxu0 %v3538
  %3897 = vmatpush.msra.mxu0 %v3537
  %3898 = vmatpush.msra.mxu0 %v3536
  %3899 = vmatpush.msra.mxu0 %v3535
  %3900 = vmatpush.msra.mxu0 %v3534
  %3901 = vmatpush.msra.mxu0 %v3533
  %3902 = vmatpush.msra.mxu0 %v3532
  %3903 = vmatpush.msra.mxu0 %v3531
  %3904 = vmatpush.msra.mxu0 %v3530
  %3905 = vmatpush.msra.mxu0 %v3529
  %3906 = vmatpush.msra.mxu0 %v3528
  %3907 = vmatpush.msra.mxu0 %v3527
  %3908 = vmatpush.msra.mxu0 %v3526
  %3909 = vmatpush.msra.mxu0 %v3525
  %3910 = vmatpush.msra.mxu0 %v3524
  %3911 = vmatmul.f32.gmra.mxu0 %v3310
  %v3912 = vpop.f32.mrf.mxu0
  %v3913 = vadd.f32 %v3887, %v3912
  %3914 = vmatmul.f32.gmra.mxu0 %v3326
  %v3915 = vpop.f32.mrf.mxu0
  %v3916 = vadd.f32 %v3890, %v3915
  %3917 = vmatmul.f32.gmra.mxu0 %v3342
  %v3918 = vpop.f32.mrf.mxu0
  %v3919 = vadd.f32 %v3893, %v3918
  %3920 = vdwg.mxu0
  %3921 = vmatpush.msra.mxu0 %v3555
  %3922 = vmatpush.msra.mxu0 %v3554
  %3923 = vmatpush.msra.mxu0 %v3553
  %3924 = vmatpush.msra.mxu0 %v3552
  %3925 = vmatpush.msra.mxu0 %v3551
  %3926 = vmatpush.msra.mxu0 %v3550
  %3927 = vmatpush.msra.mxu0 %v3549
  %3928 = vmatpush.msra.mxu0 %v3548
  %3929 = vmatpush.msra.mxu0 %v3547
  %3930 = vmatpush.msra.mxu0 %v3546
  %3931 = vmatpush.msra.mxu0 %v3545
  %3932 = vmatpush.msra.mxu0 %v3544
  %3933 = vmatpush.msra.mxu0 %v3543
  %3934 = vmatpush.msra.mxu0 %v3542
  %3935 = vmatpush.msra.mxu0 %v3541
  %3936 = vmatpush.msra.mxu0 %v3540
  %3937 = vmatmul.f32.gmra.mxu0 %v3311
  %v3938 = vpop.f32.mrf.mxu0
  %v3939 = vadd.f32 %v3913, %v3938
  %3940 = vmatmul.f32.gmra.mxu0 %v3327
  %v3941 = vpop.f32.mrf.mxu0
  %v3942 = vadd.f32 %v3916, %v3941
  %3943 = vmatmul.f32.gmra.mxu0 %v3343
  %v3944 = vpop.f32.mrf.mxu0
  %v3945 = vadd.f32 %v3919, %v3944
  %3946 = vdwg.mxu0
  %3947 = vmatpush.msra.mxu0 %v3571
  %3948 = vmatpush.msra.mxu0 %v3570
  %3949 = vmatpush.msra.mxu0 %v3569
  %3950 = vmatpush.msra.mxu0 %v3568
  %3951 = vmatpush.msra.mxu0 %v3567
  %3952 = vmatpush.msra.mxu0 %v3566
  %3953 = vmatpush.msra.mxu0 %v3565
  %3954 = vmatpush.msra.mxu0 %v3564
  %3955 = vmatpush.msra.mxu0 %v3563
  %3956 = vmatpush.msra.mxu0 %v3562
  %3957 = vmatpush.msra.mxu0 %v3561
  %3958 = vmatpush.msra.mxu0 %v3560
  %3959 = vmatpush.msra.mxu0 %v3559
  %3960 = vmatpush.msra.mxu0 %v3558
  %3961 = vmatpush.msra.mxu0 %v3557
  %3962 = vmatpush.msra.mxu0 %v3556
  %3963 = vmatmul.f32.gmra.mxu0 %v3312
  %v3964 = vpop.f32.mrf.mxu0
  %v3965 = vadd.f32 %v3939, %v3964
  %3966 = vmatmul.f32.gmra.mxu0 %v3328
  %v3967 = vpop.f32.mrf.mxu0
  %v3968 = vadd.f32 %v3942, %v3967
  %3969 = vmatmul.f32.gmra.mxu0 %v3344
  %v3970 = vpop.f32.mrf.mxu0
  %v3971 = vadd.f32 %v3945, %v3970
  %3972 = vdwg.mxu0
  %3973 = vmatpush.msra.mxu0 %v3587
  %3974 = vmatpush.msra.mxu0 %v3586
  %3975 = vmatpush.msra.mxu0 %v3585
  %3976 = vmatpush.msra.mxu0 %v3584
  %3977 = vmatpush.msra.mxu0 %v3583
  %3978 = vmatpush.msra.mxu0 %v3582
  %3979 = vmatpush.msra.mxu0 %v3581
  %3980 = vmatpush.msra.mxu0 %v3580
  %3981 = vmatpush.msra.mxu0 %v3579
  %3982 = vmatpush.msra.mxu0 %v3578
  %3983 = vmatpush.msra.mxu0 %v3577
  %3984 = vmatpush.msra.mxu0 %v3576
  %3985 = vmatpush.msra.mxu0 %v3575
  %3986 = vmatpush.msra.mxu0 %v3574
  %3987 = vmatpush.msra.mxu0 %v3573
  %3988 = vmatpush.msra.mxu0 %v3572
  %3989 = vmatmul.f32.gmra.mxu0 %v3313
  %v3990 = vpop.f32.mrf.mxu0
  %v3991 = vadd.f32 %v3965, %v3990
  %3992 = vmatmul.f32.gmra.mxu0 %v3329
  %v3993 = vpop.f32.mrf.mxu0
  %v3994 = vadd.f32 %v3968, %v3993
  %3995 = vmatmul.f32.gmra.mxu0 %v3345
  %v3996 = vpop.f32.mrf.mxu0
  %v3997 = vadd.f32 %v3971, %v3996
  %3998 = vdwg.mxu0
  %3999 = vmatpush.msra.mxu0 %v3603
  %4000 = vmatpush.msra.mxu0 %v3602
  %4001 = vmatpush.msra.mxu0 %v3601
  %4002 = vmatpush.msra.mxu0 %v3600
  %4003 = vmatpush.msra.mxu0 %v3599
  %4004 = vmatpush.msra.mxu0 %v3598
  %4005 = vmatpush.msra.mxu0 %v3597
  %4006 = vmatpush.msra.mxu0 %v3596
  %4007 = vmatpush.msra.mxu0 %v3595
  %4008 = vmatpush.msra.mxu0 %v3594
  %4009 = vmatpush.msra.mxu0 %v3593
  %4010 = vmatpush.msra.mxu0 %v3592
  %4011 = vmatpush.msra.mxu0 %v3591
  %4012 = vmatpush.msra.mxu0 %v3590
  %4013 = vmatpush.msra.mxu0 %v3589
  %4014 = vmatpush.msra.mxu0 %v3588
  %4015 = vmatmul.f32.gmra.mxu0 %v3314
  %v4016 = vpop.f32.mrf.mxu0
  %v4017 = vadd.f32 %v3991, %v4016
  %4018 = vmatmul.f32.gmra.mxu0 %v3330
  %v4019 = vpop.f32.mrf.mxu0
  %v4020 = vadd.f32 %v3994, %v4019
  %4021 = vmatmul.f32.gmra.mxu0 %v3346
  %v4022 = vpop.f32.mrf.mxu0
  %v4023 = vadd.f32 %v3997, %v4022
  %4024 = vdwg.mxu0
  %v4025 = vadd.f32 %v2753, %v4017
  %v4026 = vadd.f32 %v2754, %v4020
  %v4027 = vadd.f32 %v2755, %v4023
  %s4028 = scalar_lea.vmem %s7, 1
  %v4029 = vld [vmem:[%s4028] sm:$0x1]
  %s4030 = scalar_lea.vmem %s8, 1
  %v4031 = vld [vmem:[%s4030] sm:$0x1]
  %v4032 = vsel %vm53, %v4025, 0.0
  %4033 = vadd.xlane.f32.xlu0 %v4032
  %v4034 = vpop.xlane.xlu0 %4033
  %v4035 = vsel %vm53, %v4026, 0.0
  %4036 = vadd.xlane.f32.xlu0 %v4035
  %v4037 = vpop.xlane.xlu0 %4036
  %v4038 = vsel %vm652, %v4027, 0.0
  %4039 = vadd.xlane.f32.xlu0 %v4038
  %v4040 = vpop.xlane.xlu0 %4039
  %v4041 = vmul.f32 %v4034, %v662
  %v4042 = vmul.f32 %v4037, %v662
  %v4043 = vmul.f32 %v4040, %v662
  %v4044 = vsub.f32 %v4025, %v4041
  %v4045 = vsub.f32 %v4026, %v4042
  %v4046 = vsub.f32 %v4027, %v4043
  %v4047 = vmul.f32 %v4044, %v4044
  %v4048 = vmul.f32 %v4045, %v4045
  %v4049 = vmul.f32 %v4046, %v4046
  %v4050 = vsel %vm53, %v4047, 0.0
  %4051 = vadd.xlane.f32.xlu0 %v4050
  %v4052 = vpop.xlane.xlu0 %4051
  %v4053 = vsel %vm53, %v4048, 0.0
  %4054 = vadd.xlane.f32.xlu0 %v4053
  %v4055 = vpop.xlane.xlu0 %4054
  %v4056 = vsel %vm652, %v4049, 0.0
  %4057 = vadd.xlane.f32.xlu0 %v4056
  %v4058 = vpop.xlane.xlu0 %4057
  %v4059 = vmul.f32 %v4052, %v662
  %v4060 = vmul.f32 %v4055, %v662
  %v4061 = vmul.f32 %v4058, %v662
  %v4062 = vadd.f32 %v4059, 1e-08
  %v4063 = vadd.f32 %v4060, 1e-08
  %v4064 = vadd.f32 %v4061, 1e-08
  %v4065 = vrsqrt.pop %v4062
  %v4066 = vmul.f32 %v4065, %v4062
  %v4067 = vmul.f32 %v4066, %v4065
  %v4068 = vmul.f32 0.5, %v4067
  %v4069 = vsub.f32 1.5, %v4068
  %v4070 = vmul.f32 %v4065, %v4069
  %vm4071 = vweird.f32 %v4062
  %vm4072 = vweird.f32 %v4065
  %vm4073 = vmor %vm4071, %vm4072
  %v4074 = vsel %vm4073, %v4065, %v4070
  %v4075 = vrsqrt.pop %v4063
  %v4076 = vmul.f32 %v4075, %v4063
  %v4077 = vmul.f32 %v4076, %v4075
  %v4078 = vmul.f32 0.5, %v4077
  %v4079 = vsub.f32 1.5, %v4078
  %v4080 = vmul.f32 %v4075, %v4079
  %vm4081 = vweird.f32 %v4063
  %vm4082 = vweird.f32 %v4075
  %vm4083 = vmor %vm4081, %vm4082
  %v4084 = vsel %vm4083, %v4075, %v4080
  %v4085 = vrsqrt.pop %v4064
  %v4086 = vmul.f32 %v4085, %v4064
  %v4087 = vmul.f32 %v4086, %v4085
  %v4088 = vmul.f32 0.5, %v4087
  %v4089 = vsub.f32 1.5, %v4088
  %v4090 = vmul.f32 %v4085, %v4089
  %vm4091 = vweird.f32 %v4064
  %vm4092 = vweird.f32 %v4085
  %vm4093 = vmor %vm4091, %vm4092
  %v4094 = vsel %vm4093, %v4085, %v4090
  %v4095 = vmul.f32 %v4044, %v4074
  %v4096 = vmul.f32 %v4045, %v4084
  %v4097 = vmul.f32 %v4046, %v4094
  %v4099 = vperm.slane %v4029, 0
  %v4101 = vmul.f32 %v4095, %v4099
  %v4102 = vmul.f32 %v4096, %v4099
  %v4103 = vmul.f32 %v4097, %v4099
  %v4105 = vperm.slane %v4031, 0
  %v4107 = vadd.f32 %v4101, %v4105
  %v4108 = vadd.f32 %v4102, %v4105
  %v4109 = vadd.f32 %v4103, %v4105
  %4110 = vst.msk [vmem:[%s13] sm:$0xff] %vm53, %v4107
  %4111 = vst.msk [vmem:[%s13 + $0x8] sm:$0xff] %vm53, %v4108
  %4112 = vst.msk [vmem:[%s13 + $0x10] sm:$0x3] %vm652, %v4109
  // Predicated region
  $region54: #{encoder_forward.1} parent=0 // pred_check
    _
  $region55: #{encoder_forward.1} parent=0 // pred_check_branch
    %4114 = sbr.rel (0) target = $region57
  $region56: #{encoder_forward.1} parent=0 // pred_region
    _
  $region57: #{encoder_forward.1} parent=0 // pred_fallthru
    _
  // Predicated region
  $region58: #{encoder_forward.1} parent=0 // pred_check
    _
  $region59: #{encoder_forward.1} parent=0 // pred_check_branch
    %4116 = sbr.rel (0) target = $region61
  $region60: #{encoder_forward.1} parent=0 // pred_region
    _
  $region61: #{encoder_forward.1} parent=0 // pred_fallthru
    _

</llo_original>
